<compile_context>
chip_gen: v7x
topology: tpu7x:2x2x1
jax: 0.10.0
libtpu: 0.0.40
codegen_flags: <defaults>
</compile_context>

<pallas_src>
import functools

import jax
import jax.numpy as jnp
from jax.experimental import pallas as pl
from jax.experimental.pallas import tpu as pltpu

_PAD = 128  # lane-aligned zero border on the flattened spatial axis (must be >= W+1)


# ---------------------------------------------------------------------------
# Fused Pallas kernel: conv3x3+ReLU -> conv3x3+ReLU -> conv1x1+sigmoid
# ---------------------------------------------------------------------------

def _fused_cloud_mask_kernel(x_ref, w1_ref, b1_ref, w2_ref, b2_ref,
                             w3_ref, b3_ref, mask_ref, o_ref,
                             xbuf_ref, h1buf_ref, *, H, W, Cin, Hid):
    """Fused CloudMaskNet forward for one batch element (channels-first layout).

    x_ref     : (1, Cin, H*W)          f32  input, spatial flattened on lanes
    w1_ref    : (9, Hid, Cin)          f32  layer-1 taps, t = (dy+1)*3 + (dx+1)
    b1_ref    : (Hid, 1)               f32
    w2_ref    : (9, Hid, Hid)          f32  layer-2 taps
    b2_ref    : (Hid, 1)               f32
    w3_ref    : (Hid, 1)               f32  1x1-conv weights
    b3_ref    : (1, 1)                 f32
    mask_ref  : (2, H*W)               f32  [0]: col>0 (for dx=-1), [1]: col<W-1 (dx=+1)
    o_ref     : (1, 1, H*W)            f32  sigmoid cloud mask, lane-dense
    xbuf_ref  : (Cin, _PAD+H*W+_PAD)   f32  scratch: vertically padded input
    h1buf_ref : (Hid, _PAD+H*W+_PAD)   f32  scratch: vertically padded layer-1 output
    """
    HW = H * W
    taps = tuple((dy, dx) for dy in (-1, 0, 1) for dx in (-1, 0, 1))

    def conv3x3_relu(buf_ref, src, w_ref, b_ref, cin):
        # Zero only the lane-aligned borders; the interior is fully overwritten.
        buf_ref[:, 0:_PAD] = jnp.zeros((cin, _PAD), jnp.float32)
        buf_ref[:, _PAD + HW:] = jnp.zeros((cin, _PAD), jnp.float32)
        buf_ref[:, _PAD:_PAD + HW] = src
        acc = jnp.zeros((Hid, HW), jnp.float32)
        for t, (dy, dx) in enumerate(taps):
            start = _PAD + dy * W + dx
            view = buf_ref[:, start:start + HW]          # (cin, HW) lane window
            if dx == -1:
                view = view * mask_ref[0:1, :]           # zero wrapped col 0
            elif dx == 1:
                view = view * mask_ref[1:2, :]           # zero wrapped col W-1
            acc = acc + jnp.dot(w_ref[t], view,
                                preferred_element_type=jnp.float32)
        return jnp.maximum(acc + b_ref[...], 0.0)        # (Hid, HW)

    h1 = conv3x3_relu(xbuf_ref, x_ref[0], w1_ref, b1_ref, Cin)
    h2 = conv3x3_relu(h1buf_ref, h1, w2_ref, b2_ref, Hid)

    # 1x1 conv + sigmoid: weighted reduce over the Hid sublane axis (lane-dense).
    z = jnp.sum(h2 * w3_ref[...], axis=0, keepdims=True) + b3_ref[...]
    o_ref[0] = jax.nn.sigmoid(z)


# ---------------------------------------------------------------------------
# pallas_call wrapper
# ---------------------------------------------------------------------------

def cloud_mask_compress_forward(x_nchw, params, *,
                                vmem_limit_bytes=32 * 1024 * 1024):
    """Forward pass. x_nchw: (N, C, H, W) float32. Returns (N, 1, H, W) float32."""
    (w1, b1), (w2, b2), (w3, b3) = params               # kernel-layout params
    N, Cin, H, W = x_nchw.shape
    HW = H * W
    Hid = w1.shape[1]
    assert w1.shape == (9, Hid, Cin) and w2.shape == (9, Hid, Hid)
    assert _PAD >= W + 1 and _PAD % 128 == 0

    # NCHW with the spatial axis flattened == channels-first, lane-dense layout.
    x_chw = x_nchw.reshape(N, Cin, HW).astype(jnp.float32)

    # Horizontal-boundary masks (independent of dy).
    col = jnp.arange(HW, dtype=jnp.int32) % W
    masks = jnp.stack([(col >= 1).astype(jnp.float32),
                       (col <= W - 2).astype(jnp.float32)])       # (2, HW)

    kernel = functools.partial(_fused_cloud_mask_kernel,
                               H=H, W=W, Cin=Cin, Hid=Hid)

    out = pl.pallas_call(
        kernel,
        out_shape=jax.ShapeDtypeStruct((N, 1, HW), jnp.float32),
        grid_spec=pltpu.PrefetchScalarGridSpec(
            num_scalar_prefetch=0,
            grid=(N,),
            in_specs=[
                pl.BlockSpec((1, Cin, HW), lambda n: (n, 0, 0)),
                pl.BlockSpec((9, Hid, Cin), lambda n: (0, 0, 0)),
                pl.BlockSpec((Hid, 1), lambda n: (0, 0)),
                pl.BlockSpec((9, Hid, Hid), lambda n: (0, 0, 0)),
                pl.BlockSpec((Hid, 1), lambda n: (0, 0)),
                pl.BlockSpec((Hid, 1), lambda n: (0, 0)),
                pl.BlockSpec((1, 1), lambda n: (0, 0)),
                pl.BlockSpec((2, HW), lambda n: (0, 0)),
            ],
            out_specs=pl.BlockSpec((1, 1, HW), lambda n: (n, 0, 0)),
            scratch_shapes=[
                pltpu.VMEM((Cin, _PAD + HW + _PAD), jnp.float32),
                pltpu.VMEM((Hid, _PAD + HW + _PAD), jnp.float32),
            ],
        ),
        compiler_params=pltpu.CompilerParams(
            dimension_semantics=("parallel",),
            vmem_limit_bytes=vmem_limit_bytes),
    )(x_chw, w1, b1, w2, b2, w3, b3, masks)

    return out.reshape(N, 1, H, W)


# ---------------------------------------------------------------------------
# Parameter construction (deterministic, synthetic) + layout conversion
# ---------------------------------------------------------------------------

def init_params(nchannels, hidden, key):
    """PyTorch-layout parameters: conv weights (Cout, Cin, kh, kw)."""
    k1, k2, k3, k4, k5, k6 = jax.random.split(key, 6)

    def he(k, shape, fan_in):
        return jax.random.normal(k, shape, jnp.float32) * jnp.sqrt(2.0 / fan_in)

    w1 = he(k1, (hidden, nchannels, 3, 3), nchannels * 9)
    w2 = he(k2, (hidden, hidden, 3, 3), hidden * 9)
    w3 = he(k3, (1, hidden, 1, 1), hidden)
    b1 = 0.01 * jax.random.normal(k4, (hidden,), jnp.float32)
    b2 = 0.01 * jax.random.normal(k5, (hidden,), jnp.float32)
    b3 = 0.01 * jax.random.normal(k6, (1,), jnp.float32)
    return ((w1, b1), (w2, b2), (w3, b3))


def convert_params_for_kernel(pt_params):
    """(Cout, Cin, 3, 3) -> per-tap (9, Cout, Cin) with t = (dy+1)*3 + (dx+1)."""
    (w1, b1), (w2, b2), (w3, b3) = pt_params
    hid, cin = w1.shape[0], w1.shape[1]
    w1k = jnp.transpose(w1, (2, 3, 0, 1)).reshape(9, hid, cin)
    w2k = jnp.transpose(w2, (2, 3, 0, 1)).reshape(9, hid, hid)
    w3k = w3.reshape(hid, 1)
    return ((w1k, b1.reshape(hid, 1)),
            (w2k, b2.reshape(hid, 1)),
            (w3k, b3.reshape(1, 1)))


# ---------------------------------------------------------------------------
# Pure-JAX reference (PyTorch semantics) for correctness checking
# ---------------------------------------------------------------------------

def reference_forward(x_nchw, pt_params):
    (w1, b1), (w2, b2), (w3, b3) = pt_params

    def conv(x, w, b, pad):
        y = jax.lax.conv_general_dilated(
            x, w, window_strides=(1, 1), padding=[(pad, pad), (pad, pad)],
            dimension_numbers=("NCHW", "OIHW", "NCHW"))
        return y + b.reshape(1, -1, 1, 1)

    h1 = jax.nn.relu(conv(x_nchw, w1, b1, 1))
    h2 = jax.nn.relu(conv(h1, w2, b2, 1))
    return jax.nn.sigmoid(conv(h2, w3, b3, 0))


# ---------------------------------------------------------------------------
# Demo / smoke test
# ---------------------------------------------------------------------------

if __name__ == "__main__":
    # Small synthetic configuration (stands in for RPIX, CPIX, PARAMS.nchannels).
    N, C, H, W = 2, 4, 16, 16
    HIDDEN = 32

    key = jax.random.PRNGKey(0)
    kx, kp = jax.random.split(key)
    x = jax.random.normal(kx, (N, C, H, W), jnp.float32)

    pt_params = init_params(C, HIDDEN, kp)
    k_params = convert_params_for_kernel(pt_params)

    fwd = jax.jit(lambda xx: cloud_mask_compress_forward(xx, k_params))
    out = fwd(x)
    out = jax.block_until_ready(out)

    ref = jax.block_until_ready(reference_forward(x, pt_params))

    assert out.shape == (N, 1, H, W), out.shape
    assert out.dtype == jnp.float32
    assert bool(jnp.all(jnp.isfinite(out)))
    assert bool(jnp.all((out >= 0.0) & (out <= 1.0)))
    # Loose tolerance to absorb MXU-vs-XLA-conv default-precision differences.
    assert bool(jnp.allclose(out, ref, atol=2e-2, rtol=0.0)), \
        float(jnp.max(jnp.abs(out - ref)))
    print("KERNEL_OK")
</pallas_src>

<mosaic_0001>
module attributes {stable_mosaic.version = 11 : i64} {
  func.func @_fused_cloud_mask_kernel(%arg0: i32, %arg1: memref<1x4x256xf32, #tpu.memory_space<vmem>>, %arg2: memref<9x32x4xf32, #tpu.memory_space<vmem>>, %arg3: memref<32x1xf32, #tpu.memory_space<vmem>>, %arg4: memref<9x32x32xf32, #tpu.memory_space<vmem>>, %arg5: memref<32x1xf32, #tpu.memory_space<vmem>>, %arg6: memref<32x1xf32, #tpu.memory_space<vmem>>, %arg7: memref<1x1xf32, #tpu.memory_space<vmem>>, %arg8: memref<2x256xf32, #tpu.memory_space<vmem>>, %arg9: memref<1x1x256xf32, #tpu.memory_space<vmem>>, %arg10: memref<4x512xf32, #tpu.memory_space<vmem>>, %arg11: memref<32x512xf32, #tpu.memory_space<vmem>>) attributes {dimension_semantics = [#tpu.dimension_semantics<parallel>], iteration_bounds = array<i64: 2>, scalar_prefetch = 0 : i64, scratch_operands = 2 : i64, tpu.core_type = #tpu.core_type<tc>, window_params = [{transform_indices = @transform_0, window_bounds = array<i64: 1, 4, 256>}, {pipeline_mode = #tpu.pipeline_mode<synchronous>, transform_indices = @transform_1, window_bounds = array<i64: 9, 32, 4>}, {pipeline_mode = #tpu.pipeline_mode<synchronous>, transform_indices = @transform_2, window_bounds = array<i64: 32, 1>}, {pipeline_mode = #tpu.pipeline_mode<synchronous>, transform_indices = @transform_3, window_bounds = array<i64: 9, 32, 32>}, {pipeline_mode = #tpu.pipeline_mode<synchronous>, transform_indices = @transform_4, window_bounds = array<i64: 32, 1>}, {pipeline_mode = #tpu.pipeline_mode<synchronous>, transform_indices = @transform_5, window_bounds = array<i64: 32, 1>}, {pipeline_mode = #tpu.pipeline_mode<synchronous>, transform_indices = @transform_6, window_bounds = array<i64: 1, 1>}, {pipeline_mode = #tpu.pipeline_mode<synchronous>, transform_indices = @transform_7, window_bounds = array<i64: 2, 256>}, {transform_indices = @transform_8, window_bounds = array<i64: 1, 1, 256>}]} {
    %c0 = arith.constant 0 : index
    %c0_0 = arith.constant 0 : index
    %c0_1 = arith.constant 0 : index
    %0 = vector.load %arg1[%c0, %c0_0, %c0_1] : memref<1x4x256xf32, #tpu.memory_space<vmem>>, vector<1x4x256xf32>
    %1 = vector.shape_cast %0 : vector<1x4x256xf32> to vector<4x256xf32>
    %cst = arith.constant 0.000000e+00 : f32
    %2 = vector.broadcast %cst : f32 to vector<4x128xf32>
    %c0_2 = arith.constant 0 : index
    %c0_3 = arith.constant 0 : index
    %3 = vector.load %arg10[%c0_2, %c0_3] : memref<4x512xf32, #tpu.memory_space<vmem>>, vector<4x128xf32>
    tpu.vector_store %arg10[%c0_2, %c0_3], %2 {strides = array<i32>} : memref<4x512xf32, #tpu.memory_space<vmem>>, vector<4x128xf32>,
    %cst_4 = arith.constant 0.000000e+00 : f32
    %4 = vector.broadcast %cst_4 : f32 to vector<4x128xf32>
    %c0_5 = arith.constant 0 : index
    %c384 = arith.constant 384 : index
    %5 = vector.load %arg10[%c0_5, %c384] : memref<4x512xf32, #tpu.memory_space<vmem>>, vector<4x128xf32>
    tpu.vector_store %arg10[%c0_5, %c384], %4 {strides = array<i32>} : memref<4x512xf32, #tpu.memory_space<vmem>>, vector<4x128xf32>,
    %c0_6 = arith.constant 0 : index
    %c128 = arith.constant 128 : index
    %6 = vector.load %arg10[%c0_6, %c128] : memref<4x512xf32, #tpu.memory_space<vmem>>, vector<4x256xf32>
    tpu.vector_store %arg10[%c0_6, %c128], %1 {strides = array<i32>} : memref<4x512xf32, #tpu.memory_space<vmem>>, vector<4x256xf32>,
    %cst_7 = arith.constant 0.000000e+00 : f32
    %7 = vector.broadcast %cst_7 : f32 to vector<32x256xf32>
    %c0_8 = arith.constant 0 : index
    %c111 = arith.constant 111 : index
    %8 = vector.load %arg10[%c0_8, %c111] : memref<4x512xf32, #tpu.memory_space<vmem>>, vector<4x256xf32>
    %c0_9 = arith.constant 0 : index
    %c0_10 = arith.constant 0 : index
    %9 = vector.load %arg8[%c0_9, %c0_10] : memref<2x256xf32, #tpu.memory_space<vmem>>, vector<1x256xf32>
    %10 = vector.broadcast %9 : vector<1x256xf32> to vector<4x256xf32>
    %11 = arith.mulf %8, %10 : vector<4x256xf32>
    %c0_11 = arith.constant 0 : index
    %c0_12 = arith.constant 0 : index
    %c0_13 = arith.constant 0 : index
    %12 = vector.load %arg2[%c0_11, %c0_12, %c0_13] : memref<9x32x4xf32, #tpu.memory_space<vmem>>, vector<1x32x4xf32>
    %13 = vector.shape_cast %12 : vector<1x32x4xf32> to vector<32x4xf32>
    %cst_14 = arith.constant dense<0.000000e+00> : vector<32x256xf32>
    %14 = tpu.matmul %13, %11, %cst_14 {dimension_numbers = #tpu.dot_dimension_numbers<[1], [0], [0], [1], [0, 0, 1, 1], [], []>} : vector<32x4xf32>, vector<4x256xf32>, vector<32x256xf32> -> vector<32x256xf32>
    %15 = arith.addf %7, %14 : vector<32x256xf32>
    %c0_15 = arith.constant 0 : index
    %c112 = arith.constant 112 : index
    %16 = vector.load %arg10[%c0_15, %c112] : memref<4x512xf32, #tpu.memory_space<vmem>>, vector<4x256xf32>
    %c1 = arith.constant 1 : index
    %c0_16 = arith.constant 0 : index
    %c0_17 = arith.constant 0 : index
    %17 = vector.load %arg2[%c1, %c0_16, %c0_17] : memref<9x32x4xf32, #tpu.memory_space<vmem>>, vector<1x32x4xf32>
    %18 = vector.shape_cast %17 : vector<1x32x4xf32> to vector<32x4xf32>
    %cst_18 = arith.constant dense<0.000000e+00> : vector<32x256xf32>
    %19 = tpu.matmul %18, %16, %cst_18 {dimension_numbers = #tpu.dot_dimension_numbers<[1], [0], [0], [1], [0, 0, 1, 1], [], []>} : vector<32x4xf32>, vector<4x256xf32>, vector<32x256xf32> -> vector<32x256xf32>
    %20 = arith.addf %15, %19 : vector<32x256xf32>
    %c0_19 = arith.constant 0 : index
    %c113 = arith.constant 113 : index
    %21 = vector.load %arg10[%c0_19, %c113] : memref<4x512xf32, #tpu.memory_space<vmem>>, vector<4x256xf32>
    %c1_20 = arith.constant 1 : index
    %c0_21 = arith.constant 0 : index
    %22 = vector.load %arg8[%c1_20, %c0_21] : memref<2x256xf32, #tpu.memory_space<vmem>>, vector<1x256xf32>
    %23 = vector.broadcast %22 : vector<1x256xf32> to vector<4x256xf32>
    %24 = arith.mulf %21, %23 : vector<4x256xf32>
    %c2 = arith.constant 2 : index
    %c0_22 = arith.constant 0 : index
    %c0_23 = arith.constant 0 : index
    %25 = vector.load %arg2[%c2, %c0_22, %c0_23] : memref<9x32x4xf32, #tpu.memory_space<vmem>>, vector<1x32x4xf32>
    %26 = vector.shape_cast %25 : vector<1x32x4xf32> to vector<32x4xf32>
    %cst_24 = arith.constant dense<0.000000e+00> : vector<32x256xf32>
    %27 = tpu.matmul %26, %24, %cst_24 {dimension_numbers = #tpu.dot_dimension_numbers<[1], [0], [0], [1], [0, 0, 1, 1], [], []>} : vector<32x4xf32>, vector<4x256xf32>, vector<32x256xf32> -> vector<32x256xf32>
    %28 = arith.addf %20, %27 : vector<32x256xf32>
    %c0_25 = arith.constant 0 : index
    %c127 = arith.constant 127 : index
    %29 = vector.load %arg10[%c0_25, %c127] : memref<4x512xf32, #tpu.memory_space<vmem>>, vector<4x256xf32>
    %c0_26 = arith.constant 0 : index
    %c0_27 = arith.constant 0 : index
    %30 = vector.load %arg8[%c0_26, %c0_27] : memref<2x256xf32, #tpu.memory_space<vmem>>, vector<1x256xf32>
    %31 = vector.broadcast %30 : vector<1x256xf32> to vector<4x256xf32>
    %32 = arith.mulf %29, %31 : vector<4x256xf32>
    %c3 = arith.constant 3 : index
    %c0_28 = arith.constant 0 : index
    %c0_29 = arith.constant 0 : index
    %33 = vector.load %arg2[%c3, %c0_28, %c0_29] : memref<9x32x4xf32, #tpu.memory_space<vmem>>, vector<1x32x4xf32>
    %34 = vector.shape_cast %33 : vector<1x32x4xf32> to vector<32x4xf32>
    %cst_30 = arith.constant dense<0.000000e+00> : vector<32x256xf32>
    %35 = tpu.matmul %34, %32, %cst_30 {dimension_numbers = #tpu.dot_dimension_numbers<[1], [0], [0], [1], [0, 0, 1, 1], [], []>} : vector<32x4xf32>, vector<4x256xf32>, vector<32x256xf32> -> vector<32x256xf32>
    %36 = arith.addf %28, %35 : vector<32x256xf32>
    %c0_31 = arith.constant 0 : index
    %c128_32 = arith.constant 128 : index
    %37 = vector.load %arg10[%c0_31, %c128_32] : memref<4x512xf32, #tpu.memory_space<vmem>>, vector<4x256xf32>
    %c4 = arith.constant 4 : index
    %c0_33 = arith.constant 0 : index
    %c0_34 = arith.constant 0 : index
    %38 = vector.load %arg2[%c4, %c0_33, %c0_34] : memref<9x32x4xf32, #tpu.memory_space<vmem>>, vector<1x32x4xf32>
    %39 = vector.shape_cast %38 : vector<1x32x4xf32> to vector<32x4xf32>
    %cst_35 = arith.constant dense<0.000000e+00> : vector<32x256xf32>
    %40 = tpu.matmul %39, %37, %cst_35 {dimension_numbers = #tpu.dot_dimension_numbers<[1], [0], [0], [1], [0, 0, 1, 1], [], []>} : vector<32x4xf32>, vector<4x256xf32>, vector<32x256xf32> -> vector<32x256xf32>
    %41 = arith.addf %36, %40 : vector<32x256xf32>
    %c0_36 = arith.constant 0 : index
    %c129 = arith.constant 129 : index
    %42 = vector.load %arg10[%c0_36, %c129] : memref<4x512xf32, #tpu.memory_space<vmem>>, vector<4x256xf32>
    %c1_37 = arith.constant 1 : index
    %c0_38 = arith.constant 0 : index
    %43 = vector.load %arg8[%c1_37, %c0_38] : memref<2x256xf32, #tpu.memory_space<vmem>>, vector<1x256xf32>
    %44 = vector.broadcast %43 : vector<1x256xf32> to vector<4x256xf32>
    %45 = arith.mulf %42, %44 : vector<4x256xf32>
    %c5 = arith.constant 5 : index
    %c0_39 = arith.constant 0 : index
    %c0_40 = arith.constant 0 : index
    %46 = vector.load %arg2[%c5, %c0_39, %c0_40] : memref<9x32x4xf32, #tpu.memory_space<vmem>>, vector<1x32x4xf32>
    %47 = vector.shape_cast %46 : vector<1x32x4xf32> to vector<32x4xf32>
    %cst_41 = arith.constant dense<0.000000e+00> : vector<32x256xf32>
    %48 = tpu.matmul %47, %45, %cst_41 {dimension_numbers = #tpu.dot_dimension_numbers<[1], [0], [0], [1], [0, 0, 1, 1], [], []>} : vector<32x4xf32>, vector<4x256xf32>, vector<32x256xf32> -> vector<32x256xf32>
    %49 = arith.addf %41, %48 : vector<32x256xf32>
    %c0_42 = arith.constant 0 : index
    %c143 = arith.constant 143 : index
    %50 = vector.load %arg10[%c0_42, %c143] : memref<4x512xf32, #tpu.memory_space<vmem>>, vector<4x256xf32>
    %c0_43 = arith.constant 0 : index
    %c0_44 = arith.constant 0 : index
    %51 = vector.load %arg8[%c0_43, %c0_44] : memref<2x256xf32, #tpu.memory_space<vmem>>, vector<1x256xf32>
    %52 = vector.broadcast %51 : vector<1x256xf32> to vector<4x256xf32>
    %53 = arith.mulf %50, %52 : vector<4x256xf32>
    %c6 = arith.constant 6 : index
    %c0_45 = arith.constant 0 : index
    %c0_46 = arith.constant 0 : index
    %54 = vector.load %arg2[%c6, %c0_45, %c0_46] : memref<9x32x4xf32, #tpu.memory_space<vmem>>, vector<1x32x4xf32>
    %55 = vector.shape_cast %54 : vector<1x32x4xf32> to vector<32x4xf32>
    %cst_47 = arith.constant dense<0.000000e+00> : vector<32x256xf32>
    %56 = tpu.matmul %55, %53, %cst_47 {dimension_numbers = #tpu.dot_dimension_numbers<[1], [0], [0], [1], [0, 0, 1, 1], [], []>} : vector<32x4xf32>, vector<4x256xf32>, vector<32x256xf32> -> vector<32x256xf32>
    %57 = arith.addf %49, %56 : vector<32x256xf32>
    %c0_48 = arith.constant 0 : index
    %c144 = arith.constant 144 : index
    %58 = vector.load %arg10[%c0_48, %c144] : memref<4x512xf32, #tpu.memory_space<vmem>>, vector<4x256xf32>
    %c7 = arith.constant 7 : index
    %c0_49 = arith.constant 0 : index
    %c0_50 = arith.constant 0 : index
    %59 = vector.load %arg2[%c7, %c0_49, %c0_50] : memref<9x32x4xf32, #tpu.memory_space<vmem>>, vector<1x32x4xf32>
    %60 = vector.shape_cast %59 : vector<1x32x4xf32> to vector<32x4xf32>
    %cst_51 = arith.constant dense<0.000000e+00> : vector<32x256xf32>
    %61 = tpu.matmul %60, %58, %cst_51 {dimension_numbers = #tpu.dot_dimension_numbers<[1], [0], [0], [1], [0, 0, 1, 1], [], []>} : vector<32x4xf32>, vector<4x256xf32>, vector<32x256xf32> -> vector<32x256xf32>
    %62 = arith.addf %57, %61 : vector<32x256xf32>
    %c0_52 = arith.constant 0 : index
    %c145 = arith.constant 145 : index
    %63 = vector.load %arg10[%c0_52, %c145] : memref<4x512xf32, #tpu.memory_space<vmem>>, vector<4x256xf32>
    %c1_53 = arith.constant 1 : index
    %c0_54 = arith.constant 0 : index
    %64 = vector.load %arg8[%c1_53, %c0_54] : memref<2x256xf32, #tpu.memory_space<vmem>>, vector<1x256xf32>
    %65 = vector.broadcast %64 : vector<1x256xf32> to vector<4x256xf32>
    %66 = arith.mulf %63, %65 : vector<4x256xf32>
    %c8 = arith.constant 8 : index
    %c0_55 = arith.constant 0 : index
    %c0_56 = arith.constant 0 : index
    %67 = vector.load %arg2[%c8, %c0_55, %c0_56] : memref<9x32x4xf32, #tpu.memory_space<vmem>>, vector<1x32x4xf32>
    %68 = vector.shape_cast %67 : vector<1x32x4xf32> to vector<32x4xf32>
    %cst_57 = arith.constant dense<0.000000e+00> : vector<32x256xf32>
    %69 = tpu.matmul %68, %66, %cst_57 {dimension_numbers = #tpu.dot_dimension_numbers<[1], [0], [0], [1], [0, 0, 1, 1], [], []>} : vector<32x4xf32>, vector<4x256xf32>, vector<32x256xf32> -> vector<32x256xf32>
    %70 = arith.addf %62, %69 : vector<32x256xf32>
    %c0_58 = arith.constant 0 : index
    %c0_59 = arith.constant 0 : index
    %71 = vector.load %arg3[%c0_58, %c0_59] : memref<32x1xf32, #tpu.memory_space<vmem>>, vector<32x1xf32>
    %72 = vector.broadcast %71 : vector<32x1xf32> to vector<32x256xf32>
    %73 = arith.addf %70, %72 : vector<32x256xf32>
    %cst_60 = arith.constant 0.000000e+00 : f32
    %74 = vector.broadcast %cst_60 : f32 to vector<32x256xf32>
    %75 = arith.maximumf %73, %74 : vector<32x256xf32>
    %cst_61 = arith.constant 0.000000e+00 : f32
    %76 = vector.broadcast %cst_61 : f32 to vector<32x128xf32>
    %c0_62 = arith.constant 0 : index
    %c0_63 = arith.constant 0 : index
    %77 = vector.load %arg11[%c0_62, %c0_63] : memref<32x512xf32, #tpu.memory_space<vmem>>, vector<32x128xf32>
    tpu.vector_store %arg11[%c0_62, %c0_63], %76 {strides = array<i32>} : memref<32x512xf32, #tpu.memory_space<vmem>>, vector<32x128xf32>,
    %cst_64 = arith.constant 0.000000e+00 : f32
    %78 = vector.broadcast %cst_64 : f32 to vector<32x128xf32>
    %c0_65 = arith.constant 0 : index
    %c384_66 = arith.constant 384 : index
    %79 = vector.load %arg11[%c0_65, %c384_66] : memref<32x512xf32, #tpu.memory_space<vmem>>, vector<32x128xf32>
    tpu.vector_store %arg11[%c0_65, %c384_66], %78 {strides = array<i32>} : memref<32x512xf32, #tpu.memory_space<vmem>>, vector<32x128xf32>,
    %c0_67 = arith.constant 0 : index
    %c128_68 = arith.constant 128 : index
    %80 = vector.load %arg11[%c0_67, %c128_68] : memref<32x512xf32, #tpu.memory_space<vmem>>, vector<32x256xf32>
    tpu.vector_store %arg11[%c0_67, %c128_68], %75 {strides = array<i32>} : memref<32x512xf32, #tpu.memory_space<vmem>>, vector<32x256xf32>,
    %cst_69 = arith.constant 0.000000e+00 : f32
    %81 = vector.broadcast %cst_69 : f32 to vector<32x256xf32>
    %c0_70 = arith.constant 0 : index
    %c111_71 = arith.constant 111 : index
    %82 = vector.load %arg11[%c0_70, %c111_71] : memref<32x512xf32, #tpu.memory_space<vmem>>, vector<32x256xf32>
    %c0_72 = arith.constant 0 : index
    %c0_73 = arith.constant 0 : index
    %83 = vector.load %arg8[%c0_72, %c0_73] : memref<2x256xf32, #tpu.memory_space<vmem>>, vector<1x256xf32>
    %84 = vector.broadcast %83 : vector<1x256xf32> to vector<32x256xf32>
    %85 = arith.mulf %82, %84 : vector<32x256xf32>
    %c0_74 = arith.constant 0 : index
    %c0_75 = arith.constant 0 : index
    %c0_76 = arith.constant 0 : index
    %86 = vector.load %arg4[%c0_74, %c0_75, %c0_76] : memref<9x32x32xf32, #tpu.memory_space<vmem>>, vector<1x32x32xf32>
    %87 = vector.shape_cast %86 : vector<1x32x32xf32> to vector<32x32xf32>
    %cst_77 = arith.constant dense<0.000000e+00> : vector<32x256xf32>
    %88 = tpu.matmul %87, %85, %cst_77 {dimension_numbers = #tpu.dot_dimension_numbers<[1], [0], [0], [1], [0, 0, 1, 1], [], []>} : vector<32x32xf32>, vector<32x256xf32>, vector<32x256xf32> -> vector<32x256xf32>
    %89 = arith.addf %81, %88 : vector<32x256xf32>
    %c0_78 = arith.constant 0 : index
    %c112_79 = arith.constant 112 : index
    %90 = vector.load %arg11[%c0_78, %c112_79] : memref<32x512xf32, #tpu.memory_space<vmem>>, vector<32x256xf32>
    %c1_80 = arith.constant 1 : index
    %c0_81 = arith.constant 0 : index
    %c0_82 = arith.constant 0 : index
    %91 = vector.load %arg4[%c1_80, %c0_81, %c0_82] : memref<9x32x32xf32, #tpu.memory_space<vmem>>, vector<1x32x32xf32>
    %92 = vector.shape_cast %91 : vector<1x32x32xf32> to vector<32x32xf32>
    %cst_83 = arith.constant dense<0.000000e+00> : vector<32x256xf32>
    %93 = tpu.matmul %92, %90, %cst_83 {dimension_numbers = #tpu.dot_dimension_numbers<[1], [0], [0], [1], [0, 0, 1, 1], [], []>} : vector<32x32xf32>, vector<32x256xf32>, vector<32x256xf32> -> vector<32x256xf32>
    %94 = arith.addf %89, %93 : vector<32x256xf32>
    %c0_84 = arith.constant 0 : index
    %c113_85 = arith.constant 113 : index
    %95 = vector.load %arg11[%c0_84, %c113_85] : memref<32x512xf32, #tpu.memory_space<vmem>>, vector<32x256xf32>
    %c1_86 = arith.constant 1 : index
    %c0_87 = arith.constant 0 : index
    %96 = vector.load %arg8[%c1_86, %c0_87] : memref<2x256xf32, #tpu.memory_space<vmem>>, vector<1x256xf32>
    %97 = vector.broadcast %96 : vector<1x256xf32> to vector<32x256xf32>
    %98 = arith.mulf %95, %97 : vector<32x256xf32>
    %c2_88 = arith.constant 2 : index
    %c0_89 = arith.constant 0 : index
    %c0_90 = arith.constant 0 : index
    %99 = vector.load %arg4[%c2_88, %c0_89, %c0_90] : memref<9x32x32xf32, #tpu.memory_space<vmem>>, vector<1x32x32xf32>
    %100 = vector.shape_cast %99 : vector<1x32x32xf32> to vector<32x32xf32>
    %cst_91 = arith.constant dense<0.000000e+00> : vector<32x256xf32>
    %101 = tpu.matmul %100, %98, %cst_91 {dimension_numbers = #tpu.dot_dimension_numbers<[1], [0], [0], [1], [0, 0, 1, 1], [], []>} : vector<32x32xf32>, vector<32x256xf32>, vector<32x256xf32> -> vector<32x256xf32>
    %102 = arith.addf %94, %101 : vector<32x256xf32>
    %c0_92 = arith.constant 0 : index
    %c127_93 = arith.constant 127 : index
    %103 = vector.load %arg11[%c0_92, %c127_93] : memref<32x512xf32, #tpu.memory_space<vmem>>, vector<32x256xf32>
    %c0_94 = arith.constant 0 : index
    %c0_95 = arith.constant 0 : index
    %104 = vector.load %arg8[%c0_94, %c0_95] : memref<2x256xf32, #tpu.memory_space<vmem>>, vector<1x256xf32>
    %105 = vector.broadcast %104 : vector<1x256xf32> to vector<32x256xf32>
    %106 = arith.mulf %103, %105 : vector<32x256xf32>
    %c3_96 = arith.constant 3 : index
    %c0_97 = arith.constant 0 : index
    %c0_98 = arith.constant 0 : index
    %107 = vector.load %arg4[%c3_96, %c0_97, %c0_98] : memref<9x32x32xf32, #tpu.memory_space<vmem>>, vector<1x32x32xf32>
    %108 = vector.shape_cast %107 : vector<1x32x32xf32> to vector<32x32xf32>
    %cst_99 = arith.constant dense<0.000000e+00> : vector<32x256xf32>
    %109 = tpu.matmul %108, %106, %cst_99 {dimension_numbers = #tpu.dot_dimension_numbers<[1], [0], [0], [1], [0, 0, 1, 1], [], []>} : vector<32x32xf32>, vector<32x256xf32>, vector<32x256xf32> -> vector<32x256xf32>
    %110 = arith.addf %102, %109 : vector<32x256xf32>
    %c0_100 = arith.constant 0 : index
    %c128_101 = arith.constant 128 : index
    %111 = vector.load %arg11[%c0_100, %c128_101] : memref<32x512xf32, #tpu.memory_space<vmem>>, vector<32x256xf32>
    %c4_102 = arith.constant 4 : index
    %c0_103 = arith.constant 0 : index
    %c0_104 = arith.constant 0 : index
    %112 = vector.load %arg4[%c4_102, %c0_103, %c0_104] : memref<9x32x32xf32, #tpu.memory_space<vmem>>, vector<1x32x32xf32>
    %113 = vector.shape_cast %112 : vector<1x32x32xf32> to vector<32x32xf32>
    %cst_105 = arith.constant dense<0.000000e+00> : vector<32x256xf32>
    %114 = tpu.matmul %113, %111, %cst_105 {dimension_numbers = #tpu.dot_dimension_numbers<[1], [0], [0], [1], [0, 0, 1, 1], [], []>} : vector<32x32xf32>, vector<32x256xf32>, vector<32x256xf32> -> vector<32x256xf32>
    %115 = arith.addf %110, %114 : vector<32x256xf32>
    %c0_106 = arith.constant 0 : index
    %c129_107 = arith.constant 129 : index
    %116 = vector.load %arg11[%c0_106, %c129_107] : memref<32x512xf32, #tpu.memory_space<vmem>>, vector<32x256xf32>
    %c1_108 = arith.constant 1 : index
    %c0_109 = arith.constant 0 : index
    %117 = vector.load %arg8[%c1_108, %c0_109] : memref<2x256xf32, #tpu.memory_space<vmem>>, vector<1x256xf32>
    %118 = vector.broadcast %117 : vector<1x256xf32> to vector<32x256xf32>
    %119 = arith.mulf %116, %118 : vector<32x256xf32>
    %c5_110 = arith.constant 5 : index
    %c0_111 = arith.constant 0 : index
    %c0_112 = arith.constant 0 : index
    %120 = vector.load %arg4[%c5_110, %c0_111, %c0_112] : memref<9x32x32xf32, #tpu.memory_space<vmem>>, vector<1x32x32xf32>
    %121 = vector.shape_cast %120 : vector<1x32x32xf32> to vector<32x32xf32>
    %cst_113 = arith.constant dense<0.000000e+00> : vector<32x256xf32>
    %122 = tpu.matmul %121, %119, %cst_113 {dimension_numbers = #tpu.dot_dimension_numbers<[1], [0], [0], [1], [0, 0, 1, 1], [], []>} : vector<32x32xf32>, vector<32x256xf32>, vector<32x256xf32> -> vector<32x256xf32>
    %123 = arith.addf %115, %122 : vector<32x256xf32>
    %c0_114 = arith.constant 0 : index
    %c143_115 = arith.constant 143 : index
    %124 = vector.load %arg11[%c0_114, %c143_115] : memref<32x512xf32, #tpu.memory_space<vmem>>, vector<32x256xf32>
    %c0_116 = arith.constant 0 : index
    %c0_117 = arith.constant 0 : index
    %125 = vector.load %arg8[%c0_116, %c0_117] : memref<2x256xf32, #tpu.memory_space<vmem>>, vector<1x256xf32>
    %126 = vector.broadcast %125 : vector<1x256xf32> to vector<32x256xf32>
    %127 = arith.mulf %124, %126 : vector<32x256xf32>
    %c6_118 = arith.constant 6 : index
    %c0_119 = arith.constant 0 : index
    %c0_120 = arith.constant 0 : index
    %128 = vector.load %arg4[%c6_118, %c0_119, %c0_120] : memref<9x32x32xf32, #tpu.memory_space<vmem>>, vector<1x32x32xf32>
    %129 = vector.shape_cast %128 : vector<1x32x32xf32> to vector<32x32xf32>
    %cst_121 = arith.constant dense<0.000000e+00> : vector<32x256xf32>
    %130 = tpu.matmul %129, %127, %cst_121 {dimension_numbers = #tpu.dot_dimension_numbers<[1], [0], [0], [1], [0, 0, 1, 1], [], []>} : vector<32x32xf32>, vector<32x256xf32>, vector<32x256xf32> -> vector<32x256xf32>
    %131 = arith.addf %123, %130 : vector<32x256xf32>
    %c0_122 = arith.constant 0 : index
    %c144_123 = arith.constant 144 : index
    %132 = vector.load %arg11[%c0_122, %c144_123] : memref<32x512xf32, #tpu.memory_space<vmem>>, vector<32x256xf32>
    %c7_124 = arith.constant 7 : index
    %c0_125 = arith.constant 0 : index
    %c0_126 = arith.constant 0 : index
    %133 = vector.load %arg4[%c7_124, %c0_125, %c0_126] : memref<9x32x32xf32, #tpu.memory_space<vmem>>, vector<1x32x32xf32>
    %134 = vector.shape_cast %133 : vector<1x32x32xf32> to vector<32x32xf32>
    %cst_127 = arith.constant dense<0.000000e+00> : vector<32x256xf32>
    %135 = tpu.matmul %134, %132, %cst_127 {dimension_numbers = #tpu.dot_dimension_numbers<[1], [0], [0], [1], [0, 0, 1, 1], [], []>} : vector<32x32xf32>, vector<32x256xf32>, vector<32x256xf32> -> vector<32x256xf32>
    %136 = arith.addf %131, %135 : vector<32x256xf32>
    %c0_128 = arith.constant 0 : index
    %c145_129 = arith.constant 145 : index
    %137 = vector.load %arg11[%c0_128, %c145_129] : memref<32x512xf32, #tpu.memory_space<vmem>>, vector<32x256xf32>
    %c1_130 = arith.constant 1 : index
    %c0_131 = arith.constant 0 : index
    %138 = vector.load %arg8[%c1_130, %c0_131] : memref<2x256xf32, #tpu.memory_space<vmem>>, vector<1x256xf32>
    %139 = vector.broadcast %138 : vector<1x256xf32> to vector<32x256xf32>
    %140 = arith.mulf %137, %139 : vector<32x256xf32>
    %c8_132 = arith.constant 8 : index
    %c0_133 = arith.constant 0 : index
    %c0_134 = arith.constant 0 : index
    %141 = vector.load %arg4[%c8_132, %c0_133, %c0_134] : memref<9x32x32xf32, #tpu.memory_space<vmem>>, vector<1x32x32xf32>
    %142 = vector.shape_cast %141 : vector<1x32x32xf32> to vector<32x32xf32>
    %cst_135 = arith.constant dense<0.000000e+00> : vector<32x256xf32>
    %143 = tpu.matmul %142, %140, %cst_135 {dimension_numbers = #tpu.dot_dimension_numbers<[1], [0], [0], [1], [0, 0, 1, 1], [], []>} : vector<32x32xf32>, vector<32x256xf32>, vector<32x256xf32> -> vector<32x256xf32>
    %144 = arith.addf %136, %143 : vector<32x256xf32>
    %c0_136 = arith.constant 0 : index
    %c0_137 = arith.constant 0 : index
    %145 = vector.load %arg5[%c0_136, %c0_137] : memref<32x1xf32, #tpu.memory_space<vmem>>, vector<32x1xf32>
    %146 = vector.broadcast %145 : vector<32x1xf32> to vector<32x256xf32>
    %147 = arith.addf %144, %146 : vector<32x256xf32>
    %cst_138 = arith.constant 0.000000e+00 : f32
    %148 = vector.broadcast %cst_138 : f32 to vector<32x256xf32>
    %149 = arith.maximumf %147, %148 : vector<32x256xf32>
    %c0_139 = arith.constant 0 : index
    %c0_140 = arith.constant 0 : index
    %150 = vector.load %arg6[%c0_139, %c0_140] : memref<32x1xf32, #tpu.memory_space<vmem>>, vector<32x1xf32>
    %151 = vector.broadcast %150 : vector<32x1xf32> to vector<32x256xf32>
    %152 = arith.mulf %149, %151 : vector<32x256xf32>
    %cst_141 = arith.constant dense<0.000000e+00> : vector<256xf32>
    %153 = vector.multi_reduction <add>, %152, %cst_141 [0] : vector<32x256xf32> to vector<256xf32>
    %154 = vector.shape_cast %153 : vector<256xf32> to vector<1x256xf32>
    %c0_142 = arith.constant 0 : index
    %c0_143 = arith.constant 0 : index
    %155 = vector.load %arg7[%c0_142, %c0_143] : memref<1x1xf32, #tpu.memory_space<vmem>>, vector<1x1xf32>
    %156 = vector.broadcast %155 : vector<1x1xf32> to vector<1x256xf32>
    %157 = arith.addf %154, %156 : vector<1x256xf32>
    %158 = arith.negf %157 : vector<1x256xf32>
    %159 = math.exp %158 : vector<1x256xf32>
    %cst_144 = arith.constant 1.000000e+00 : f32
    %160 = vector.broadcast %cst_144 : f32 to vector<1x256xf32>
    %161 = arith.addf %160, %159 : vector<1x256xf32>
    %162 = arith.divf %160, %161 : vector<1x256xf32>
    %c0_145 = arith.constant 0 : index
    %c0_146 = arith.constant 0 : index
    %c0_147 = arith.constant 0 : index
    %163 = vector.load %arg9[%c0_145, %c0_146, %c0_147] : memref<1x1x256xf32, #tpu.memory_space<vmem>>, vector<1x1x256xf32>
    %164 = vector.shape_cast %163 : vector<1x1x256xf32> to vector<1x256xf32>
    %165 = vector.shape_cast %162 : vector<1x256xf32> to vector<1x1x256xf32>
    tpu.vector_store %arg9[%c0_145, %c0_146, %c0_147], %165 {strides = array<i32>} : memref<1x1x256xf32, #tpu.memory_space<vmem>>, vector<1x1x256xf32>,
    return
  }
  func.func @transform_0(%arg0: i32) -> (i32, i32, i32) {
    %c0_i32 = arith.constant 0 : i32
    %c0_i32_0 = arith.constant 0 : i32
    %c0_i32_1 = arith.constant 0 : i32
    return %arg0, %c0_i32, %c0_i32_0 : i32, i32, i32
  }
  func.func @transform_1(%arg0: i32) -> (i32, i32, i32) {
    %c0_i32 = arith.constant 0 : i32
    %c0_i32_0 = arith.constant 0 : i32
    %c0_i32_1 = arith.constant 0 : i32
    %c0_i32_2 = arith.constant 0 : i32
    return %c0_i32, %c0_i32_0, %c0_i32_1 : i32, i32, i32
  }
  func.func @transform_2(%arg0: i32) -> (i32, i32) {
    %c0_i32 = arith.constant 0 : i32
    %c0_i32_0 = arith.constant 0 : i32
    %c0_i32_1 = arith.constant 0 : i32
    return %c0_i32, %c0_i32_0 : i32, i32
  }
  func.func @transform_3(%arg0: i32) -> (i32, i32, i32) {
    %c0_i32 = arith.constant 0 : i32
    %c0_i32_0 = arith.constant 0 : i32
    %c0_i32_1 = arith.constant 0 : i32
    %c0_i32_2 = arith.constant 0 : i32
    return %c0_i32, %c0_i32_0, %c0_i32_1 : i32, i32, i32
  }
  func.func @transform_4(%arg0: i32) -> (i32, i32) {
    %c0_i32 = arith.constant 0 : i32
    %c0_i32_0 = arith.constant 0 : i32
    %c0_i32_1 = arith.constant 0 : i32
    return %c0_i32, %c0_i32_0 : i32, i32
  }
  func.func @transform_5(%arg0: i32) -> (i32, i32) {
    %c0_i32 = arith.constant 0 : i32
    %c0_i32_0 = arith.constant 0 : i32
    %c0_i32_1 = arith.constant 0 : i32
    return %c0_i32, %c0_i32_0 : i32, i32
  }
  func.func @transform_6(%arg0: i32) -> (i32, i32) {
    %c0_i32 = arith.constant 0 : i32
    %c0_i32_0 = arith.constant 0 : i32
    %c0_i32_1 = arith.constant 0 : i32
    return %c0_i32, %c0_i32_0 : i32, i32
  }
  func.func @transform_7(%arg0: i32) -> (i32, i32) {
    %c0_i32 = arith.constant 0 : i32
    %c0_i32_0 = arith.constant 0 : i32
    %c0_i32_1 = arith.constant 0 : i32
    return %c0_i32, %c0_i32_0 : i32, i32
  }
  func.func @transform_8(%arg0: i32) -> (i32, i32, i32) {
    %c0_i32 = arith.constant 0 : i32
    %c0_i32_0 = arith.constant 0 : i32
    %c0_i32_1 = arith.constant 0 : i32
    return %arg0, %c0_i32, %c0_i32_0 : i32, i32, i32
  }
}

</mosaic_0001>

<llo_original>
// kernel: _lambda_.1
$region0: #{_lambda_.1}
  #allocation0 [shape = 'u32[]', space=smem, size = 0x4, offset = 0x4, fixed_abs, tag = 'smem constant byte address 0x4 - core index']
  #allocation1 [shape = 'u32[144,128]{1,0:T(1,128)}', space=vmem, size = 0x12000, scoped, tag = 'internal scratch']
  #allocation2 [shape = 'f32[4,512]{1,0:T(4,128)}', space=vmem, size = 0x2000, scoped, tag = 'scratch operand']
  #allocation3 [shape = 'f32[32,512]{1,0:T(8,128)}', space=vmem, size = 0x10000, scoped, tag = 'scratch operand']
  #allocation4 [shape = 'f32[1,1]{1,0:T(1,128)S(1)}', space=vmem, size = 0x200, scoped, tag = 'scoped memory for _lambda_.1']
  %s0 = inlined_call_operand.vmem [shape: f32[2,4,256], index: 0, kind: input, shape index: {}]
  %s1 = inlined_call_operand.hbm [shape: f32[9,32,4], index: 1, kind: input, shape index: {}]
  %s2 = inlined_call_operand.vmem [shape: f32[32,1], index: 2, kind: input, shape index: {}]
  %s3 = inlined_call_operand.hbm [shape: f32[9,32,32], index: 3, kind: input, shape index: {}]
  %s4 = inlined_call_operand.vmem [shape: f32[32,1], index: 4, kind: input, shape index: {}]
  %s5 = inlined_call_operand.vmem [shape: f32[32,1], index: 5, kind: input, shape index: {}]
  %s6 = inlined_call_operand.<no memory space> [shape: f32[1,1], index: 6, kind: input, shape index: {}]
  %s7 = inlined_call_operand.vmem [shape: f32[2,256], index: 7, kind: input, shape index: {}]
  %s8 = inlined_call_operand.vmem [shape: f32[2,1,256], index: 8, kind: output, shape index: {}]
  %s9 = sld [smem:[#allocation0]]
  $region73: #{_lambda_.1} parent=0
    _
  %s11 = ssub.s32 1, %s9
  %s12 = scalar_select 0, %s11, %s9
  %v13 = vstv %s6
  %14 = vst [vmem:[#allocation4] sm:$0x1] %v13
  $region1: #{_lambda_.1} parent=0
    #allocation5 [shape = 'u8[147456]{0}', space=vmem, size = 0x24000, scoped, tag = 'input window, operand 1, single buffered']
    #allocation6 [shape = 's32[2]{0}', space=sflag, size = 0x8, scoped, tag = 'scoped memory for _lambda_.1']
    #allocation7 [shape = 'u8[147456]{0}', space=vmem, size = 0x24000, scoped, tag = 'input window, operand 3, single buffered']
    #allocation8 [shape = 's32[1]{0}', space=sflag, size = 0x4, scoped, tag = 'scoped memory for _lambda_.1']
    %15 = vsyncpa [#allocation6], 0
    %16 = vsyncpa [#allocation8], 0
    loop: start=0, step=1, limit=4
    $region2: #{_lambda_.1} parent=1 // loop_pre_header
      _
    $region3: #{_lambda_.1} parent=1 // loop_header
      %s18 = sphi 0, %s22
      %p19 = scmp.ge.s32.totalorder %s18, 4
      %s28 = sphi 0, %s30
      %s31 = sphi 0, %s28
      %s32 = sphi 0, %s31
      %s48 = sphi 0, %s32
      %s52 = sphi 0, %s52
      %s54 = sphi 0, %s52
      %s55 = sphi 0, %s54
      %s69 = sphi 0, %s55
      %s73 = sphi 0, %s73
      %s75 = sphi 0, %s73
      %s76 = sphi 0, %s75
      %s90 = sphi 0, %s76
      %s94 = sphi 0, %s94
      %s96 = sphi 0, %s94
      %s97 = sphi 0, %s96
      %s111 = sphi 0, %s97
      %s115 = sphi 0, %s115
      %s117 = sphi 0, %s115
      %s118 = sphi 0, %s117
      %s132 = sphi 0, %s118
      %s136 = sphi 0, %s136
      %s138 = sphi 0, %s136
      %s139 = sphi 0, %s138
      %s153 = sphi 0, %s139
      %s157 = sphi 0, %s157
      %s159 = sphi 0, %s157
      %s160 = sphi 0, %s159
      %s174 = sphi 0, %s160
      %s178 = sphi 0, %s178
      %s180 = sphi 0, %s178
      %s181 = sphi 0, %s180
      %s195 = sphi 0, %s181
      %s201 = sphi 0, %s203
      %s204 = sphi 0, %s201
      %s205 = sphi 0, %s204
      %s221 = sphi 0, %s205
    $region4: #{_lambda_.1} parent=1 // loop_header_branch
      %21 = sbr.rel (%p19) target = $region8
    $region5: #{_lambda_.1} parent=1 // loop_body
      %s23 = ssub.s32 %s18, 1
      %s24 = ssub.s32 %s18, 2
      %s25 = sadd.s32 %s18, 1
      %s26 = ssub.s32 %s18, %s25
      %p27 = scmp.eq.s32.totalorder %s26, 0
      %s29 = sadd.s32 %s28, 1
      %s30 = scalar_select %p27, %s28, %s29
      %p33 = pneg %p27
      %p34 = scmp.eq.s32.totalorder %s18, 1
      %p35 = por %p33, %p34
      %p36 = scmp.ne.s32.totalorder %s28, %s31
      %p37 = scmp.eq.s32.totalorder %s18, 0
      %p38 = por %p36, %p37
      %p39 = scmp.ne.s32.totalorder %s28, %s31
      %p40 = scmp.eq.s32.totalorder %s23, 1
      %p41 = por %p39, %p40
      %p42 = scmp.ne.s32.totalorder %s31, %s32
      %p43 = scmp.eq.s32.totalorder %s23, 0
      %p44 = por %p42, %p43
      %p45 = scmp.ne.s32.totalorder %s31, %s32
      %p46 = scmp.eq.s32.totalorder %s24, 1
      %p47 = por %p45, %p46
      %p49 = scmp.ne.s32.totalorder %s32, %s48
      %p50 = scmp.eq.s32.totalorder %s24, 0
      %p51 = por %p49, %p50
      %s53 = sadd.s32 %s52, 1
      %p56 = scmp.eq.s32.totalorder %s18, 1
      %p57 = scmp.ne.s32.totalorder %s52, %s54
      %p58 = scmp.eq.s32.totalorder %s18, 0
      %p59 = por %p57, %p58
      %p60 = scmp.ne.s32.totalorder %s52, %s54
      %p61 = scmp.eq.s32.totalorder %s23, 1
      %p62 = por %p60, %p61
      %p63 = scmp.ne.s32.totalorder %s54, %s55
      %p64 = scmp.eq.s32.totalorder %s23, 0
      %p65 = por %p63, %p64
      %p66 = scmp.ne.s32.totalorder %s54, %s55
      %p67 = scmp.eq.s32.totalorder %s24, 1
      %p68 = por %p66, %p67
      %p70 = scmp.ne.s32.totalorder %s55, %s69
      %p71 = scmp.eq.s32.totalorder %s24, 0
      %p72 = por %p70, %p71
      %s74 = sadd.s32 %s73, 1
      %p77 = scmp.eq.s32.totalorder %s18, 1
      %p78 = scmp.ne.s32.totalorder %s73, %s75
      %p79 = scmp.eq.s32.totalorder %s18, 0
      %p80 = por %p78, %p79
      %p81 = scmp.ne.s32.totalorder %s73, %s75
      %p82 = scmp.eq.s32.totalorder %s23, 1
      %p83 = por %p81, %p82
      %p84 = scmp.ne.s32.totalorder %s75, %s76
      %p85 = scmp.eq.s32.totalorder %s23, 0
      %p86 = por %p84, %p85
      %p87 = scmp.ne.s32.totalorder %s75, %s76
      %p88 = scmp.eq.s32.totalorder %s24, 1
      %p89 = por %p87, %p88
      %p91 = scmp.ne.s32.totalorder %s76, %s90
      %p92 = scmp.eq.s32.totalorder %s24, 0
      %p93 = por %p91, %p92
      %s95 = sadd.s32 %s94, 1
      %p98 = scmp.eq.s32.totalorder %s18, 1
      %p99 = scmp.ne.s32.totalorder %s94, %s96
      %p100 = scmp.eq.s32.totalorder %s18, 0
      %p101 = por %p99, %p100
      %p102 = scmp.ne.s32.totalorder %s94, %s96
      %p103 = scmp.eq.s32.totalorder %s23, 1
      %p104 = por %p102, %p103
      %p105 = scmp.ne.s32.totalorder %s96, %s97
      %p106 = scmp.eq.s32.totalorder %s23, 0
      %p107 = por %p105, %p106
      %p108 = scmp.ne.s32.totalorder %s96, %s97
      %p109 = scmp.eq.s32.totalorder %s24, 1
      %p110 = por %p108, %p109
      %p112 = scmp.ne.s32.totalorder %s97, %s111
      %p113 = scmp.eq.s32.totalorder %s24, 0
      %p114 = por %p112, %p113
      %s116 = sadd.s32 %s115, 1
      %p119 = scmp.eq.s32.totalorder %s18, 1
      %p120 = scmp.ne.s32.totalorder %s115, %s117
      %p121 = scmp.eq.s32.totalorder %s18, 0
      %p122 = por %p120, %p121
      %p123 = scmp.ne.s32.totalorder %s115, %s117
      %p124 = scmp.eq.s32.totalorder %s23, 1
      %p125 = por %p123, %p124
      %p126 = scmp.ne.s32.totalorder %s117, %s118
      %p127 = scmp.eq.s32.totalorder %s23, 0
      %p128 = por %p126, %p127
      %p129 = scmp.ne.s32.totalorder %s117, %s118
      %p130 = scmp.eq.s32.totalorder %s24, 1
      %p131 = por %p129, %p130
      %p133 = scmp.ne.s32.totalorder %s118, %s132
      %p134 = scmp.eq.s32.totalorder %s24, 0
      %p135 = por %p133, %p134
      %s137 = sadd.s32 %s136, 1
      %p140 = scmp.eq.s32.totalorder %s18, 1
      %p141 = scmp.ne.s32.totalorder %s136, %s138
      %p142 = scmp.eq.s32.totalorder %s18, 0
      %p143 = por %p141, %p142
      %p144 = scmp.ne.s32.totalorder %s136, %s138
      %p145 = scmp.eq.s32.totalorder %s23, 1
      %p146 = por %p144, %p145
      %p147 = scmp.ne.s32.totalorder %s138, %s139
      %p148 = scmp.eq.s32.totalorder %s23, 0
      %p149 = por %p147, %p148
      %p150 = scmp.ne.s32.totalorder %s138, %s139
      %p151 = scmp.eq.s32.totalorder %s24, 1
      %p152 = por %p150, %p151
      %p154 = scmp.ne.s32.totalorder %s139, %s153
      %p155 = scmp.eq.s32.totalorder %s24, 0
      %p156 = por %p154, %p155
      %s158 = sadd.s32 %s157, 1
      %p161 = scmp.eq.s32.totalorder %s18, 1
      %p162 = scmp.ne.s32.totalorder %s157, %s159
      %p163 = scmp.eq.s32.totalorder %s18, 0
      %p164 = por %p162, %p163
      %p165 = scmp.ne.s32.totalorder %s157, %s159
      %p166 = scmp.eq.s32.totalorder %s23, 1
      %p167 = por %p165, %p166
      %p168 = scmp.ne.s32.totalorder %s159, %s160
      %p169 = scmp.eq.s32.totalorder %s23, 0
      %p170 = por %p168, %p169
      %p171 = scmp.ne.s32.totalorder %s159, %s160
      %p172 = scmp.eq.s32.totalorder %s24, 1
      %p173 = por %p171, %p172
      %p175 = scmp.ne.s32.totalorder %s160, %s174
      %p176 = scmp.eq.s32.totalorder %s24, 0
      %p177 = por %p175, %p176
      %s179 = sadd.s32 %s178, 1
      %p182 = scmp.eq.s32.totalorder %s18, 1
      %p183 = scmp.ne.s32.totalorder %s178, %s180
      %p184 = scmp.eq.s32.totalorder %s18, 0
      %p185 = por %p183, %p184
      %p186 = scmp.ne.s32.totalorder %s178, %s180
      %p187 = scmp.eq.s32.totalorder %s23, 1
      %p188 = por %p186, %p187
      %p189 = scmp.ne.s32.totalorder %s180, %s181
      %p190 = scmp.eq.s32.totalorder %s23, 0
      %p191 = por %p189, %p190
      %p192 = scmp.ne.s32.totalorder %s180, %s181
      %p193 = scmp.eq.s32.totalorder %s24, 1
      %p194 = por %p192, %p193
      %p196 = scmp.ne.s32.totalorder %s181, %s195
      %p197 = scmp.eq.s32.totalorder %s24, 0
      %p198 = por %p196, %p197
      %s199 = ssub.s32 %s18, %s25
      %p200 = scmp.eq.s32.totalorder %s199, 0
      %s202 = sadd.s32 %s201, 1
      %s203 = scalar_select %p200, %s201, %s202
      %p206 = pneg %p200
      %p207 = scmp.eq.s32.totalorder %s18, 1
      %p208 = por %p206, %p207
      %p209 = scmp.ne.s32.totalorder %s201, %s204
      %p210 = scmp.eq.s32.totalorder %s18, 0
      %p211 = por %p209, %p210
      %p212 = scmp.ne.s32.totalorder %s201, %s204
      %p213 = scmp.eq.s32.totalorder %s23, 1
      %p214 = por %p212, %p213
      %p215 = scmp.ne.s32.totalorder %s204, %s205
      %p216 = scmp.eq.s32.totalorder %s23, 0
      %p217 = por %p215, %p216
      %p218 = scmp.ne.s32.totalorder %s204, %s205
      %p219 = scmp.eq.s32.totalorder %s24, 1
      %p220 = por %p218, %p219
      %p222 = scmp.ne.s32.totalorder %s205, %s221
      %p223 = scmp.eq.s32.totalorder %s24, 0
      %p224 = por %p222, %p223
      %p225 = scmp.le.s32.totalorder 1, %s18
      %p226 = scmp.lt.s32.totalorder %s18, 3
      %p227 = pnand %p225, %p226
      %p228 = pneg %p227
      // Predicated region
      $region9: #{_lambda_.1} parent=5 // pred_check
        _
      $region10: #{_lambda_.1} parent=5 // pred_check_branch
        %230 = sbr.rel (%p227) target = $region12
      $region11: #{_lambda_.1} parent=5 // pred_region
        %s231 = ssub.s32 %s18, 1
        // Predicated region
        $region13: #{_lambda_.1} parent=11 // pred_check
          %p232 = pneg %p65
        $region14: #{_lambda_.1} parent=11 // pred_check_branch
          %234 = sbr.rel (%p232) target = $region16
        $region15: #{_lambda_.1} parent=11 // pred_region
          %s236 = ssub.s32 4608, 4608
          %237 = vsyncadd [#allocation6], %s236
          %s238 = sshll.u32 [#allocation5], 4
          %s239 = int_to_ptr.vmem [resolvable:$true] %s238
          %244 = dma.hbm_to_vmem [thread:$0]  %s1, 4608, %s239, [#allocation6], 128, 128, 8
        $region16: #{_lambda_.1} parent=11 // pred_fallthru
          _
        // Predicated region
        $region17: #{_lambda_.1} parent=11 // pred_check
          %p245 = pneg %p86
        $region18: #{_lambda_.1} parent=11 // pred_check_branch
          %247 = sbr.rel (%p245) target = $region20
        $region19: #{_lambda_.1} parent=11 // pred_region
          _
        $region20: #{_lambda_.1} parent=11 // pred_fallthru
          _
        // Predicated region
        $region21: #{_lambda_.1} parent=11 // pred_check
          %p248 = pneg %p107
        $region22: #{_lambda_.1} parent=11 // pred_check_branch
          %250 = sbr.rel (%p248) target = $region24
        $region23: #{_lambda_.1} parent=11 // pred_region
          %s252 = ssub.s32 4608, 4608
          %253 = vsyncadd [#allocation8], %s252
          %s254 = sshll.u32 [#allocation7], 4
          %s255 = int_to_ptr.vmem [resolvable:$true] %s254
          %260 = dma.hbm_to_vmem [thread:$0]  %s3, 4608, %s255, [#allocation8], 128, 128, 8
        $region24: #{_lambda_.1} parent=11 // pred_fallthru
          _
        // Predicated region
        $region25: #{_lambda_.1} parent=11 // pred_check
          %p261 = pneg %p128
        $region26: #{_lambda_.1} parent=11 // pred_check_branch
          %263 = sbr.rel (%p261) target = $region28
        $region27: #{_lambda_.1} parent=11 // pred_region
          _
        $region28: #{_lambda_.1} parent=11 // pred_fallthru
          _
        // Predicated region
        $region29: #{_lambda_.1} parent=11 // pred_check
          %p264 = pneg %p149
        $region30: #{_lambda_.1} parent=11 // pred_check_branch
          %266 = sbr.rel (%p264) target = $region32
        $region31: #{_lambda_.1} parent=11 // pred_region
          _
        $region32: #{_lambda_.1} parent=11 // pred_fallthru
          _
        // Predicated region
        $region33: #{_lambda_.1} parent=11 // pred_check
          %p267 = pneg %p170
        $region34: #{_lambda_.1} parent=11 // pred_check_branch
          %269 = sbr.rel (%p267) target = $region36
        $region35: #{_lambda_.1} parent=11 // pred_region
          _
        $region36: #{_lambda_.1} parent=11 // pred_fallthru
          _
        // Predicated region
        $region37: #{_lambda_.1} parent=11 // pred_check
          %p270 = pneg %p191
        $region38: #{_lambda_.1} parent=11 // pred_check_branch
          %272 = sbr.rel (%p270) target = $region40
        $region39: #{_lambda_.1} parent=11 // pred_region
          _
        $region40: #{_lambda_.1} parent=11 // pred_fallthru
          _
      $region12: #{_lambda_.1} parent=5 // pred_fallthru
        _
      %p273 = scmp.lt.s32.totalorder %s18, 2
      // Predicated region
      $region41: #{_lambda_.1} parent=5 // pred_check
        %p274 = pneg %p273
      $region42: #{_lambda_.1} parent=5 // pred_check_branch
        %276 = sbr.rel (%p274) target = $region44
      $region43: #{_lambda_.1} parent=5 // pred_region
        // Predicated region
        $region45: #{_lambda_.1} parent=43 // pred_check
          %p277 = pneg %p38
        $region46: #{_lambda_.1} parent=43 // pred_check_branch
          %279 = sbr.rel (%p277) target = $region48
        $region47: #{_lambda_.1} parent=43 // pred_region
          %p280 = scmp.lt.s32.totalorder %s18, 1
          %s281 = scalar_select %p280, %s18, 1
          %s282 = smul.addr %s281, 2
          %s283 = smul.addr %s282, 4
          %s284 = scalar_lea.vmem %s0, %s283
        $region48: #{_lambda_.1} parent=43 // pred_fallthru
          _
      $region44: #{_lambda_.1} parent=5 // pred_fallthru
        _
      %p285 = scmp.le.s32.totalorder 1, %s18
      %p286 = scmp.lt.s32.totalorder %s18, 3
      %p287 = pnand %p285, %p286
      %p288 = pneg %p287
      // Predicated region
      $region49: #{_lambda_.1} parent=5 // pred_check
        _
      $region50: #{_lambda_.1} parent=5 // pred_check_branch
        %290 = sbr.rel (%p287) target = $region52
      $region51: #{_lambda_.1} parent=5 // pred_region
        %s291 = ssub.s32 %s18, 1
        // Predicated region
        $region53: #{_lambda_.1} parent=51 // pred_check
          %p292 = pneg %p65
        $region54: #{_lambda_.1} parent=51 // pred_check_branch
          %294 = sbr.rel (%p292) target = $region56
        $region55: #{_lambda_.1} parent=51 // pred_region
          %295 = dma.done [#allocation6], 4608
        $region56: #{_lambda_.1} parent=51 // pred_fallthru
          _
        // Predicated region
        $region57: #{_lambda_.1} parent=51 // pred_check
          %p296 = pneg %p107
        $region58: #{_lambda_.1} parent=51 // pred_check_branch
          %298 = sbr.rel (%p296) target = $region60
        $region59: #{_lambda_.1} parent=51 // pred_region
          %299 = dma.done [#allocation8], 4608
        $region60: #{_lambda_.1} parent=51 // pred_fallthru
          _
        %p300 = scmp.lt.s32.totalorder %s23, 1
        %s301 = scalar_select %p300, %s23, 1
        %s302 = smul.addr %s301, 2
        %s303 = smul.addr %s302, 4
        %s304 = scalar_lea.vmem %s0, %s303
        %p305 = pneg %p44
        %p306 = pneg %p41
        %p307 = pneg %p65
        %p308 = pneg %p62
        %p309 = pneg %p86
        %p310 = pneg %p83
        %p311 = pneg %p107
        %p312 = pneg %p104
        %p313 = pneg %p128
        %p314 = pneg %p125
        %p315 = pneg %p149
        %p316 = pneg %p146
        %p317 = pneg %p170
        %p318 = pneg %p167
        %p319 = pneg %p191
        %p320 = pneg %p188
        %p321 = pneg %p217
        %p322 = pneg %p214
        %p323 = scmp.lt.s32.totalorder %s23, 1
        %s324 = scalar_select %p323, %s23, 1
        %s325 = smul.addr %s324, 2
        %s326 = scalar_lea.vmem %s8, %s325
        %p327 = scmp.lt.s32.totalorder %s23, 1
        %s328 = scalar_select %p327, %s23, 1
        %s329 = smul.addr %s328, 2
        %s330 = smul.addr %s329, 4
        %s331 = scalar_lea.vmem %s0, %s330
        %p332 = scmp.lt.s32.totalorder %s23, 1
        %s333 = scalar_select %p332, %s23, 1
        %s334 = smul.addr %s333, 2
        %s335 = scalar_lea.vmem %s8, %s334
        %v336 = vld [vmem:[%s331] sm:$0xff]
        %337 = vst [vmem:[#allocation2] sm:$0xf] 0.0
        %338 = vst [vmem:[#allocation2 + $0xc] sm:$0xf] 0.0
        %339 = vst [vmem:[#allocation2 + $0x4] sm:$0xff] %v336
        %v340 = vld [vmem:[#allocation2] sm:$0xff]
        %v341 = vld [vmem:[#allocation2 + $0x8] sm:$0xf]
        %v342 = vld [vmem:[%s7] ss:$2 sm:$0x3]
        %v344 = vlaneseq
        %v345 = vshrl.u32 %v344, 7
        %v346 = vsub.s32 0, %v345
        %v347 = vrot.slane %v342, %v346
        %v348 = vlaneseq
        %v349 = vshrl.u32 %v348, 7
        %v350 = vsub.s32 1, %v349
        %v351 = vrot.slane %v342, %v350
        %v352 = vcombine.low %v347, %v351
        %353 = vrot.lane.b32.xlu0 %v352, 111
        %v354 = vpop.permute.xlu0 %353
        %v355 = vrot.slane %v354, 4
        %vm356 = vcmask 908288
        %v357 = vsel %vm356, %v355, %v354
        %v360 = vmul.f32 %v340, %v357
        %v361 = vmul.f32 %v341, %v355
        %v362 = vld [vmem:[#allocation5] sm:$0xff]
        %v363 = vld [vmem:[#allocation5 + $0x8] sm:$0xff]
        %v364 = vld [vmem:[#allocation5 + $0x10] sm:$0xff]
        %v365 = vld [vmem:[#allocation5 + $0x18] sm:$0xff]
        %s366 = scalar_lea.vmem [#allocation5], 32
        %v367 = vld [vmem:[%s366] sm:$0xff]
        %v368 = vld [vmem:[%s366 + $0x8] sm:$0xff]
        %v369 = vld [vmem:[%s366 + $0x10] sm:$0xff]
        %v370 = vld [vmem:[%s366 + $0x18] sm:$0xff]
        %v373 = vcombine.high %v340, %v340
        %374 = vrot.lane.b32.xlu0 %v340, 16
        %v375 = vpop.permute.xlu0 %374
        %376 = vrot.lane.b32.xlu0 %v373, 16
        %v377 = vpop.permute.xlu0 %376
        %378 = vrot.lane.b32.xlu0 %v341, 16
        %v379 = vpop.permute.xlu0 %378
        %vm380 = vcmask 130048
        %v381 = vsel %vm380, %v375, %v377
        %v382 = vsel %vm380, %v377, %v379
        %vm383 = vcmask 31744
        %v385 = vsel %vm383, %v367, 0
        %v388 = vsel %vm383, %v368, 0
        %v391 = vsel %vm383, %v369, 0
        %v394 = vsel %vm383, %v370, 0
        %vm396 = vcmask 1043456
        %v397 = vsel %vm396, %v381, 0
        %v399 = vsel %vm396, %v382, 0
        %401 = vmatprep.subr.mxu0 %v399
        %402 = vmatpush1.msra.mxu0 %v397
        %403 = vmatprep.subr.mxu0 0.0
        %404 = vmatpush1.msra.mxu0 0.0
        %405 = vmatprep.subr.mxu0 0.0
        %406 = vmatpush1.msra.mxu0 0.0
        %407 = vmatprep.subr.mxu0 0.0
        %408 = vmatpush1.msra.mxu0 0.0
        %409 = vmatprep.subr.mxu0 0.0
        %410 = vmatpush1.msra.mxu0 0.0
        %411 = vmatprep.subr.mxu0 0.0
        %412 = vmatpush1.msra.mxu0 0.0
        %413 = vmatprep.subr.mxu0 0.0
        %414 = vmatpush1.msra.mxu0 0.0
        %415 = vmatprep.subr.mxu0 0.0
        %416 = vmatpush1.msra.mxu0 0.0
        %417 = vmatprep.subr.mxu0 0.0
        %418 = vmatpush1.msra.mxu0 0.0
        %419 = vmatprep.subr.mxu0 0.0
        %420 = vmatpush1.msra.mxu0 0.0
        %421 = vmatprep.subr.mxu0 0.0
        %422 = vmatpush1.msra.mxu0 0.0
        %423 = vmatprep.subr.mxu0 0.0
        %424 = vmatpush1.msra.mxu0 0.0
        %425 = vmatprep.subr.mxu0 0.0
        %426 = vmatpush1.msra.mxu0 0.0
        %427 = vmatprep.subr.mxu0 0.0
        %428 = vmatpush1.msra.mxu0 0.0
        %429 = vmatprep.subr.mxu0 0.0
        %430 = vmatpush1.msra.mxu0 0.0
        %431 = vmatprep.subr.mxu0 0.0
        %432 = vmatpush1.msra.mxu0 0.0
        %433 = vmatprep.subr.mxu0 0.0
        %434 = vmatpush1.msra.mxu0 0.0
        %435 = vmatprep.subr.mxu0 0.0
        %436 = vmatpush1.msra.mxu0 0.0
        %437 = vmatprep.subr.mxu0 0.0
        %438 = vmatpush1.msra.mxu0 0.0
        %439 = vmatprep.subr.mxu0 0.0
        %440 = vmatpush1.msra.mxu0 0.0
        %441 = vmatprep.subr.mxu0 0.0
        %442 = vmatpush1.msra.mxu0 0.0
        %443 = vmatprep.subr.mxu0 0.0
        %444 = vmatpush1.msra.mxu0 0.0
        %445 = vmatprep.subr.mxu0 0.0
        %446 = vmatpush1.msra.mxu0 0.0
        %447 = vmatprep.subr.mxu0 0.0
        %448 = vmatpush1.msra.mxu0 0.0
        %449 = vmatprep.subr.mxu0 0.0
        %450 = vmatpush1.msra.mxu0 0.0
        %451 = vmatprep.subr.mxu0 0.0
        %452 = vmatpush1.msra.mxu0 0.0
        %453 = vmatprep.subr.mxu0 0.0
        %454 = vmatpush1.msra.mxu0 0.0
        %455 = vmatprep.subr.mxu0 0.0
        %456 = vmatpush1.msra.mxu0 0.0
        %457 = vmatprep.subr.mxu0 0.0
        %458 = vmatpush1.msra.mxu0 0.0
        %459 = vmatprep.subr.mxu0 0.0
        %460 = vmatpush1.msra.mxu0 0.0
        %461 = vmatprep.subr.mxu0 0.0
        %462 = vmatpush1.msra.mxu0 0.0
        %463 = vmatprep.subr.mxu0 0.0
        %464 = vmatpush1.msra.mxu0 0.0
        %465 = vmatprep.mubr.f32.mxu0 0.0
        %466 = vmatmul.mubr.f32.gmra.mrb[0].mxu0 %v385
        %v467 = vpop.f32.mrb[0].mxu0
        %v468 = vadd.f32 0.0, %v467
        %v469 = vpop.f32.mrb[0].mxu0
        %v470 = vadd.f32 0.0, %v469
        %471 = vmatprep.mubr.f32.mxu0 0.0
        %472 = vmatmul.mubr.f32.gmra.mrb[0].mxu0 %v388
        %v473 = vpop.f32.mrb[0].mxu0
        %v474 = vadd.f32 0.0, %v473
        %v475 = vpop.f32.mrb[0].mxu0
        %v476 = vadd.f32 0.0, %v475
        %477 = vmatprep.mubr.f32.mxu0 0.0
        %478 = vmatmul.mubr.f32.gmra.mrb[0].mxu0 %v391
        %v479 = vpop.f32.mrb[0].mxu0
        %v480 = vadd.f32 0.0, %v479
        %v481 = vpop.f32.mrb[0].mxu0
        %v482 = vadd.f32 0.0, %v481
        %483 = vmatprep.mubr.f32.mxu0 0.0
        %484 = vmatmul.mubr.f32.gmra.mrb[0].mxu0 %v394
        %v485 = vpop.f32.mrb[0].mxu0
        %v486 = vadd.f32 0.0, %v485
        %v487 = vpop.f32.mrb[0].mxu0
        %v488 = vadd.f32 0.0, %v487
        %489 = vdwg.mxu0
        %v492 = vcombine.high %v360, %v360
        %493 = vrot.lane.b32.xlu0 %v360, 17
        %v494 = vpop.permute.xlu0 %493
        %495 = vrot.lane.b32.xlu0 %v492, 17
        %v496 = vpop.permute.xlu0 %495
        %497 = vrot.lane.b32.xlu0 %v361, 17
        %v498 = vpop.permute.xlu0 %497
        %vm499 = vcmask 138240
        %v500 = vsel %vm499, %v494, %v496
        %v501 = vsel %vm499, %v496, %v498
        %v503 = vsel %vm383, %v362, 0
        %v506 = vsel %vm383, %v363, 0
        %v509 = vsel %vm383, %v364, 0
        %v512 = vsel %vm383, %v365, 0
        %v514 = vsel %vm396, %v500, 0
        %v516 = vsel %vm396, %v501, 0
        %518 = vmatprep.subr.mxu0 %v516
        %519 = vmatpush1.msra.mxu0 %v514
        %520 = vmatprep.subr.mxu0 0.0
        %521 = vmatpush1.msra.mxu0 0.0
        %522 = vmatprep.subr.mxu0 0.0
        %523 = vmatpush1.msra.mxu0 0.0
        %524 = vmatprep.subr.mxu0 0.0
        %525 = vmatpush1.msra.mxu0 0.0
        %526 = vmatprep.subr.mxu0 0.0
        %527 = vmatpush1.msra.mxu0 0.0
        %528 = vmatprep.subr.mxu0 0.0
        %529 = vmatpush1.msra.mxu0 0.0
        %530 = vmatprep.subr.mxu0 0.0
        %531 = vmatpush1.msra.mxu0 0.0
        %532 = vmatprep.subr.mxu0 0.0
        %533 = vmatpush1.msra.mxu0 0.0
        %534 = vmatprep.subr.mxu0 0.0
        %535 = vmatpush1.msra.mxu0 0.0
        %536 = vmatprep.subr.mxu0 0.0
        %537 = vmatpush1.msra.mxu0 0.0
        %538 = vmatprep.subr.mxu0 0.0
        %539 = vmatpush1.msra.mxu0 0.0
        %540 = vmatprep.subr.mxu0 0.0
        %541 = vmatpush1.msra.mxu0 0.0
        %542 = vmatprep.subr.mxu0 0.0
        %543 = vmatpush1.msra.mxu0 0.0
        %544 = vmatprep.subr.mxu0 0.0
        %545 = vmatpush1.msra.mxu0 0.0
        %546 = vmatprep.subr.mxu0 0.0
        %547 = vmatpush1.msra.mxu0 0.0
        %548 = vmatprep.subr.mxu0 0.0
        %549 = vmatpush1.msra.mxu0 0.0
        %550 = vmatprep.subr.mxu0 0.0
        %551 = vmatpush1.msra.mxu0 0.0
        %552 = vmatprep.subr.mxu0 0.0
        %553 = vmatpush1.msra.mxu0 0.0
        %554 = vmatprep.subr.mxu0 0.0
        %555 = vmatpush1.msra.mxu0 0.0
        %556 = vmatprep.subr.mxu0 0.0
        %557 = vmatpush1.msra.mxu0 0.0
        %558 = vmatprep.subr.mxu0 0.0
        %559 = vmatpush1.msra.mxu0 0.0
        %560 = vmatprep.subr.mxu0 0.0
        %561 = vmatpush1.msra.mxu0 0.0
        %562 = vmatprep.subr.mxu0 0.0
        %563 = vmatpush1.msra.mxu0 0.0
        %564 = vmatprep.subr.mxu0 0.0
        %565 = vmatpush1.msra.mxu0 0.0
        %566 = vmatprep.subr.mxu0 0.0
        %567 = vmatpush1.msra.mxu0 0.0
        %568 = vmatprep.subr.mxu0 0.0
        %569 = vmatpush1.msra.mxu0 0.0
        %570 = vmatprep.subr.mxu0 0.0
        %571 = vmatpush1.msra.mxu0 0.0
        %572 = vmatprep.subr.mxu0 0.0
        %573 = vmatpush1.msra.mxu0 0.0
        %574 = vmatprep.subr.mxu0 0.0
        %575 = vmatpush1.msra.mxu0 0.0
        %576 = vmatprep.subr.mxu0 0.0
        %577 = vmatpush1.msra.mxu0 0.0
        %578 = vmatprep.subr.mxu0 0.0
        %579 = vmatpush1.msra.mxu0 0.0
        %580 = vmatprep.subr.mxu0 0.0
        %581 = vmatpush1.msra.mxu0 0.0
        %582 = vmatprep.mubr.f32.mxu0 0.0
        %583 = vmatmul.mubr.f32.gmra.mrb[0].mxu0 %v503
        %v584 = vpop.f32.mrb[0].mxu0
        %v585 = vadd.f32 %v468, %v584
        %v586 = vpop.f32.mrb[0].mxu0
        %v587 = vadd.f32 %v470, %v586
        %588 = vmatprep.mubr.f32.mxu0 0.0
        %589 = vmatmul.mubr.f32.gmra.mrb[0].mxu0 %v506
        %v590 = vpop.f32.mrb[0].mxu0
        %v591 = vadd.f32 %v474, %v590
        %v592 = vpop.f32.mrb[0].mxu0
        %v593 = vadd.f32 %v476, %v592
        %594 = vmatprep.mubr.f32.mxu0 0.0
        %595 = vmatmul.mubr.f32.gmra.mrb[0].mxu0 %v509
        %v596 = vpop.f32.mrb[0].mxu0
        %v597 = vadd.f32 %v480, %v596
        %v598 = vpop.f32.mrb[0].mxu0
        %v599 = vadd.f32 %v482, %v598
        %600 = vmatprep.mubr.f32.mxu0 0.0
        %601 = vmatmul.mubr.f32.gmra.mrb[0].mxu0 %v512
        %v602 = vpop.f32.mrb[0].mxu0
        %v603 = vadd.f32 %v486, %v602
        %v604 = vpop.f32.mrb[0].mxu0
        %v605 = vadd.f32 %v488, %v604
        %606 = vdwg.mxu0
        %v607 = vld [vmem:[#allocation2] sm:$0xff]
        %v608 = vld [vmem:[#allocation2 + $0x8] sm:$0xf]
        %s609 = scalar_lea.vmem %s7, 1
        %v610 = vld [vmem:[%s609] ss:$2 sm:$0x3]
        %v612 = vlaneseq
        %v613 = vshrl.u32 %v612, 7
        %v614 = vsub.s32 0, %v613
        %v615 = vrot.slane %v610, %v614
        %v616 = vlaneseq
        %v617 = vshrl.u32 %v616, 7
        %v618 = vsub.s32 1, %v617
        %v619 = vrot.slane %v610, %v618
        %v620 = vcombine.low %v615, %v619
        %621 = vrot.lane.b32.xlu0 %v620, 113
        %v622 = vpop.permute.xlu0 %621
        %v623 = vrot.slane %v622, 4
        %vm624 = vcmask 924672
        %v625 = vsel %vm624, %v623, %v622
        %v628 = vmul.f32 %v607, %v625
        %v629 = vmul.f32 %v608, %v623
        %s630 = scalar_lea.vmem [#allocation5], 64
        %v631 = vld [vmem:[%s630] sm:$0xff]
        %v632 = vld [vmem:[%s630 + $0x8] sm:$0xff]
        %v633 = vld [vmem:[%s630 + $0x10] sm:$0xff]
        %v634 = vld [vmem:[%s630 + $0x18] sm:$0xff]
        %v637 = vcombine.high %v628, %v628
        %638 = vrot.lane.b32.xlu0 %v628, 15
        %v639 = vpop.permute.xlu0 %638
        %640 = vrot.lane.b32.xlu0 %v637, 15
        %v641 = vpop.permute.xlu0 %640
        %642 = vrot.lane.b32.xlu0 %v629, 15
        %v643 = vpop.permute.xlu0 %642
        %vm644 = vcmask 121856
        %v645 = vsel %vm644, %v639, %v641
        %v646 = vsel %vm644, %v641, %v643
        %v648 = vsel %vm383, %v631, 0
        %v651 = vsel %vm383, %v632, 0
        %v654 = vsel %vm383, %v633, 0
        %v657 = vsel %vm383, %v634, 0
        %v659 = vsel %vm396, %v645, 0
        %v661 = vsel %vm396, %v646, 0
        %663 = vmatprep.subr.mxu0 %v661
        %664 = vmatpush1.msra.mxu0 %v659
        %665 = vmatprep.subr.mxu0 0.0
        %666 = vmatpush1.msra.mxu0 0.0
        %667 = vmatprep.subr.mxu0 0.0
        %668 = vmatpush1.msra.mxu0 0.0
        %669 = vmatprep.subr.mxu0 0.0
        %670 = vmatpush1.msra.mxu0 0.0
        %671 = vmatprep.subr.mxu0 0.0
        %672 = vmatpush1.msra.mxu0 0.0
        %673 = vmatprep.subr.mxu0 0.0
        %674 = vmatpush1.msra.mxu0 0.0
        %675 = vmatprep.subr.mxu0 0.0
        %676 = vmatpush1.msra.mxu0 0.0
        %677 = vmatprep.subr.mxu0 0.0
        %678 = vmatpush1.msra.mxu0 0.0
        %679 = vmatprep.subr.mxu0 0.0
        %680 = vmatpush1.msra.mxu0 0.0
        %681 = vmatprep.subr.mxu0 0.0
        %682 = vmatpush1.msra.mxu0 0.0
        %683 = vmatprep.subr.mxu0 0.0
        %684 = vmatpush1.msra.mxu0 0.0
        %685 = vmatprep.subr.mxu0 0.0
        %686 = vmatpush1.msra.mxu0 0.0
        %687 = vmatprep.subr.mxu0 0.0
        %688 = vmatpush1.msra.mxu0 0.0
        %689 = vmatprep.subr.mxu0 0.0
        %690 = vmatpush1.msra.mxu0 0.0
        %691 = vmatprep.subr.mxu0 0.0
        %692 = vmatpush1.msra.mxu0 0.0
        %693 = vmatprep.subr.mxu0 0.0
        %694 = vmatpush1.msra.mxu0 0.0
        %695 = vmatprep.subr.mxu0 0.0
        %696 = vmatpush1.msra.mxu0 0.0
        %697 = vmatprep.subr.mxu0 0.0
        %698 = vmatpush1.msra.mxu0 0.0
        %699 = vmatprep.subr.mxu0 0.0
        %700 = vmatpush1.msra.mxu0 0.0
        %701 = vmatprep.subr.mxu0 0.0
        %702 = vmatpush1.msra.mxu0 0.0
        %703 = vmatprep.subr.mxu0 0.0
        %704 = vmatpush1.msra.mxu0 0.0
        %705 = vmatprep.subr.mxu0 0.0
        %706 = vmatpush1.msra.mxu0 0.0
        %707 = vmatprep.subr.mxu0 0.0
        %708 = vmatpush1.msra.mxu0 0.0
        %709 = vmatprep.subr.mxu0 0.0
        %710 = vmatpush1.msra.mxu0 0.0
        %711 = vmatprep.subr.mxu0 0.0
        %712 = vmatpush1.msra.mxu0 0.0
        %713 = vmatprep.subr.mxu0 0.0
        %714 = vmatpush1.msra.mxu0 0.0
        %715 = vmatprep.subr.mxu0 0.0
        %716 = vmatpush1.msra.mxu0 0.0
        %717 = vmatprep.subr.mxu0 0.0
        %718 = vmatpush1.msra.mxu0 0.0
        %719 = vmatprep.subr.mxu0 0.0
        %720 = vmatpush1.msra.mxu0 0.0
        %721 = vmatprep.subr.mxu0 0.0
        %722 = vmatpush1.msra.mxu0 0.0
        %723 = vmatprep.subr.mxu0 0.0
        %724 = vmatpush1.msra.mxu0 0.0
        %725 = vmatprep.subr.mxu0 0.0
        %726 = vmatpush1.msra.mxu0 0.0
        %727 = vmatprep.mubr.f32.mxu0 0.0
        %728 = vmatmul.mubr.f32.gmra.mrb[0].mxu0 %v648
        %v729 = vpop.f32.mrb[0].mxu0
        %v730 = vadd.f32 0.0, %v729
        %v731 = vpop.f32.mrb[0].mxu0
        %v732 = vadd.f32 0.0, %v731
        %733 = vmatprep.mubr.f32.mxu0 0.0
        %734 = vmatmul.mubr.f32.gmra.mrb[0].mxu0 %v651
        %v735 = vpop.f32.mrb[0].mxu0
        %v736 = vadd.f32 0.0, %v735
        %v737 = vpop.f32.mrb[0].mxu0
        %v738 = vadd.f32 0.0, %v737
        %739 = vmatprep.mubr.f32.mxu0 0.0
        %740 = vmatmul.mubr.f32.gmra.mrb[0].mxu0 %v654
        %v741 = vpop.f32.mrb[0].mxu0
        %v742 = vadd.f32 0.0, %v741
        %v743 = vpop.f32.mrb[0].mxu0
        %v744 = vadd.f32 0.0, %v743
        %745 = vmatprep.mubr.f32.mxu0 0.0
        %746 = vmatmul.mubr.f32.gmra.mrb[0].mxu0 %v657
        %v747 = vpop.f32.mrb[0].mxu0
        %v748 = vadd.f32 0.0, %v747
        %v749 = vpop.f32.mrb[0].mxu0
        %v750 = vadd.f32 0.0, %v749
        %751 = vdwg.mxu0
        %v752 = vadd.f32 %v585, %v730
        %v753 = vadd.f32 %v587, %v732
        %v754 = vadd.f32 %v591, %v736
        %v755 = vadd.f32 %v593, %v738
        %v756 = vadd.f32 %v597, %v742
        %v757 = vadd.f32 %v599, %v744
        %v758 = vadd.f32 %v603, %v748
        %v759 = vadd.f32 %v605, %v750
        %v760 = vld [vmem:[#allocation2] sm:$0xff]
        %v761 = vld [vmem:[#allocation2 + $0x8] sm:$0xf]
        %762 = vrot.lane.b32.xlu0 %v352, 127
        %v763 = vpop.permute.xlu0 %762
        %v764 = vrot.slane %v763, 4
        %vm765 = vcmask 1039360
        %v766 = vsel %vm765, %v764, %v763
        %v769 = vmul.f32 %v760, %v766
        %v770 = vmul.f32 %v761, %v764
        %s771 = scalar_lea.vmem [#allocation5], 96
        %v772 = vld [vmem:[%s771] sm:$0xff]
        %v773 = vld [vmem:[%s771 + $0x8] sm:$0xff]
        %v774 = vld [vmem:[%s771 + $0x10] sm:$0xff]
        %v775 = vld [vmem:[%s771 + $0x18] sm:$0xff]
        %v778 = vcombine.high %v769, %v769
        %779 = vrot.lane.b32.xlu0 %v769, 1
        %v780 = vpop.permute.xlu0 %779
        %781 = vrot.lane.b32.xlu0 %v778, 1
        %v782 = vpop.permute.xlu0 %781
        %783 = vrot.lane.b32.xlu0 %v770, 1
        %v784 = vpop.permute.xlu0 %783
        %vm785 = vcmask 7168
        %v786 = vsel %vm785, %v780, %v782
        %v787 = vsel %vm785, %v782, %v784
        %v789 = vsel %vm383, %v772, 0
        %v792 = vsel %vm383, %v773, 0
        %v795 = vsel %vm383, %v774, 0
        %v798 = vsel %vm383, %v775, 0
        %v800 = vsel %vm396, %v786, 0
        %v802 = vsel %vm396, %v787, 0
        %804 = vmatprep.subr.mxu0 %v802
        %805 = vmatpush1.msra.mxu0 %v800
        %806 = vmatprep.subr.mxu0 0.0
        %807 = vmatpush1.msra.mxu0 0.0
        %808 = vmatprep.subr.mxu0 0.0
        %809 = vmatpush1.msra.mxu0 0.0
        %810 = vmatprep.subr.mxu0 0.0
        %811 = vmatpush1.msra.mxu0 0.0
        %812 = vmatprep.subr.mxu0 0.0
        %813 = vmatpush1.msra.mxu0 0.0
        %814 = vmatprep.subr.mxu0 0.0
        %815 = vmatpush1.msra.mxu0 0.0
        %816 = vmatprep.subr.mxu0 0.0
        %817 = vmatpush1.msra.mxu0 0.0
        %818 = vmatprep.subr.mxu0 0.0
        %819 = vmatpush1.msra.mxu0 0.0
        %820 = vmatprep.subr.mxu0 0.0
        %821 = vmatpush1.msra.mxu0 0.0
        %822 = vmatprep.subr.mxu0 0.0
        %823 = vmatpush1.msra.mxu0 0.0
        %824 = vmatprep.subr.mxu0 0.0
        %825 = vmatpush1.msra.mxu0 0.0
        %826 = vmatprep.subr.mxu0 0.0
        %827 = vmatpush1.msra.mxu0 0.0
        %828 = vmatprep.subr.mxu0 0.0
        %829 = vmatpush1.msra.mxu0 0.0
        %830 = vmatprep.subr.mxu0 0.0
        %831 = vmatpush1.msra.mxu0 0.0
        %832 = vmatprep.subr.mxu0 0.0
        %833 = vmatpush1.msra.mxu0 0.0
        %834 = vmatprep.subr.mxu0 0.0
        %835 = vmatpush1.msra.mxu0 0.0
        %836 = vmatprep.subr.mxu0 0.0
        %837 = vmatpush1.msra.mxu0 0.0
        %838 = vmatprep.subr.mxu0 0.0
        %839 = vmatpush1.msra.mxu0 0.0
        %840 = vmatprep.subr.mxu0 0.0
        %841 = vmatpush1.msra.mxu0 0.0
        %842 = vmatprep.subr.mxu0 0.0
        %843 = vmatpush1.msra.mxu0 0.0
        %844 = vmatprep.subr.mxu0 0.0
        %845 = vmatpush1.msra.mxu0 0.0
        %846 = vmatprep.subr.mxu0 0.0
        %847 = vmatpush1.msra.mxu0 0.0
        %848 = vmatprep.subr.mxu0 0.0
        %849 = vmatpush1.msra.mxu0 0.0
        %850 = vmatprep.subr.mxu0 0.0
        %851 = vmatpush1.msra.mxu0 0.0
        %852 = vmatprep.subr.mxu0 0.0
        %853 = vmatpush1.msra.mxu0 0.0
        %854 = vmatprep.subr.mxu0 0.0
        %855 = vmatpush1.msra.mxu0 0.0
        %856 = vmatprep.subr.mxu0 0.0
        %857 = vmatpush1.msra.mxu0 0.0
        %858 = vmatprep.subr.mxu0 0.0
        %859 = vmatpush1.msra.mxu0 0.0
        %860 = vmatprep.subr.mxu0 0.0
        %861 = vmatpush1.msra.mxu0 0.0
        %862 = vmatprep.subr.mxu0 0.0
        %863 = vmatpush1.msra.mxu0 0.0
        %864 = vmatprep.subr.mxu0 0.0
        %865 = vmatpush1.msra.mxu0 0.0
        %866 = vmatprep.subr.mxu0 0.0
        %867 = vmatpush1.msra.mxu0 0.0
        %868 = vmatprep.mubr.f32.mxu0 0.0
        %869 = vmatmul.mubr.f32.gmra.mrb[0].mxu0 %v789
        %v870 = vpop.f32.mrb[0].mxu0
        %v871 = vadd.f32 0.0, %v870
        %v872 = vpop.f32.mrb[0].mxu0
        %v873 = vadd.f32 0.0, %v872
        %874 = vmatprep.mubr.f32.mxu0 0.0
        %875 = vmatmul.mubr.f32.gmra.mrb[0].mxu0 %v792
        %v876 = vpop.f32.mrb[0].mxu0
        %v877 = vadd.f32 0.0, %v876
        %v878 = vpop.f32.mrb[0].mxu0
        %v879 = vadd.f32 0.0, %v878
        %880 = vmatprep.mubr.f32.mxu0 0.0
        %881 = vmatmul.mubr.f32.gmra.mrb[0].mxu0 %v795
        %v882 = vpop.f32.mrb[0].mxu0
        %v883 = vadd.f32 0.0, %v882
        %v884 = vpop.f32.mrb[0].mxu0
        %v885 = vadd.f32 0.0, %v884
        %886 = vmatprep.mubr.f32.mxu0 0.0
        %887 = vmatmul.mubr.f32.gmra.mrb[0].mxu0 %v798
        %v888 = vpop.f32.mrb[0].mxu0
        %v889 = vadd.f32 0.0, %v888
        %v890 = vpop.f32.mrb[0].mxu0
        %v891 = vadd.f32 0.0, %v890
        %892 = vdwg.mxu0
        %v893 = vadd.f32 %v752, %v871
        %v894 = vadd.f32 %v753, %v873
        %v895 = vadd.f32 %v754, %v877
        %v896 = vadd.f32 %v755, %v879
        %v897 = vadd.f32 %v756, %v883
        %v898 = vadd.f32 %v757, %v885
        %v899 = vadd.f32 %v758, %v889
        %v900 = vadd.f32 %v759, %v891
        %v901 = vld [vmem:[#allocation2 + $0x4] sm:$0xff]
        %s902 = scalar_lea.vmem [#allocation5], 128
        %v903 = vld [vmem:[%s902] sm:$0xff]
        %v904 = vld [vmem:[%s902 + $0x8] sm:$0xff]
        %v905 = vld [vmem:[%s902 + $0x10] sm:$0xff]
        %v906 = vld [vmem:[%s902 + $0x18] sm:$0xff]
        %v908 = vcombine.high %v901, %v901
        %v910 = vsel %vm383, %v903, 0
        %v913 = vsel %vm383, %v904, 0
        %v916 = vsel %vm383, %v905, 0
        %v919 = vsel %vm383, %v906, 0
        %v921 = vsel %vm396, %v901, 0
        %v923 = vsel %vm396, %v908, 0
        %925 = vmatprep.subr.mxu0 %v923
        %926 = vmatpush1.msra.mxu0 %v921
        %927 = vmatprep.subr.mxu0 0.0
        %928 = vmatpush1.msra.mxu0 0.0
        %929 = vmatprep.subr.mxu0 0.0
        %930 = vmatpush1.msra.mxu0 0.0
        %931 = vmatprep.subr.mxu0 0.0
        %932 = vmatpush1.msra.mxu0 0.0
        %933 = vmatprep.subr.mxu0 0.0
        %934 = vmatpush1.msra.mxu0 0.0
        %935 = vmatprep.subr.mxu0 0.0
        %936 = vmatpush1.msra.mxu0 0.0
        %937 = vmatprep.subr.mxu0 0.0
        %938 = vmatpush1.msra.mxu0 0.0
        %939 = vmatprep.subr.mxu0 0.0
        %940 = vmatpush1.msra.mxu0 0.0
        %941 = vmatprep.subr.mxu0 0.0
        %942 = vmatpush1.msra.mxu0 0.0
        %943 = vmatprep.subr.mxu0 0.0
        %944 = vmatpush1.msra.mxu0 0.0
        %945 = vmatprep.subr.mxu0 0.0
        %946 = vmatpush1.msra.mxu0 0.0
        %947 = vmatprep.subr.mxu0 0.0
        %948 = vmatpush1.msra.mxu0 0.0
        %949 = vmatprep.subr.mxu0 0.0
        %950 = vmatpush1.msra.mxu0 0.0
        %951 = vmatprep.subr.mxu0 0.0
        %952 = vmatpush1.msra.mxu0 0.0
        %953 = vmatprep.subr.mxu0 0.0
        %954 = vmatpush1.msra.mxu0 0.0
        %955 = vmatprep.subr.mxu0 0.0
        %956 = vmatpush1.msra.mxu0 0.0
        %957 = vmatprep.subr.mxu0 0.0
        %958 = vmatpush1.msra.mxu0 0.0
        %959 = vmatprep.subr.mxu0 0.0
        %960 = vmatpush1.msra.mxu0 0.0
        %961 = vmatprep.subr.mxu0 0.0
        %962 = vmatpush1.msra.mxu0 0.0
        %963 = vmatprep.subr.mxu0 0.0
        %964 = vmatpush1.msra.mxu0 0.0
        %965 = vmatprep.subr.mxu0 0.0
        %966 = vmatpush1.msra.mxu0 0.0
        %967 = vmatprep.subr.mxu0 0.0
        %968 = vmatpush1.msra.mxu0 0.0
        %969 = vmatprep.subr.mxu0 0.0
        %970 = vmatpush1.msra.mxu0 0.0
        %971 = vmatprep.subr.mxu0 0.0
        %972 = vmatpush1.msra.mxu0 0.0
        %973 = vmatprep.subr.mxu0 0.0
        %974 = vmatpush1.msra.mxu0 0.0
        %975 = vmatprep.subr.mxu0 0.0
        %976 = vmatpush1.msra.mxu0 0.0
        %977 = vmatprep.subr.mxu0 0.0
        %978 = vmatpush1.msra.mxu0 0.0
        %979 = vmatprep.subr.mxu0 0.0
        %980 = vmatpush1.msra.mxu0 0.0
        %981 = vmatprep.subr.mxu0 0.0
        %982 = vmatpush1.msra.mxu0 0.0
        %983 = vmatprep.subr.mxu0 0.0
        %984 = vmatpush1.msra.mxu0 0.0
        %985 = vmatprep.subr.mxu0 0.0
        %986 = vmatpush1.msra.mxu0 0.0
        %987 = vmatprep.subr.mxu0 0.0
        %988 = vmatpush1.msra.mxu0 0.0
        %989 = vmatprep.mubr.f32.mxu0 0.0
        %990 = vmatmul.mubr.f32.gmra.mrb[0].mxu0 %v910
        %v991 = vpop.f32.mrb[0].mxu0
        %v992 = vadd.f32 0.0, %v991
        %v993 = vpop.f32.mrb[0].mxu0
        %v994 = vadd.f32 0.0, %v993
        %995 = vmatprep.mubr.f32.mxu0 0.0
        %996 = vmatmul.mubr.f32.gmra.mrb[0].mxu0 %v913
        %v997 = vpop.f32.mrb[0].mxu0
        %v998 = vadd.f32 0.0, %v997
        %v999 = vpop.f32.mrb[0].mxu0
        %v1000 = vadd.f32 0.0, %v999
        %1001 = vmatprep.mubr.f32.mxu0 0.0
        %1002 = vmatmul.mubr.f32.gmra.mrb[0].mxu0 %v916
        %v1003 = vpop.f32.mrb[0].mxu0
        %v1004 = vadd.f32 0.0, %v1003
        %v1005 = vpop.f32.mrb[0].mxu0
        %v1006 = vadd.f32 0.0, %v1005
        %1007 = vmatprep.mubr.f32.mxu0 0.0
        %1008 = vmatmul.mubr.f32.gmra.mrb[0].mxu0 %v919
        %v1009 = vpop.f32.mrb[0].mxu0
        %v1010 = vadd.f32 0.0, %v1009
        %v1011 = vpop.f32.mrb[0].mxu0
        %v1012 = vadd.f32 0.0, %v1011
        %1013 = vdwg.mxu0
        %v1014 = vadd.f32 %v893, %v992
        %v1015 = vadd.f32 %v894, %v994
        %v1016 = vadd.f32 %v895, %v998
        %v1017 = vadd.f32 %v896, %v1000
        %v1018 = vadd.f32 %v897, %v1004
        %v1019 = vadd.f32 %v898, %v1006
        %v1020 = vadd.f32 %v899, %v1010
        %v1021 = vadd.f32 %v900, %v1012
        %v1022 = vld [vmem:[#allocation2 + $0x4] sm:$0xff]
        %v1023 = vld [vmem:[#allocation2 + $0xc] sm:$0xf]
        %1024 = vrot.lane.b32.xlu0 %v620, 1
        %v1025 = vpop.permute.xlu0 %1024
        %v1026 = vrot.slane %v1025, 4
        %v1027 = vsel %vm785, %v1026, %v1025
        %v1030 = vmul.f32 %v1022, %v1027
        %v1031 = vmul.f32 %v1023, %v1026
        %s1032 = scalar_lea.vmem [#allocation5], 160
        %v1033 = vld [vmem:[%s1032] sm:$0xff]
        %v1034 = vld [vmem:[%s1032 + $0x8] sm:$0xff]
        %v1035 = vld [vmem:[%s1032 + $0x10] sm:$0xff]
        %v1036 = vld [vmem:[%s1032 + $0x18] sm:$0xff]
        %v1039 = vcombine.high %v1030, %v1030
        %1040 = vrot.lane.b32.xlu0 %v1030, 127
        %v1041 = vpop.permute.xlu0 %1040
        %1042 = vrot.lane.b32.xlu0 %v1039, 127
        %v1043 = vpop.permute.xlu0 %1042
        %1044 = vrot.lane.b32.xlu0 %v1031, 127
        %v1045 = vpop.permute.xlu0 %1044
        %v1046 = vsel %vm765, %v1041, %v1043
        %v1047 = vsel %vm765, %v1043, %v1045
        %v1049 = vsel %vm383, %v1033, 0
        %v1052 = vsel %vm383, %v1034, 0
        %v1055 = vsel %vm383, %v1035, 0
        %v1058 = vsel %vm383, %v1036, 0
        %v1060 = vsel %vm396, %v1046, 0
        %v1062 = vsel %vm396, %v1047, 0
        %1064 = vmatprep.subr.mxu0 %v1062
        %1065 = vmatpush1.msra.mxu0 %v1060
        %1066 = vmatprep.subr.mxu0 0.0
        %1067 = vmatpush1.msra.mxu0 0.0
        %1068 = vmatprep.subr.mxu0 0.0
        %1069 = vmatpush1.msra.mxu0 0.0
        %1070 = vmatprep.subr.mxu0 0.0
        %1071 = vmatpush1.msra.mxu0 0.0
        %1072 = vmatprep.subr.mxu0 0.0
        %1073 = vmatpush1.msra.mxu0 0.0
        %1074 = vmatprep.subr.mxu0 0.0
        %1075 = vmatpush1.msra.mxu0 0.0
        %1076 = vmatprep.subr.mxu0 0.0
        %1077 = vmatpush1.msra.mxu0 0.0
        %1078 = vmatprep.subr.mxu0 0.0
        %1079 = vmatpush1.msra.mxu0 0.0
        %1080 = vmatprep.subr.mxu0 0.0
        %1081 = vmatpush1.msra.mxu0 0.0
        %1082 = vmatprep.subr.mxu0 0.0
        %1083 = vmatpush1.msra.mxu0 0.0
        %1084 = vmatprep.subr.mxu0 0.0
        %1085 = vmatpush1.msra.mxu0 0.0
        %1086 = vmatprep.subr.mxu0 0.0
        %1087 = vmatpush1.msra.mxu0 0.0
        %1088 = vmatprep.subr.mxu0 0.0
        %1089 = vmatpush1.msra.mxu0 0.0
        %1090 = vmatprep.subr.mxu0 0.0
        %1091 = vmatpush1.msra.mxu0 0.0
        %1092 = vmatprep.subr.mxu0 0.0
        %1093 = vmatpush1.msra.mxu0 0.0
        %1094 = vmatprep.subr.mxu0 0.0
        %1095 = vmatpush1.msra.mxu0 0.0
        %1096 = vmatprep.subr.mxu0 0.0
        %1097 = vmatpush1.msra.mxu0 0.0
        %1098 = vmatprep.subr.mxu0 0.0
        %1099 = vmatpush1.msra.mxu0 0.0
        %1100 = vmatprep.subr.mxu0 0.0
        %1101 = vmatpush1.msra.mxu0 0.0
        %1102 = vmatprep.subr.mxu0 0.0
        %1103 = vmatpush1.msra.mxu0 0.0
        %1104 = vmatprep.subr.mxu0 0.0
        %1105 = vmatpush1.msra.mxu0 0.0
        %1106 = vmatprep.subr.mxu0 0.0
        %1107 = vmatpush1.msra.mxu0 0.0
        %1108 = vmatprep.subr.mxu0 0.0
        %1109 = vmatpush1.msra.mxu0 0.0
        %1110 = vmatprep.subr.mxu0 0.0
        %1111 = vmatpush1.msra.mxu0 0.0
        %1112 = vmatprep.subr.mxu0 0.0
        %1113 = vmatpush1.msra.mxu0 0.0
        %1114 = vmatprep.subr.mxu0 0.0
        %1115 = vmatpush1.msra.mxu0 0.0
        %1116 = vmatprep.subr.mxu0 0.0
        %1117 = vmatpush1.msra.mxu0 0.0
        %1118 = vmatprep.subr.mxu0 0.0
        %1119 = vmatpush1.msra.mxu0 0.0
        %1120 = vmatprep.subr.mxu0 0.0
        %1121 = vmatpush1.msra.mxu0 0.0
        %1122 = vmatprep.subr.mxu0 0.0
        %1123 = vmatpush1.msra.mxu0 0.0
        %1124 = vmatprep.subr.mxu0 0.0
        %1125 = vmatpush1.msra.mxu0 0.0
        %1126 = vmatprep.subr.mxu0 0.0
        %1127 = vmatpush1.msra.mxu0 0.0
        %1128 = vmatprep.mubr.f32.mxu0 0.0
        %1129 = vmatmul.mubr.f32.gmra.mrb[0].mxu0 %v1049
        %v1130 = vpop.f32.mrb[0].mxu0
        %v1131 = vadd.f32 0.0, %v1130
        %v1132 = vpop.f32.mrb[0].mxu0
        %v1133 = vadd.f32 0.0, %v1132
        %1134 = vmatprep.mubr.f32.mxu0 0.0
        %1135 = vmatmul.mubr.f32.gmra.mrb[0].mxu0 %v1052
        %v1136 = vpop.f32.mrb[0].mxu0
        %v1137 = vadd.f32 0.0, %v1136
        %v1138 = vpop.f32.mrb[0].mxu0
        %v1139 = vadd.f32 0.0, %v1138
        %1140 = vmatprep.mubr.f32.mxu0 0.0
        %1141 = vmatmul.mubr.f32.gmra.mrb[0].mxu0 %v1055
        %v1142 = vpop.f32.mrb[0].mxu0
        %v1143 = vadd.f32 0.0, %v1142
        %v1144 = vpop.f32.mrb[0].mxu0
        %v1145 = vadd.f32 0.0, %v1144
        %1146 = vmatprep.mubr.f32.mxu0 0.0
        %1147 = vmatmul.mubr.f32.gmra.mrb[0].mxu0 %v1058
        %v1148 = vpop.f32.mrb[0].mxu0
        %v1149 = vadd.f32 0.0, %v1148
        %v1150 = vpop.f32.mrb[0].mxu0
        %v1151 = vadd.f32 0.0, %v1150
        %1152 = vdwg.mxu0
        %v1153 = vadd.f32 %v1014, %v1131
        %v1154 = vadd.f32 %v1015, %v1133
        %v1155 = vadd.f32 %v1016, %v1137
        %v1156 = vadd.f32 %v1017, %v1139
        %v1157 = vadd.f32 %v1018, %v1143
        %v1158 = vadd.f32 %v1019, %v1145
        %v1159 = vadd.f32 %v1020, %v1149
        %v1160 = vadd.f32 %v1021, %v1151
        %v1161 = vld [vmem:[#allocation2 + $0x4] sm:$0xff]
        %v1162 = vld [vmem:[#allocation2 + $0xc] sm:$0xf]
        %1163 = vrot.lane.b32.xlu0 %v352, 15
        %v1164 = vpop.permute.xlu0 %1163
        %v1165 = vrot.slane %v1164, 4
        %v1166 = vsel %vm644, %v1165, %v1164
        %v1169 = vmul.f32 %v1161, %v1166
        %v1170 = vmul.f32 %v1162, %v1165
        %s1171 = scalar_lea.vmem [#allocation5], 192
        %v1172 = vld [vmem:[%s1171] sm:$0xff]
        %v1173 = vld [vmem:[%s1171 + $0x8] sm:$0xff]
        %v1174 = vld [vmem:[%s1171 + $0x10] sm:$0xff]
        %v1175 = vld [vmem:[%s1171 + $0x18] sm:$0xff]
        %v1178 = vcombine.high %v1169, %v1169
        %1179 = vrot.lane.b32.xlu0 %v1169, 113
        %v1180 = vpop.permute.xlu0 %1179
        %1181 = vrot.lane.b32.xlu0 %v1178, 113
        %v1182 = vpop.permute.xlu0 %1181
        %1183 = vrot.lane.b32.xlu0 %v1170, 113
        %v1184 = vpop.permute.xlu0 %1183
        %v1185 = vsel %vm624, %v1180, %v1182
        %v1186 = vsel %vm624, %v1182, %v1184
        %v1188 = vsel %vm383, %v1172, 0
        %v1191 = vsel %vm383, %v1173, 0
        %v1194 = vsel %vm383, %v1174, 0
        %v1197 = vsel %vm383, %v1175, 0
        %v1199 = vsel %vm396, %v1185, 0
        %v1201 = vsel %vm396, %v1186, 0
        %1203 = vmatprep.subr.mxu0 %v1201
        %1204 = vmatpush1.msra.mxu0 %v1199
        %1205 = vmatprep.subr.mxu0 0.0
        %1206 = vmatpush1.msra.mxu0 0.0
        %1207 = vmatprep.subr.mxu0 0.0
        %1208 = vmatpush1.msra.mxu0 0.0
        %1209 = vmatprep.subr.mxu0 0.0
        %1210 = vmatpush1.msra.mxu0 0.0
        %1211 = vmatprep.subr.mxu0 0.0
        %1212 = vmatpush1.msra.mxu0 0.0
        %1213 = vmatprep.subr.mxu0 0.0
        %1214 = vmatpush1.msra.mxu0 0.0
        %1215 = vmatprep.subr.mxu0 0.0
        %1216 = vmatpush1.msra.mxu0 0.0
        %1217 = vmatprep.subr.mxu0 0.0
        %1218 = vmatpush1.msra.mxu0 0.0
        %1219 = vmatprep.subr.mxu0 0.0
        %1220 = vmatpush1.msra.mxu0 0.0
        %1221 = vmatprep.subr.mxu0 0.0
        %1222 = vmatpush1.msra.mxu0 0.0
        %1223 = vmatprep.subr.mxu0 0.0
        %1224 = vmatpush1.msra.mxu0 0.0
        %1225 = vmatprep.subr.mxu0 0.0
        %1226 = vmatpush1.msra.mxu0 0.0
        %1227 = vmatprep.subr.mxu0 0.0
        %1228 = vmatpush1.msra.mxu0 0.0
        %1229 = vmatprep.subr.mxu0 0.0
        %1230 = vmatpush1.msra.mxu0 0.0
        %1231 = vmatprep.subr.mxu0 0.0
        %1232 = vmatpush1.msra.mxu0 0.0
        %1233 = vmatprep.subr.mxu0 0.0
        %1234 = vmatpush1.msra.mxu0 0.0
        %1235 = vmatprep.subr.mxu0 0.0
        %1236 = vmatpush1.msra.mxu0 0.0
        %1237 = vmatprep.subr.mxu0 0.0
        %1238 = vmatpush1.msra.mxu0 0.0
        %1239 = vmatprep.subr.mxu0 0.0
        %1240 = vmatpush1.msra.mxu0 0.0
        %1241 = vmatprep.subr.mxu0 0.0
        %1242 = vmatpush1.msra.mxu0 0.0
        %1243 = vmatprep.subr.mxu0 0.0
        %1244 = vmatpush1.msra.mxu0 0.0
        %1245 = vmatprep.subr.mxu0 0.0
        %1246 = vmatpush1.msra.mxu0 0.0
        %1247 = vmatprep.subr.mxu0 0.0
        %1248 = vmatpush1.msra.mxu0 0.0
        %1249 = vmatprep.subr.mxu0 0.0
        %1250 = vmatpush1.msra.mxu0 0.0
        %1251 = vmatprep.subr.mxu0 0.0
        %1252 = vmatpush1.msra.mxu0 0.0
        %1253 = vmatprep.subr.mxu0 0.0
        %1254 = vmatpush1.msra.mxu0 0.0
        %1255 = vmatprep.subr.mxu0 0.0
        %1256 = vmatpush1.msra.mxu0 0.0
        %1257 = vmatprep.subr.mxu0 0.0
        %1258 = vmatpush1.msra.mxu0 0.0
        %1259 = vmatprep.subr.mxu0 0.0
        %1260 = vmatpush1.msra.mxu0 0.0
        %1261 = vmatprep.subr.mxu0 0.0
        %1262 = vmatpush1.msra.mxu0 0.0
        %1263 = vmatprep.subr.mxu0 0.0
        %1264 = vmatpush1.msra.mxu0 0.0
        %1265 = vmatprep.subr.mxu0 0.0
        %1266 = vmatpush1.msra.mxu0 0.0
        %1267 = vmatprep.mubr.f32.mxu0 0.0
        %1268 = vmatmul.mubr.f32.gmra.mrb[0].mxu0 %v1188
        %v1269 = vpop.f32.mrb[0].mxu0
        %v1270 = vadd.f32 0.0, %v1269
        %v1271 = vpop.f32.mrb[0].mxu0
        %v1272 = vadd.f32 0.0, %v1271
        %1273 = vmatprep.mubr.f32.mxu0 0.0
        %1274 = vmatmul.mubr.f32.gmra.mrb[0].mxu0 %v1191
        %v1275 = vpop.f32.mrb[0].mxu0
        %v1276 = vadd.f32 0.0, %v1275
        %v1277 = vpop.f32.mrb[0].mxu0
        %v1278 = vadd.f32 0.0, %v1277
        %1279 = vmatprep.mubr.f32.mxu0 0.0
        %1280 = vmatmul.mubr.f32.gmra.mrb[0].mxu0 %v1194
        %v1281 = vpop.f32.mrb[0].mxu0
        %v1282 = vadd.f32 0.0, %v1281
        %v1283 = vpop.f32.mrb[0].mxu0
        %v1284 = vadd.f32 0.0, %v1283
        %1285 = vmatprep.mubr.f32.mxu0 0.0
        %1286 = vmatmul.mubr.f32.gmra.mrb[0].mxu0 %v1197
        %v1287 = vpop.f32.mrb[0].mxu0
        %v1288 = vadd.f32 0.0, %v1287
        %v1289 = vpop.f32.mrb[0].mxu0
        %v1290 = vadd.f32 0.0, %v1289
        %1291 = vdwg.mxu0
        %v1292 = vadd.f32 %v1153, %v1270
        %v1293 = vadd.f32 %v1154, %v1272
        %v1294 = vadd.f32 %v1155, %v1276
        %v1295 = vadd.f32 %v1156, %v1278
        %v1296 = vadd.f32 %v1157, %v1282
        %v1297 = vadd.f32 %v1158, %v1284
        %v1298 = vadd.f32 %v1159, %v1288
        %v1299 = vadd.f32 %v1160, %v1290
        %v1300 = vld [vmem:[#allocation2 + $0x4] sm:$0xff]
        %v1301 = vld [vmem:[#allocation2 + $0xc] sm:$0xf]
        %s1302 = scalar_lea.vmem [#allocation5], 224
        %v1303 = vld [vmem:[%s1302] sm:$0xff]
        %v1304 = vld [vmem:[%s1302 + $0x8] sm:$0xff]
        %v1305 = vld [vmem:[%s1302 + $0x10] sm:$0xff]
        %v1306 = vld [vmem:[%s1302 + $0x18] sm:$0xff]
        %v1309 = vcombine.high %v1300, %v1300
        %1310 = vrot.lane.b32.xlu0 %v1300, 112
        %v1311 = vpop.permute.xlu0 %1310
        %1312 = vrot.lane.b32.xlu0 %v1309, 112
        %v1313 = vpop.permute.xlu0 %1312
        %1314 = vrot.lane.b32.xlu0 %v1301, 112
        %v1315 = vpop.permute.xlu0 %1314
        %vm1316 = vcmask 916480
        %v1317 = vsel %vm1316, %v1311, %v1313
        %v1318 = vsel %vm1316, %v1313, %v1315
        %v1320 = vsel %vm383, %v1303, 0
        %v1323 = vsel %vm383, %v1304, 0
        %v1326 = vsel %vm383, %v1305, 0
        %v1329 = vsel %vm383, %v1306, 0
        %v1331 = vsel %vm396, %v1317, 0
        %v1333 = vsel %vm396, %v1318, 0
        %1335 = vmatprep.subr.mxu0 %v1333
        %1336 = vmatpush1.msra.mxu0 %v1331
        %1337 = vmatprep.subr.mxu0 0.0
        %1338 = vmatpush1.msra.mxu0 0.0
        %1339 = vmatprep.subr.mxu0 0.0
        %1340 = vmatpush1.msra.mxu0 0.0
        %1341 = vmatprep.subr.mxu0 0.0
        %1342 = vmatpush1.msra.mxu0 0.0
        %1343 = vmatprep.subr.mxu0 0.0
        %1344 = vmatpush1.msra.mxu0 0.0
        %1345 = vmatprep.subr.mxu0 0.0
        %1346 = vmatpush1.msra.mxu0 0.0
        %1347 = vmatprep.subr.mxu0 0.0
        %1348 = vmatpush1.msra.mxu0 0.0
        %1349 = vmatprep.subr.mxu0 0.0
        %1350 = vmatpush1.msra.mxu0 0.0
        %1351 = vmatprep.subr.mxu0 0.0
        %1352 = vmatpush1.msra.mxu0 0.0
        %1353 = vmatprep.subr.mxu0 0.0
        %1354 = vmatpush1.msra.mxu0 0.0
        %1355 = vmatprep.subr.mxu0 0.0
        %1356 = vmatpush1.msra.mxu0 0.0
        %1357 = vmatprep.subr.mxu0 0.0
        %1358 = vmatpush1.msra.mxu0 0.0
        %1359 = vmatprep.subr.mxu0 0.0
        %1360 = vmatpush1.msra.mxu0 0.0
        %1361 = vmatprep.subr.mxu0 0.0
        %1362 = vmatpush1.msra.mxu0 0.0
        %1363 = vmatprep.subr.mxu0 0.0
        %1364 = vmatpush1.msra.mxu0 0.0
        %1365 = vmatprep.subr.mxu0 0.0
        %1366 = vmatpush1.msra.mxu0 0.0
        %1367 = vmatprep.subr.mxu0 0.0
        %1368 = vmatpush1.msra.mxu0 0.0
        %1369 = vmatprep.subr.mxu0 0.0
        %1370 = vmatpush1.msra.mxu0 0.0
        %1371 = vmatprep.subr.mxu0 0.0
        %1372 = vmatpush1.msra.mxu0 0.0
        %1373 = vmatprep.subr.mxu0 0.0
        %1374 = vmatpush1.msra.mxu0 0.0
        %1375 = vmatprep.subr.mxu0 0.0
        %1376 = vmatpush1.msra.mxu0 0.0
        %1377 = vmatprep.subr.mxu0 0.0
        %1378 = vmatpush1.msra.mxu0 0.0
        %1379 = vmatprep.subr.mxu0 0.0
        %1380 = vmatpush1.msra.mxu0 0.0
        %1381 = vmatprep.subr.mxu0 0.0
        %1382 = vmatpush1.msra.mxu0 0.0
        %1383 = vmatprep.subr.mxu0 0.0
        %1384 = vmatpush1.msra.mxu0 0.0
        %1385 = vmatprep.subr.mxu0 0.0
        %1386 = vmatpush1.msra.mxu0 0.0
        %1387 = vmatprep.subr.mxu0 0.0
        %1388 = vmatpush1.msra.mxu0 0.0
        %1389 = vmatprep.subr.mxu0 0.0
        %1390 = vmatpush1.msra.mxu0 0.0
        %1391 = vmatprep.subr.mxu0 0.0
        %1392 = vmatpush1.msra.mxu0 0.0
        %1393 = vmatprep.subr.mxu0 0.0
        %1394 = vmatpush1.msra.mxu0 0.0
        %1395 = vmatprep.subr.mxu0 0.0
        %1396 = vmatpush1.msra.mxu0 0.0
        %1397 = vmatprep.subr.mxu0 0.0
        %1398 = vmatpush1.msra.mxu0 0.0
        %1399 = vmatprep.mubr.f32.mxu0 0.0
        %1400 = vmatmul.mubr.f32.gmra.mrb[0].mxu0 %v1320
        %v1401 = vpop.f32.mrb[0].mxu0
        %v1402 = vadd.f32 0.0, %v1401
        %v1403 = vpop.f32.mrb[0].mxu0
        %v1404 = vadd.f32 0.0, %v1403
        %1405 = vmatprep.mubr.f32.mxu0 0.0
        %1406 = vmatmul.mubr.f32.gmra.mrb[0].mxu0 %v1323
        %v1407 = vpop.f32.mrb[0].mxu0
        %v1408 = vadd.f32 0.0, %v1407
        %v1409 = vpop.f32.mrb[0].mxu0
        %v1410 = vadd.f32 0.0, %v1409
        %1411 = vmatprep.mubr.f32.mxu0 0.0
        %1412 = vmatmul.mubr.f32.gmra.mrb[0].mxu0 %v1326
        %v1413 = vpop.f32.mrb[0].mxu0
        %v1414 = vadd.f32 0.0, %v1413
        %v1415 = vpop.f32.mrb[0].mxu0
        %v1416 = vadd.f32 0.0, %v1415
        %1417 = vmatprep.mubr.f32.mxu0 0.0
        %1418 = vmatmul.mubr.f32.gmra.mrb[0].mxu0 %v1329
        %v1419 = vpop.f32.mrb[0].mxu0
        %v1420 = vadd.f32 0.0, %v1419
        %v1421 = vpop.f32.mrb[0].mxu0
        %v1422 = vadd.f32 0.0, %v1421
        %1423 = vdwg.mxu0
        %v1424 = vadd.f32 %v1292, %v1402
        %v1425 = vadd.f32 %v1293, %v1404
        %v1426 = vadd.f32 %v1294, %v1408
        %v1427 = vadd.f32 %v1295, %v1410
        %v1428 = vadd.f32 %v1296, %v1414
        %v1429 = vadd.f32 %v1297, %v1416
        %v1430 = vadd.f32 %v1298, %v1420
        %v1431 = vadd.f32 %v1299, %v1422
        %v1432 = vld [vmem:[#allocation2 + $0x4] sm:$0xff]
        %v1433 = vld [vmem:[#allocation2 + $0xc] sm:$0xf]
        %1434 = vrot.lane.b32.xlu0 %v620, 17
        %v1435 = vpop.permute.xlu0 %1434
        %v1436 = vrot.slane %v1435, 4
        %v1437 = vsel %vm499, %v1436, %v1435
        %v1440 = vmul.f32 %v1432, %v1437
        %v1441 = vmul.f32 %v1433, %v1436
        %s1442 = scalar_lea.vmem [#allocation5], 256
        %v1443 = vld [vmem:[%s1442] sm:$0xff]
        %v1444 = vld [vmem:[%s1442 + $0x8] sm:$0xff]
        %v1445 = vld [vmem:[%s1442 + $0x10] sm:$0xff]
        %v1446 = vld [vmem:[%s1442 + $0x18] sm:$0xff]
        %v1449 = vcombine.high %v1440, %v1440
        %1450 = vrot.lane.b32.xlu0 %v1440, 111
        %v1451 = vpop.permute.xlu0 %1450
        %1452 = vrot.lane.b32.xlu0 %v1449, 111
        %v1453 = vpop.permute.xlu0 %1452
        %1454 = vrot.lane.b32.xlu0 %v1441, 111
        %v1455 = vpop.permute.xlu0 %1454
        %v1456 = vsel %vm356, %v1451, %v1453
        %v1457 = vsel %vm356, %v1453, %v1455
        %v1459 = vsel %vm383, %v1443, 0
        %v1462 = vsel %vm383, %v1444, 0
        %v1465 = vsel %vm383, %v1445, 0
        %v1468 = vsel %vm383, %v1446, 0
        %v1470 = vsel %vm396, %v1456, 0
        %v1472 = vsel %vm396, %v1457, 0
        %1474 = vmatprep.subr.mxu0 %v1472
        %1475 = vmatpush1.msra.mxu0 %v1470
        %1476 = vmatprep.subr.mxu0 0.0
        %1477 = vmatpush1.msra.mxu0 0.0
        %1478 = vmatprep.subr.mxu0 0.0
        %1479 = vmatpush1.msra.mxu0 0.0
        %1480 = vmatprep.subr.mxu0 0.0
        %1481 = vmatpush1.msra.mxu0 0.0
        %1482 = vmatprep.subr.mxu0 0.0
        %1483 = vmatpush1.msra.mxu0 0.0
        %1484 = vmatprep.subr.mxu0 0.0
        %1485 = vmatpush1.msra.mxu0 0.0
        %1486 = vmatprep.subr.mxu0 0.0
        %1487 = vmatpush1.msra.mxu0 0.0
        %1488 = vmatprep.subr.mxu0 0.0
        %1489 = vmatpush1.msra.mxu0 0.0
        %1490 = vmatprep.subr.mxu0 0.0
        %1491 = vmatpush1.msra.mxu0 0.0
        %1492 = vmatprep.subr.mxu0 0.0
        %1493 = vmatpush1.msra.mxu0 0.0
        %1494 = vmatprep.subr.mxu0 0.0
        %1495 = vmatpush1.msra.mxu0 0.0
        %1496 = vmatprep.subr.mxu0 0.0
        %1497 = vmatpush1.msra.mxu0 0.0
        %1498 = vmatprep.subr.mxu0 0.0
        %1499 = vmatpush1.msra.mxu0 0.0
        %1500 = vmatprep.subr.mxu0 0.0
        %1501 = vmatpush1.msra.mxu0 0.0
        %1502 = vmatprep.subr.mxu0 0.0
        %1503 = vmatpush1.msra.mxu0 0.0
        %1504 = vmatprep.subr.mxu0 0.0
        %1505 = vmatpush1.msra.mxu0 0.0
        %1506 = vmatprep.subr.mxu0 0.0
        %1507 = vmatpush1.msra.mxu0 0.0
        %1508 = vmatprep.subr.mxu0 0.0
        %1509 = vmatpush1.msra.mxu0 0.0
        %1510 = vmatprep.subr.mxu0 0.0
        %1511 = vmatpush1.msra.mxu0 0.0
        %1512 = vmatprep.subr.mxu0 0.0
        %1513 = vmatpush1.msra.mxu0 0.0
        %1514 = vmatprep.subr.mxu0 0.0
        %1515 = vmatpush1.msra.mxu0 0.0
        %1516 = vmatprep.subr.mxu0 0.0
        %1517 = vmatpush1.msra.mxu0 0.0
        %1518 = vmatprep.subr.mxu0 0.0
        %1519 = vmatpush1.msra.mxu0 0.0
        %1520 = vmatprep.subr.mxu0 0.0
        %1521 = vmatpush1.msra.mxu0 0.0
        %1522 = vmatprep.subr.mxu0 0.0
        %1523 = vmatpush1.msra.mxu0 0.0
        %1524 = vmatprep.subr.mxu0 0.0
        %1525 = vmatpush1.msra.mxu0 0.0
        %1526 = vmatprep.subr.mxu0 0.0
        %1527 = vmatpush1.msra.mxu0 0.0
        %1528 = vmatprep.subr.mxu0 0.0
        %1529 = vmatpush1.msra.mxu0 0.0
        %1530 = vmatprep.subr.mxu0 0.0
        %1531 = vmatpush1.msra.mxu0 0.0
        %1532 = vmatprep.subr.mxu0 0.0
        %1533 = vmatpush1.msra.mxu0 0.0
        %1534 = vmatprep.subr.mxu0 0.0
        %1535 = vmatpush1.msra.mxu0 0.0
        %1536 = vmatprep.subr.mxu0 0.0
        %1537 = vmatpush1.msra.mxu0 0.0
        %1538 = vmatprep.mubr.f32.mxu0 0.0
        %1539 = vmatmul.mubr.f32.gmra.mrb[0].mxu0 %v1459
        %v1540 = vpop.f32.mrb[0].mxu0
        %v1541 = vadd.f32 0.0, %v1540
        %v1542 = vpop.f32.mrb[0].mxu0
        %v1543 = vadd.f32 0.0, %v1542
        %1544 = vmatprep.mubr.f32.mxu0 0.0
        %1545 = vmatmul.mubr.f32.gmra.mrb[0].mxu0 %v1462
        %v1546 = vpop.f32.mrb[0].mxu0
        %v1547 = vadd.f32 0.0, %v1546
        %v1548 = vpop.f32.mrb[0].mxu0
        %v1549 = vadd.f32 0.0, %v1548
        %1550 = vmatprep.mubr.f32.mxu0 0.0
        %1551 = vmatmul.mubr.f32.gmra.mrb[0].mxu0 %v1465
        %v1552 = vpop.f32.mrb[0].mxu0
        %v1553 = vadd.f32 0.0, %v1552
        %v1554 = vpop.f32.mrb[0].mxu0
        %v1555 = vadd.f32 0.0, %v1554
        %1556 = vmatprep.mubr.f32.mxu0 0.0
        %1557 = vmatmul.mubr.f32.gmra.mrb[0].mxu0 %v1468
        %v1558 = vpop.f32.mrb[0].mxu0
        %v1559 = vadd.f32 0.0, %v1558
        %v1560 = vpop.f32.mrb[0].mxu0
        %v1561 = vadd.f32 0.0, %v1560
        %1562 = vdwg.mxu0
        %v1563 = vadd.f32 %v1424, %v1541
        %v1564 = vadd.f32 %v1425, %v1543
        %v1565 = vadd.f32 %v1426, %v1547
        %v1566 = vadd.f32 %v1427, %v1549
        %v1567 = vadd.f32 %v1428, %v1553
        %v1568 = vadd.f32 %v1429, %v1555
        %v1569 = vadd.f32 %v1430, %v1559
        %v1570 = vadd.f32 %v1431, %v1561
        %v1571 = vld [vmem:[%s2] sm:$0xff]
        %v1572 = vld [vmem:[%s2 + $0x8] sm:$0xff]
        %v1573 = vld [vmem:[%s2 + $0x10] sm:$0xff]
        %v1574 = vld [vmem:[%s2 + $0x18] sm:$0xff]
        %1576 = vset.pattern.permute.xlu0 0
        %1577 = vperm.xlu0 %1576, %v1571
        %v1578 = vpop.permute.xlu0 %1577
        %1581 = vset.pattern.permute.xlu0 0
        %1582 = vperm.xlu0 %1581, %v1572
        %v1583 = vpop.permute.xlu0 %1582
        %1586 = vset.pattern.permute.xlu0 0
        %1587 = vperm.xlu0 %1586, %v1573
        %v1588 = vpop.permute.xlu0 %1587
        %1591 = vset.pattern.permute.xlu0 0
        %1592 = vperm.xlu0 %1591, %v1574
        %v1593 = vpop.permute.xlu0 %1592
        %v1595 = vadd.f32 %v1563, %v1578
        %v1596 = vadd.f32 %v1564, %v1578
        %v1597 = vadd.f32 %v1565, %v1583
        %v1598 = vadd.f32 %v1566, %v1583
        %v1599 = vadd.f32 %v1567, %v1588
        %v1600 = vadd.f32 %v1568, %v1588
        %v1601 = vadd.f32 %v1569, %v1593
        %v1602 = vadd.f32 %v1570, %v1593
        %v1603 = vmax.f32 %v1595, 0.0
        %v1604 = vmax.f32 %v1596, 0.0
        %v1605 = vmax.f32 %v1597, 0.0
        %v1606 = vmax.f32 %v1598, 0.0
        %v1607 = vmax.f32 %v1599, 0.0
        %v1608 = vmax.f32 %v1600, 0.0
        %v1609 = vmax.f32 %v1601, 0.0
        %v1610 = vmax.f32 %v1602, 0.0
        %1611 = vst [vmem:[#allocation3] sm:$0xff] 0.0
        %1612 = vst [vmem:[#allocation3 + $0x20] sm:$0xff] 0.0
        %1613 = vst [vmem:[#allocation3 + $0x40] sm:$0xff] 0.0
        %1614 = vst [vmem:[#allocation3 + $0x60] sm:$0xff] 0.0
        %1615 = vst [vmem:[#allocation3 + $0x18] sm:$0xff] 0.0
        %1616 = vst [vmem:[#allocation3 + $0x38] sm:$0xff] 0.0
        %1617 = vst [vmem:[#allocation3 + $0x58] sm:$0xff] 0.0
        %1618 = vst [vmem:[#allocation3 + $0x78] sm:$0xff] 0.0
        %1619 = vst [vmem:[#allocation3 + $0x8] sm:$0xff] %v1603
        %1620 = vst [vmem:[#allocation3 + $0x10] sm:$0xff] %v1604
        %1621 = vst [vmem:[#allocation3 + $0x28] sm:$0xff] %v1605
        %1622 = vst [vmem:[#allocation3 + $0x30] sm:$0xff] %v1606
        %1623 = vst [vmem:[#allocation3 + $0x48] sm:$0xff] %v1607
        %1624 = vst [vmem:[#allocation3 + $0x50] sm:$0xff] %v1608
        %1625 = vst [vmem:[#allocation3 + $0x68] sm:$0xff] %v1609
        %1626 = vst [vmem:[#allocation3 + $0x70] sm:$0xff] %v1610
        %v1627 = vld [vmem:[#allocation3] sm:$0xff]
        %v1628 = vld [vmem:[#allocation3 + $0x8] sm:$0xff]
        %v1629 = vld [vmem:[#allocation3 + $0x10] sm:$0xff]
        %v1630 = vld [vmem:[#allocation3 + $0x20] sm:$0xff]
        %v1631 = vld [vmem:[#allocation3 + $0x28] sm:$0xff]
        %v1632 = vld [vmem:[#allocation3 + $0x30] sm:$0xff]
        %v1633 = vld [vmem:[#allocation3 + $0x40] sm:$0xff]
        %v1634 = vld [vmem:[#allocation3 + $0x48] sm:$0xff]
        %v1635 = vld [vmem:[#allocation3 + $0x50] sm:$0xff]
        %v1636 = vld [vmem:[#allocation3 + $0x60] sm:$0xff]
        %v1637 = vld [vmem:[#allocation3 + $0x68] sm:$0xff]
        %v1638 = vld [vmem:[#allocation3 + $0x70] sm:$0xff]
        %v1639 = vld [vmem:[%s7] ss:$2 sm:$0x3]
        %v1641 = vlaneseq
        %v1642 = vshrl.u32 %v1641, 7
        %v1643 = vsub.s32 0, %v1642
        %v1644 = vrot.slane %v1639, %v1643
        %v1645 = vlaneseq
        %v1646 = vshrl.u32 %v1645, 7
        %v1647 = vsub.s32 1, %v1646
        %v1648 = vrot.slane %v1639, %v1647
        %1649 = vrot.lane.b32.xlu0 %v1644, 111
        %v1650 = vpop.permute.xlu0 %1649
        %1651 = vrot.lane.b32.xlu0 %v1648, 111
        %v1652 = vpop.permute.xlu0 %1651
        %v1653 = vsel %vm356, %v1650, %v1652
        %v1657 = vmul.f32 %v1627, %v1650
        %v1658 = vmul.f32 %v1628, %v1653
        %v1659 = vmul.f32 %v1629, %v1652
        %v1660 = vmul.f32 %v1630, %v1650
        %v1661 = vmul.f32 %v1631, %v1653
        %v1662 = vmul.f32 %v1632, %v1652
        %v1663 = vmul.f32 %v1633, %v1650
        %v1664 = vmul.f32 %v1634, %v1653
        %v1665 = vmul.f32 %v1635, %v1652
        %v1666 = vmul.f32 %v1636, %v1650
        %v1667 = vmul.f32 %v1637, %v1653
        %v1668 = vmul.f32 %v1638, %v1652
        %v1669 = vld [vmem:[#allocation7] sm:$0xff]
        %v1670 = vld [vmem:[#allocation7 + $0x8] sm:$0xff]
        %v1671 = vld [vmem:[#allocation7 + $0x10] sm:$0xff]
        %v1672 = vld [vmem:[#allocation7 + $0x18] sm:$0xff]
        %s1673 = scalar_lea.vmem [#allocation7], 32
        %v1674 = vld [vmem:[%s1673] sm:$0xff]
        %v1675 = vld [vmem:[%s1673 + $0x8] sm:$0xff]
        %v1676 = vld [vmem:[%s1673 + $0x10] sm:$0xff]
        %v1677 = vld [vmem:[%s1673 + $0x18] sm:$0xff]
        %1690 = vrot.lane.b32.xlu0 %v1627, 16
        %v1691 = vpop.permute.xlu0 %1690
        %1692 = vrot.lane.b32.xlu0 %v1628, 16
        %v1693 = vpop.permute.xlu0 %1692
        %1694 = vrot.lane.b32.xlu0 %v1629, 16
        %v1695 = vpop.permute.xlu0 %1694
        %1696 = vrot.lane.b32.xlu0 %v1630, 16
        %v1697 = vpop.permute.xlu0 %1696
        %1698 = vrot.lane.b32.xlu0 %v1631, 16
        %v1699 = vpop.permute.xlu0 %1698
        %1700 = vrot.lane.b32.xlu0 %v1632, 16
        %v1701 = vpop.permute.xlu0 %1700
        %1702 = vrot.lane.b32.xlu0 %v1633, 16
        %v1703 = vpop.permute.xlu0 %1702
        %1704 = vrot.lane.b32.xlu0 %v1634, 16
        %v1705 = vpop.permute.xlu0 %1704
        %1706 = vrot.lane.b32.xlu0 %v1635, 16
        %v1707 = vpop.permute.xlu0 %1706
        %1708 = vrot.lane.b32.xlu0 %v1636, 16
        %v1709 = vpop.permute.xlu0 %1708
        %1710 = vrot.lane.b32.xlu0 %v1637, 16
        %v1711 = vpop.permute.xlu0 %1710
        %1712 = vrot.lane.b32.xlu0 %v1638, 16
        %v1713 = vpop.permute.xlu0 %1712
        %v1714 = vsel %vm380, %v1691, %v1693
        %v1715 = vsel %vm380, %v1693, %v1695
        %v1716 = vsel %vm380, %v1697, %v1699
        %v1717 = vsel %vm380, %v1699, %v1701
        %v1718 = vsel %vm380, %v1703, %v1705
        %v1719 = vsel %vm380, %v1705, %v1707
        %v1720 = vsel %vm380, %v1709, %v1711
        %v1721 = vsel %vm380, %v1711, %v1713
        %vm1730 = vcmask 261120
        %v1732 = vsel %vm1730, %v1674, 0
        %v1735 = vsel %vm1730, %v1675, 0
        %v1738 = vsel %vm1730, %v1676, 0
        %v1741 = vsel %vm1730, %v1677, 0
        %1743 = vmatprep.subr.mxu0 %v1715
        %1744 = vmatpush1.msra.mxu0 %v1714
        %1745 = vmatprep.subr.mxu0 %v1717
        %1746 = vmatpush1.msra.mxu0 %v1716
        %1747 = vmatprep.subr.mxu0 %v1719
        %1748 = vmatpush1.msra.mxu0 %v1718
        %1749 = vmatprep.subr.mxu0 %v1721
        %1750 = vmatpush1.msra.mxu0 %v1720
        %1751 = vmatprep.subr.mxu0 0.0
        %1752 = vmatpush1.msra.mxu0 0.0
        %1753 = vmatprep.subr.mxu0 0.0
        %1754 = vmatpush1.msra.mxu0 0.0
        %1755 = vmatprep.subr.mxu0 0.0
        %1756 = vmatpush1.msra.mxu0 0.0
        %1757 = vmatprep.subr.mxu0 0.0
        %1758 = vmatpush1.msra.mxu0 0.0
        %1759 = vmatprep.subr.mxu0 0.0
        %1760 = vmatpush1.msra.mxu0 0.0
        %1761 = vmatprep.subr.mxu0 0.0
        %1762 = vmatpush1.msra.mxu0 0.0
        %1763 = vmatprep.subr.mxu0 0.0
        %1764 = vmatpush1.msra.mxu0 0.0
        %1765 = vmatprep.subr.mxu0 0.0
        %1766 = vmatpush1.msra.mxu0 0.0
        %1767 = vmatprep.subr.mxu0 0.0
        %1768 = vmatpush1.msra.mxu0 0.0
        %1769 = vmatprep.subr.mxu0 0.0
        %1770 = vmatpush1.msra.mxu0 0.0
        %1771 = vmatprep.subr.mxu0 0.0
        %1772 = vmatpush1.msra.mxu0 0.0
        %1773 = vmatprep.subr.mxu0 0.0
        %1774 = vmatpush1.msra.mxu0 0.0
        %1775 = vmatprep.subr.mxu0 0.0
        %1776 = vmatpush1.msra.mxu0 0.0
        %1777 = vmatprep.subr.mxu0 0.0
        %1778 = vmatpush1.msra.mxu0 0.0
        %1779 = vmatprep.subr.mxu0 0.0
        %1780 = vmatpush1.msra.mxu0 0.0
        %1781 = vmatprep.subr.mxu0 0.0
        %1782 = vmatpush1.msra.mxu0 0.0
        %1783 = vmatprep.subr.mxu0 0.0
        %1784 = vmatpush1.msra.mxu0 0.0
        %1785 = vmatprep.subr.mxu0 0.0
        %1786 = vmatpush1.msra.mxu0 0.0
        %1787 = vmatprep.subr.mxu0 0.0
        %1788 = vmatpush1.msra.mxu0 0.0
        %1789 = vmatprep.subr.mxu0 0.0
        %1790 = vmatpush1.msra.mxu0 0.0
        %1791 = vmatprep.subr.mxu0 0.0
        %1792 = vmatpush1.msra.mxu0 0.0
        %1793 = vmatprep.subr.mxu0 0.0
        %1794 = vmatpush1.msra.mxu0 0.0
        %1795 = vmatprep.subr.mxu0 0.0
        %1796 = vmatpush1.msra.mxu0 0.0
        %1797 = vmatprep.subr.mxu0 0.0
        %1798 = vmatpush1.msra.mxu0 0.0
        %1799 = vmatprep.subr.mxu0 0.0
        %1800 = vmatpush1.msra.mxu0 0.0
        %1801 = vmatprep.subr.mxu0 0.0
        %1802 = vmatpush1.msra.mxu0 0.0
        %1803 = vmatprep.subr.mxu0 0.0
        %1804 = vmatpush1.msra.mxu0 0.0
        %1805 = vmatprep.subr.mxu0 0.0
        %1806 = vmatpush1.msra.mxu0 0.0
        %1807 = vmatprep.mubr.f32.mxu0 0.0
        %1808 = vmatmul.mubr.f32.gmra.mrb[0].mxu0 %v1732
        %v1809 = vpop.f32.mrb[0].mxu0
        %v1810 = vadd.f32 0.0, %v1809
        %v1811 = vpop.f32.mrb[0].mxu0
        %v1812 = vadd.f32 0.0, %v1811
        %1813 = vmatprep.mubr.f32.mxu0 0.0
        %1814 = vmatmul.mubr.f32.gmra.mrb[0].mxu0 %v1735
        %v1815 = vpop.f32.mrb[0].mxu0
        %v1816 = vadd.f32 0.0, %v1815
        %v1817 = vpop.f32.mrb[0].mxu0
        %v1818 = vadd.f32 0.0, %v1817
        %1819 = vmatprep.mubr.f32.mxu0 0.0
        %1820 = vmatmul.mubr.f32.gmra.mrb[0].mxu0 %v1738
        %v1821 = vpop.f32.mrb[0].mxu0
        %v1822 = vadd.f32 0.0, %v1821
        %v1823 = vpop.f32.mrb[0].mxu0
        %v1824 = vadd.f32 0.0, %v1823
        %1825 = vmatprep.mubr.f32.mxu0 0.0
        %1826 = vmatmul.mubr.f32.gmra.mrb[0].mxu0 %v1741
        %v1827 = vpop.f32.mrb[0].mxu0
        %v1828 = vadd.f32 0.0, %v1827
        %v1829 = vpop.f32.mrb[0].mxu0
        %v1830 = vadd.f32 0.0, %v1829
        %1831 = vdwg.mxu0
        %1844 = vrot.lane.b32.xlu0 %v1657, 17
        %v1845 = vpop.permute.xlu0 %1844
        %1846 = vrot.lane.b32.xlu0 %v1658, 17
        %v1847 = vpop.permute.xlu0 %1846
        %1848 = vrot.lane.b32.xlu0 %v1659, 17
        %v1849 = vpop.permute.xlu0 %1848
        %1850 = vrot.lane.b32.xlu0 %v1660, 17
        %v1851 = vpop.permute.xlu0 %1850
        %1852 = vrot.lane.b32.xlu0 %v1661, 17
        %v1853 = vpop.permute.xlu0 %1852
        %1854 = vrot.lane.b32.xlu0 %v1662, 17
        %v1855 = vpop.permute.xlu0 %1854
        %1856 = vrot.lane.b32.xlu0 %v1663, 17
        %v1857 = vpop.permute.xlu0 %1856
        %1858 = vrot.lane.b32.xlu0 %v1664, 17
        %v1859 = vpop.permute.xlu0 %1858
        %1860 = vrot.lane.b32.xlu0 %v1665, 17
        %v1861 = vpop.permute.xlu0 %1860
        %1862 = vrot.lane.b32.xlu0 %v1666, 17
        %v1863 = vpop.permute.xlu0 %1862
        %1864 = vrot.lane.b32.xlu0 %v1667, 17
        %v1865 = vpop.permute.xlu0 %1864
        %1866 = vrot.lane.b32.xlu0 %v1668, 17
        %v1867 = vpop.permute.xlu0 %1866
        %v1868 = vsel %vm499, %v1845, %v1847
        %v1869 = vsel %vm499, %v1847, %v1849
        %v1870 = vsel %vm499, %v1851, %v1853
        %v1871 = vsel %vm499, %v1853, %v1855
        %v1872 = vsel %vm499, %v1857, %v1859
        %v1873 = vsel %vm499, %v1859, %v1861
        %v1874 = vsel %vm499, %v1863, %v1865
        %v1875 = vsel %vm499, %v1865, %v1867
        %v1885 = vsel %vm1730, %v1669, 0
        %v1888 = vsel %vm1730, %v1670, 0
        %v1891 = vsel %vm1730, %v1671, 0
        %v1894 = vsel %vm1730, %v1672, 0
        %1896 = vmatprep.subr.mxu0 %v1869
        %1897 = vmatpush1.msra.mxu0 %v1868
        %1898 = vmatprep.subr.mxu0 %v1871
        %1899 = vmatpush1.msra.mxu0 %v1870
        %1900 = vmatprep.subr.mxu0 %v1873
        %1901 = vmatpush1.msra.mxu0 %v1872
        %1902 = vmatprep.subr.mxu0 %v1875
        %1903 = vmatpush1.msra.mxu0 %v1874
        %1904 = vmatprep.subr.mxu0 0.0
        %1905 = vmatpush1.msra.mxu0 0.0
        %1906 = vmatprep.subr.mxu0 0.0
        %1907 = vmatpush1.msra.mxu0 0.0
        %1908 = vmatprep.subr.mxu0 0.0
        %1909 = vmatpush1.msra.mxu0 0.0
        %1910 = vmatprep.subr.mxu0 0.0
        %1911 = vmatpush1.msra.mxu0 0.0
        %1912 = vmatprep.subr.mxu0 0.0
        %1913 = vmatpush1.msra.mxu0 0.0
        %1914 = vmatprep.subr.mxu0 0.0
        %1915 = vmatpush1.msra.mxu0 0.0
        %1916 = vmatprep.subr.mxu0 0.0
        %1917 = vmatpush1.msra.mxu0 0.0
        %1918 = vmatprep.subr.mxu0 0.0
        %1919 = vmatpush1.msra.mxu0 0.0
        %1920 = vmatprep.subr.mxu0 0.0
        %1921 = vmatpush1.msra.mxu0 0.0
        %1922 = vmatprep.subr.mxu0 0.0
        %1923 = vmatpush1.msra.mxu0 0.0
        %1924 = vmatprep.subr.mxu0 0.0
        %1925 = vmatpush1.msra.mxu0 0.0
        %1926 = vmatprep.subr.mxu0 0.0
        %1927 = vmatpush1.msra.mxu0 0.0
        %1928 = vmatprep.subr.mxu0 0.0
        %1929 = vmatpush1.msra.mxu0 0.0
        %1930 = vmatprep.subr.mxu0 0.0
        %1931 = vmatpush1.msra.mxu0 0.0
        %1932 = vmatprep.subr.mxu0 0.0
        %1933 = vmatpush1.msra.mxu0 0.0
        %1934 = vmatprep.subr.mxu0 0.0
        %1935 = vmatpush1.msra.mxu0 0.0
        %1936 = vmatprep.subr.mxu0 0.0
        %1937 = vmatpush1.msra.mxu0 0.0
        %1938 = vmatprep.subr.mxu0 0.0
        %1939 = vmatpush1.msra.mxu0 0.0
        %1940 = vmatprep.subr.mxu0 0.0
        %1941 = vmatpush1.msra.mxu0 0.0
        %1942 = vmatprep.subr.mxu0 0.0
        %1943 = vmatpush1.msra.mxu0 0.0
        %1944 = vmatprep.subr.mxu0 0.0
        %1945 = vmatpush1.msra.mxu0 0.0
        %1946 = vmatprep.subr.mxu0 0.0
        %1947 = vmatpush1.msra.mxu0 0.0
        %1948 = vmatprep.subr.mxu0 0.0
        %1949 = vmatpush1.msra.mxu0 0.0
        %1950 = vmatprep.subr.mxu0 0.0
        %1951 = vmatpush1.msra.mxu0 0.0
        %1952 = vmatprep.subr.mxu0 0.0
        %1953 = vmatpush1.msra.mxu0 0.0
        %1954 = vmatprep.subr.mxu0 0.0
        %1955 = vmatpush1.msra.mxu0 0.0
        %1956 = vmatprep.subr.mxu0 0.0
        %1957 = vmatpush1.msra.mxu0 0.0
        %1958 = vmatprep.subr.mxu0 0.0
        %1959 = vmatpush1.msra.mxu0 0.0
        %1960 = vmatprep.mubr.f32.mxu0 0.0
        %1961 = vmatmul.mubr.f32.gmra.mrb[0].mxu0 %v1885
        %v1962 = vpop.f32.mrb[0].mxu0
        %v1963 = vadd.f32 %v1810, %v1962
        %v1964 = vpop.f32.mrb[0].mxu0
        %v1965 = vadd.f32 %v1812, %v1964
        %1966 = vmatprep.mubr.f32.mxu0 0.0
        %1967 = vmatmul.mubr.f32.gmra.mrb[0].mxu0 %v1888
        %v1968 = vpop.f32.mrb[0].mxu0
        %v1969 = vadd.f32 %v1816, %v1968
        %v1970 = vpop.f32.mrb[0].mxu0
        %v1971 = vadd.f32 %v1818, %v1970
        %1972 = vmatprep.mubr.f32.mxu0 0.0
        %1973 = vmatmul.mubr.f32.gmra.mrb[0].mxu0 %v1891
        %v1974 = vpop.f32.mrb[0].mxu0
        %v1975 = vadd.f32 %v1822, %v1974
        %v1976 = vpop.f32.mrb[0].mxu0
        %v1977 = vadd.f32 %v1824, %v1976
        %1978 = vmatprep.mubr.f32.mxu0 0.0
        %1979 = vmatmul.mubr.f32.gmra.mrb[0].mxu0 %v1894
        %v1980 = vpop.f32.mrb[0].mxu0
        %v1981 = vadd.f32 %v1828, %v1980
        %v1982 = vpop.f32.mrb[0].mxu0
        %v1983 = vadd.f32 %v1830, %v1982
        %1984 = vdwg.mxu0
        %v1985 = vld [vmem:[%s609] ss:$2 sm:$0x3]
        %v1987 = vlaneseq
        %v1988 = vshrl.u32 %v1987, 7
        %v1989 = vsub.s32 0, %v1988
        %v1990 = vrot.slane %v1985, %v1989
        %v1991 = vlaneseq
        %v1992 = vshrl.u32 %v1991, 7
        %v1993 = vsub.s32 1, %v1992
        %v1994 = vrot.slane %v1985, %v1993
        %1995 = vrot.lane.b32.xlu0 %v1990, 113
        %v1996 = vpop.permute.xlu0 %1995
        %1997 = vrot.lane.b32.xlu0 %v1994, 113
        %v1998 = vpop.permute.xlu0 %1997
        %v1999 = vsel %vm624, %v1996, %v1998
        %v2003 = vmul.f32 %v1627, %v1996
        %v2004 = vmul.f32 %v1628, %v1999
        %v2005 = vmul.f32 %v1629, %v1998
        %v2006 = vmul.f32 %v1630, %v1996
        %v2007 = vmul.f32 %v1631, %v1999
        %v2008 = vmul.f32 %v1632, %v1998
        %v2009 = vmul.f32 %v1633, %v1996
        %v2010 = vmul.f32 %v1634, %v1999
        %v2011 = vmul.f32 %v1635, %v1998
        %v2012 = vmul.f32 %v1636, %v1996
        %v2013 = vmul.f32 %v1637, %v1999
        %v2014 = vmul.f32 %v1638, %v1998
        %s2015 = scalar_lea.vmem [#allocation7], 64
        %v2016 = vld [vmem:[%s2015] sm:$0xff]
        %v2017 = vld [vmem:[%s2015 + $0x8] sm:$0xff]
        %v2018 = vld [vmem:[%s2015 + $0x10] sm:$0xff]
        %v2019 = vld [vmem:[%s2015 + $0x18] sm:$0xff]
        %2032 = vrot.lane.b32.xlu0 %v2003, 15
        %v2033 = vpop.permute.xlu0 %2032
        %2034 = vrot.lane.b32.xlu0 %v2004, 15
        %v2035 = vpop.permute.xlu0 %2034
        %2036 = vrot.lane.b32.xlu0 %v2005, 15
        %v2037 = vpop.permute.xlu0 %2036
        %2038 = vrot.lane.b32.xlu0 %v2006, 15
        %v2039 = vpop.permute.xlu0 %2038
        %2040 = vrot.lane.b32.xlu0 %v2007, 15
        %v2041 = vpop.permute.xlu0 %2040
        %2042 = vrot.lane.b32.xlu0 %v2008, 15
        %v2043 = vpop.permute.xlu0 %2042
        %2044 = vrot.lane.b32.xlu0 %v2009, 15
        %v2045 = vpop.permute.xlu0 %2044
        %2046 = vrot.lane.b32.xlu0 %v2010, 15
        %v2047 = vpop.permute.xlu0 %2046
        %2048 = vrot.lane.b32.xlu0 %v2011, 15
        %v2049 = vpop.permute.xlu0 %2048
        %2050 = vrot.lane.b32.xlu0 %v2012, 15
        %v2051 = vpop.permute.xlu0 %2050
        %2052 = vrot.lane.b32.xlu0 %v2013, 15
        %v2053 = vpop.permute.xlu0 %2052
        %2054 = vrot.lane.b32.xlu0 %v2014, 15
        %v2055 = vpop.permute.xlu0 %2054
        %v2056 = vsel %vm644, %v2033, %v2035
        %v2057 = vsel %vm644, %v2035, %v2037
        %v2058 = vsel %vm644, %v2039, %v2041
        %v2059 = vsel %vm644, %v2041, %v2043
        %v2060 = vsel %vm644, %v2045, %v2047
        %v2061 = vsel %vm644, %v2047, %v2049
        %v2062 = vsel %vm644, %v2051, %v2053
        %v2063 = vsel %vm644, %v2053, %v2055
        %v2073 = vsel %vm1730, %v2016, 0
        %v2076 = vsel %vm1730, %v2017, 0
        %v2079 = vsel %vm1730, %v2018, 0
        %v2082 = vsel %vm1730, %v2019, 0
        %2084 = vmatprep.subr.mxu0 %v2057
        %2085 = vmatpush1.msra.mxu0 %v2056
        %2086 = vmatprep.subr.mxu0 %v2059
        %2087 = vmatpush1.msra.mxu0 %v2058
        %2088 = vmatprep.subr.mxu0 %v2061
        %2089 = vmatpush1.msra.mxu0 %v2060
        %2090 = vmatprep.subr.mxu0 %v2063
        %2091 = vmatpush1.msra.mxu0 %v2062
        %2092 = vmatprep.subr.mxu0 0.0
        %2093 = vmatpush1.msra.mxu0 0.0
        %2094 = vmatprep.subr.mxu0 0.0
        %2095 = vmatpush1.msra.mxu0 0.0
        %2096 = vmatprep.subr.mxu0 0.0
        %2097 = vmatpush1.msra.mxu0 0.0
        %2098 = vmatprep.subr.mxu0 0.0
        %2099 = vmatpush1.msra.mxu0 0.0
        %2100 = vmatprep.subr.mxu0 0.0
        %2101 = vmatpush1.msra.mxu0 0.0
        %2102 = vmatprep.subr.mxu0 0.0
        %2103 = vmatpush1.msra.mxu0 0.0
        %2104 = vmatprep.subr.mxu0 0.0
        %2105 = vmatpush1.msra.mxu0 0.0
        %2106 = vmatprep.subr.mxu0 0.0
        %2107 = vmatpush1.msra.mxu0 0.0
        %2108 = vmatprep.subr.mxu0 0.0
        %2109 = vmatpush1.msra.mxu0 0.0
        %2110 = vmatprep.subr.mxu0 0.0
        %2111 = vmatpush1.msra.mxu0 0.0
        %2112 = vmatprep.subr.mxu0 0.0
        %2113 = vmatpush1.msra.mxu0 0.0
        %2114 = vmatprep.subr.mxu0 0.0
        %2115 = vmatpush1.msra.mxu0 0.0
        %2116 = vmatprep.subr.mxu0 0.0
        %2117 = vmatpush1.msra.mxu0 0.0
        %2118 = vmatprep.subr.mxu0 0.0
        %2119 = vmatpush1.msra.mxu0 0.0
        %2120 = vmatprep.subr.mxu0 0.0
        %2121 = vmatpush1.msra.mxu0 0.0
        %2122 = vmatprep.subr.mxu0 0.0
        %2123 = vmatpush1.msra.mxu0 0.0
        %2124 = vmatprep.subr.mxu0 0.0
        %2125 = vmatpush1.msra.mxu0 0.0
        %2126 = vmatprep.subr.mxu0 0.0
        %2127 = vmatpush1.msra.mxu0 0.0
        %2128 = vmatprep.subr.mxu0 0.0
        %2129 = vmatpush1.msra.mxu0 0.0
        %2130 = vmatprep.subr.mxu0 0.0
        %2131 = vmatpush1.msra.mxu0 0.0
        %2132 = vmatprep.subr.mxu0 0.0
        %2133 = vmatpush1.msra.mxu0 0.0
        %2134 = vmatprep.subr.mxu0 0.0
        %2135 = vmatpush1.msra.mxu0 0.0
        %2136 = vmatprep.subr.mxu0 0.0
        %2137 = vmatpush1.msra.mxu0 0.0
        %2138 = vmatprep.subr.mxu0 0.0
        %2139 = vmatpush1.msra.mxu0 0.0
        %2140 = vmatprep.subr.mxu0 0.0
        %2141 = vmatpush1.msra.mxu0 0.0
        %2142 = vmatprep.subr.mxu0 0.0
        %2143 = vmatpush1.msra.mxu0 0.0
        %2144 = vmatprep.subr.mxu0 0.0
        %2145 = vmatpush1.msra.mxu0 0.0
        %2146 = vmatprep.subr.mxu0 0.0
        %2147 = vmatpush1.msra.mxu0 0.0
        %2148 = vmatprep.mubr.f32.mxu0 0.0
        %2149 = vmatmul.mubr.f32.gmra.mrb[0].mxu0 %v2073
        %v2150 = vpop.f32.mrb[0].mxu0
        %v2151 = vadd.f32 0.0, %v2150
        %v2152 = vpop.f32.mrb[0].mxu0
        %v2153 = vadd.f32 0.0, %v2152
        %2154 = vmatprep.mubr.f32.mxu0 0.0
        %2155 = vmatmul.mubr.f32.gmra.mrb[0].mxu0 %v2076
        %v2156 = vpop.f32.mrb[0].mxu0
        %v2157 = vadd.f32 0.0, %v2156
        %v2158 = vpop.f32.mrb[0].mxu0
        %v2159 = vadd.f32 0.0, %v2158
        %2160 = vmatprep.mubr.f32.mxu0 0.0
        %2161 = vmatmul.mubr.f32.gmra.mrb[0].mxu0 %v2079
        %v2162 = vpop.f32.mrb[0].mxu0
        %v2163 = vadd.f32 0.0, %v2162
        %v2164 = vpop.f32.mrb[0].mxu0
        %v2165 = vadd.f32 0.0, %v2164
        %2166 = vmatprep.mubr.f32.mxu0 0.0
        %2167 = vmatmul.mubr.f32.gmra.mrb[0].mxu0 %v2082
        %v2168 = vpop.f32.mrb[0].mxu0
        %v2169 = vadd.f32 0.0, %v2168
        %v2170 = vpop.f32.mrb[0].mxu0
        %v2171 = vadd.f32 0.0, %v2170
        %2172 = vdwg.mxu0
        %v2173 = vadd.f32 %v1963, %v2151
        %v2174 = vadd.f32 %v1965, %v2153
        %v2175 = vadd.f32 %v1969, %v2157
        %v2176 = vadd.f32 %v1971, %v2159
        %v2177 = vadd.f32 %v1975, %v2163
        %v2178 = vadd.f32 %v1977, %v2165
        %v2179 = vadd.f32 %v1981, %v2169
        %v2180 = vadd.f32 %v1983, %v2171
        %2181 = vrot.lane.b32.xlu0 %v1644, 127
        %v2182 = vpop.permute.xlu0 %2181
        %2183 = vrot.lane.b32.xlu0 %v1648, 127
        %v2184 = vpop.permute.xlu0 %2183
        %v2185 = vsel %vm765, %v2182, %v2184
        %v2189 = vmul.f32 %v1627, %v2182
        %v2190 = vmul.f32 %v1628, %v2185
        %v2191 = vmul.f32 %v1629, %v2184
        %v2192 = vmul.f32 %v1630, %v2182
        %v2193 = vmul.f32 %v1631, %v2185
        %v2194 = vmul.f32 %v1632, %v2184
        %v2195 = vmul.f32 %v1633, %v2182
        %v2196 = vmul.f32 %v1634, %v2185
        %v2197 = vmul.f32 %v1635, %v2184
        %v2198 = vmul.f32 %v1636, %v2182
        %v2199 = vmul.f32 %v1637, %v2185
        %v2200 = vmul.f32 %v1638, %v2184
        %s2201 = scalar_lea.vmem [#allocation7], 96
        %v2202 = vld [vmem:[%s2201] sm:$0xff]
        %v2203 = vld [vmem:[%s2201 + $0x8] sm:$0xff]
        %v2204 = vld [vmem:[%s2201 + $0x10] sm:$0xff]
        %v2205 = vld [vmem:[%s2201 + $0x18] sm:$0xff]
        %2218 = vrot.lane.b32.xlu0 %v2189, 1
        %v2219 = vpop.permute.xlu0 %2218
        %2220 = vrot.lane.b32.xlu0 %v2190, 1
        %v2221 = vpop.permute.xlu0 %2220
        %2222 = vrot.lane.b32.xlu0 %v2191, 1
        %v2223 = vpop.permute.xlu0 %2222
        %2224 = vrot.lane.b32.xlu0 %v2192, 1
        %v2225 = vpop.permute.xlu0 %2224
        %2226 = vrot.lane.b32.xlu0 %v2193, 1
        %v2227 = vpop.permute.xlu0 %2226
        %2228 = vrot.lane.b32.xlu0 %v2194, 1
        %v2229 = vpop.permute.xlu0 %2228
        %2230 = vrot.lane.b32.xlu0 %v2195, 1
        %v2231 = vpop.permute.xlu0 %2230
        %2232 = vrot.lane.b32.xlu0 %v2196, 1
        %v2233 = vpop.permute.xlu0 %2232
        %2234 = vrot.lane.b32.xlu0 %v2197, 1
        %v2235 = vpop.permute.xlu0 %2234
        %2236 = vrot.lane.b32.xlu0 %v2198, 1
        %v2237 = vpop.permute.xlu0 %2236
        %2238 = vrot.lane.b32.xlu0 %v2199, 1
        %v2239 = vpop.permute.xlu0 %2238
        %2240 = vrot.lane.b32.xlu0 %v2200, 1
        %v2241 = vpop.permute.xlu0 %2240
        %v2242 = vsel %vm785, %v2219, %v2221
        %v2243 = vsel %vm785, %v2221, %v2223
        %v2244 = vsel %vm785, %v2225, %v2227
        %v2245 = vsel %vm785, %v2227, %v2229
        %v2246 = vsel %vm785, %v2231, %v2233
        %v2247 = vsel %vm785, %v2233, %v2235
        %v2248 = vsel %vm785, %v2237, %v2239
        %v2249 = vsel %vm785, %v2239, %v2241
        %v2259 = vsel %vm1730, %v2202, 0
        %v2262 = vsel %vm1730, %v2203, 0
        %v2265 = vsel %vm1730, %v2204, 0
        %v2268 = vsel %vm1730, %v2205, 0
        %2270 = vmatprep.subr.mxu0 %v2243
        %2271 = vmatpush1.msra.mxu0 %v2242
        %2272 = vmatprep.subr.mxu0 %v2245
        %2273 = vmatpush1.msra.mxu0 %v2244
        %2274 = vmatprep.subr.mxu0 %v2247
        %2275 = vmatpush1.msra.mxu0 %v2246
        %2276 = vmatprep.subr.mxu0 %v2249
        %2277 = vmatpush1.msra.mxu0 %v2248
        %2278 = vmatprep.subr.mxu0 0.0
        %2279 = vmatpush1.msra.mxu0 0.0
        %2280 = vmatprep.subr.mxu0 0.0
        %2281 = vmatpush1.msra.mxu0 0.0
        %2282 = vmatprep.subr.mxu0 0.0
        %2283 = vmatpush1.msra.mxu0 0.0
        %2284 = vmatprep.subr.mxu0 0.0
        %2285 = vmatpush1.msra.mxu0 0.0
        %2286 = vmatprep.subr.mxu0 0.0
        %2287 = vmatpush1.msra.mxu0 0.0
        %2288 = vmatprep.subr.mxu0 0.0
        %2289 = vmatpush1.msra.mxu0 0.0
        %2290 = vmatprep.subr.mxu0 0.0
        %2291 = vmatpush1.msra.mxu0 0.0
        %2292 = vmatprep.subr.mxu0 0.0
        %2293 = vmatpush1.msra.mxu0 0.0
        %2294 = vmatprep.subr.mxu0 0.0
        %2295 = vmatpush1.msra.mxu0 0.0
        %2296 = vmatprep.subr.mxu0 0.0
        %2297 = vmatpush1.msra.mxu0 0.0
        %2298 = vmatprep.subr.mxu0 0.0
        %2299 = vmatpush1.msra.mxu0 0.0
        %2300 = vmatprep.subr.mxu0 0.0
        %2301 = vmatpush1.msra.mxu0 0.0
        %2302 = vmatprep.subr.mxu0 0.0
        %2303 = vmatpush1.msra.mxu0 0.0
        %2304 = vmatprep.subr.mxu0 0.0
        %2305 = vmatpush1.msra.mxu0 0.0
        %2306 = vmatprep.subr.mxu0 0.0
        %2307 = vmatpush1.msra.mxu0 0.0
        %2308 = vmatprep.subr.mxu0 0.0
        %2309 = vmatpush1.msra.mxu0 0.0
        %2310 = vmatprep.subr.mxu0 0.0
        %2311 = vmatpush1.msra.mxu0 0.0
        %2312 = vmatprep.subr.mxu0 0.0
        %2313 = vmatpush1.msra.mxu0 0.0
        %2314 = vmatprep.subr.mxu0 0.0
        %2315 = vmatpush1.msra.mxu0 0.0
        %2316 = vmatprep.subr.mxu0 0.0
        %2317 = vmatpush1.msra.mxu0 0.0
        %2318 = vmatprep.subr.mxu0 0.0
        %2319 = vmatpush1.msra.mxu0 0.0
        %2320 = vmatprep.subr.mxu0 0.0
        %2321 = vmatpush1.msra.mxu0 0.0
        %2322 = vmatprep.subr.mxu0 0.0
        %2323 = vmatpush1.msra.mxu0 0.0
        %2324 = vmatprep.subr.mxu0 0.0
        %2325 = vmatpush1.msra.mxu0 0.0
        %2326 = vmatprep.subr.mxu0 0.0
        %2327 = vmatpush1.msra.mxu0 0.0
        %2328 = vmatprep.subr.mxu0 0.0
        %2329 = vmatpush1.msra.mxu0 0.0
        %2330 = vmatprep.subr.mxu0 0.0
        %2331 = vmatpush1.msra.mxu0 0.0
        %2332 = vmatprep.subr.mxu0 0.0
        %2333 = vmatpush1.msra.mxu0 0.0
        %2334 = vmatprep.mubr.f32.mxu0 0.0
        %2335 = vmatmul.mubr.f32.gmra.mrb[0].mxu0 %v2259
        %v2336 = vpop.f32.mrb[0].mxu0
        %v2337 = vadd.f32 0.0, %v2336
        %v2338 = vpop.f32.mrb[0].mxu0
        %v2339 = vadd.f32 0.0, %v2338
        %2340 = vmatprep.mubr.f32.mxu0 0.0
        %2341 = vmatmul.mubr.f32.gmra.mrb[0].mxu0 %v2262
        %v2342 = vpop.f32.mrb[0].mxu0
        %v2343 = vadd.f32 0.0, %v2342
        %v2344 = vpop.f32.mrb[0].mxu0
        %v2345 = vadd.f32 0.0, %v2344
        %2346 = vmatprep.mubr.f32.mxu0 0.0
        %2347 = vmatmul.mubr.f32.gmra.mrb[0].mxu0 %v2265
        %v2348 = vpop.f32.mrb[0].mxu0
        %v2349 = vadd.f32 0.0, %v2348
        %v2350 = vpop.f32.mrb[0].mxu0
        %v2351 = vadd.f32 0.0, %v2350
        %2352 = vmatprep.mubr.f32.mxu0 0.0
        %2353 = vmatmul.mubr.f32.gmra.mrb[0].mxu0 %v2268
        %v2354 = vpop.f32.mrb[0].mxu0
        %v2355 = vadd.f32 0.0, %v2354
        %v2356 = vpop.f32.mrb[0].mxu0
        %v2357 = vadd.f32 0.0, %v2356
        %2358 = vdwg.mxu0
        %v2359 = vadd.f32 %v2173, %v2337
        %v2360 = vadd.f32 %v2174, %v2339
        %v2361 = vadd.f32 %v2175, %v2343
        %v2362 = vadd.f32 %v2176, %v2345
        %v2363 = vadd.f32 %v2177, %v2349
        %v2364 = vadd.f32 %v2178, %v2351
        %v2365 = vadd.f32 %v2179, %v2355
        %v2366 = vadd.f32 %v2180, %v2357
        %s2367 = scalar_lea.vmem [#allocation7], 128
        %v2368 = vld [vmem:[%s2367] sm:$0xff]
        %v2369 = vld [vmem:[%s2367 + $0x8] sm:$0xff]
        %v2370 = vld [vmem:[%s2367 + $0x10] sm:$0xff]
        %v2371 = vld [vmem:[%s2367 + $0x18] sm:$0xff]
        %v2373 = vsel %vm1730, %v2368, 0
        %v2376 = vsel %vm1730, %v2369, 0
        %v2379 = vsel %vm1730, %v2370, 0
        %v2382 = vsel %vm1730, %v2371, 0
        %2384 = vmatprep.subr.mxu0 %v1629
        %2385 = vmatpush1.msra.mxu0 %v1628
        %2386 = vmatprep.subr.mxu0 %v1632
        %2387 = vmatpush1.msra.mxu0 %v1631
        %2388 = vmatprep.subr.mxu0 %v1635
        %2389 = vmatpush1.msra.mxu0 %v1634
        %2390 = vmatprep.subr.mxu0 %v1638
        %2391 = vmatpush1.msra.mxu0 %v1637
        %2392 = vmatprep.subr.mxu0 0.0
        %2393 = vmatpush1.msra.mxu0 0.0
        %2394 = vmatprep.subr.mxu0 0.0
        %2395 = vmatpush1.msra.mxu0 0.0
        %2396 = vmatprep.subr.mxu0 0.0
        %2397 = vmatpush1.msra.mxu0 0.0
        %2398 = vmatprep.subr.mxu0 0.0
        %2399 = vmatpush1.msra.mxu0 0.0
        %2400 = vmatprep.subr.mxu0 0.0
        %2401 = vmatpush1.msra.mxu0 0.0
        %2402 = vmatprep.subr.mxu0 0.0
        %2403 = vmatpush1.msra.mxu0 0.0
        %2404 = vmatprep.subr.mxu0 0.0
        %2405 = vmatpush1.msra.mxu0 0.0
        %2406 = vmatprep.subr.mxu0 0.0
        %2407 = vmatpush1.msra.mxu0 0.0
        %2408 = vmatprep.subr.mxu0 0.0
        %2409 = vmatpush1.msra.mxu0 0.0
        %2410 = vmatprep.subr.mxu0 0.0
        %2411 = vmatpush1.msra.mxu0 0.0
        %2412 = vmatprep.subr.mxu0 0.0
        %2413 = vmatpush1.msra.mxu0 0.0
        %2414 = vmatprep.subr.mxu0 0.0
        %2415 = vmatpush1.msra.mxu0 0.0
        %2416 = vmatprep.subr.mxu0 0.0
        %2417 = vmatpush1.msra.mxu0 0.0
        %2418 = vmatprep.subr.mxu0 0.0
        %2419 = vmatpush1.msra.mxu0 0.0
        %2420 = vmatprep.subr.mxu0 0.0
        %2421 = vmatpush1.msra.mxu0 0.0
        %2422 = vmatprep.subr.mxu0 0.0
        %2423 = vmatpush1.msra.mxu0 0.0
        %2424 = vmatprep.subr.mxu0 0.0
        %2425 = vmatpush1.msra.mxu0 0.0
        %2426 = vmatprep.subr.mxu0 0.0
        %2427 = vmatpush1.msra.mxu0 0.0
        %2428 = vmatprep.subr.mxu0 0.0
        %2429 = vmatpush1.msra.mxu0 0.0
        %2430 = vmatprep.subr.mxu0 0.0
        %2431 = vmatpush1.msra.mxu0 0.0
        %2432 = vmatprep.subr.mxu0 0.0
        %2433 = vmatpush1.msra.mxu0 0.0
        %2434 = vmatprep.subr.mxu0 0.0
        %2435 = vmatpush1.msra.mxu0 0.0
        %2436 = vmatprep.subr.mxu0 0.0
        %2437 = vmatpush1.msra.mxu0 0.0
        %2438 = vmatprep.subr.mxu0 0.0
        %2439 = vmatpush1.msra.mxu0 0.0
        %2440 = vmatprep.subr.mxu0 0.0
        %2441 = vmatpush1.msra.mxu0 0.0
        %2442 = vmatprep.subr.mxu0 0.0
        %2443 = vmatpush1.msra.mxu0 0.0
        %2444 = vmatprep.subr.mxu0 0.0
        %2445 = vmatpush1.msra.mxu0 0.0
        %2446 = vmatprep.subr.mxu0 0.0
        %2447 = vmatpush1.msra.mxu0 0.0
        %2448 = vmatprep.mubr.f32.mxu0 0.0
        %2449 = vmatmul.mubr.f32.gmra.mrb[0].mxu0 %v2373
        %v2450 = vpop.f32.mrb[0].mxu0
        %v2451 = vadd.f32 0.0, %v2450
        %v2452 = vpop.f32.mrb[0].mxu0
        %v2453 = vadd.f32 0.0, %v2452
        %2454 = vmatprep.mubr.f32.mxu0 0.0
        %2455 = vmatmul.mubr.f32.gmra.mrb[0].mxu0 %v2376
        %v2456 = vpop.f32.mrb[0].mxu0
        %v2457 = vadd.f32 0.0, %v2456
        %v2458 = vpop.f32.mrb[0].mxu0
        %v2459 = vadd.f32 0.0, %v2458
        %2460 = vmatprep.mubr.f32.mxu0 0.0
        %2461 = vmatmul.mubr.f32.gmra.mrb[0].mxu0 %v2379
        %v2462 = vpop.f32.mrb[0].mxu0
        %v2463 = vadd.f32 0.0, %v2462
        %v2464 = vpop.f32.mrb[0].mxu0
        %v2465 = vadd.f32 0.0, %v2464
        %2466 = vmatprep.mubr.f32.mxu0 0.0
        %2467 = vmatmul.mubr.f32.gmra.mrb[0].mxu0 %v2382
        %v2468 = vpop.f32.mrb[0].mxu0
        %v2469 = vadd.f32 0.0, %v2468
        %v2470 = vpop.f32.mrb[0].mxu0
        %v2471 = vadd.f32 0.0, %v2470
        %2472 = vdwg.mxu0
        %v2473 = vadd.f32 %v2359, %v2451
        %v2474 = vadd.f32 %v2360, %v2453
        %v2475 = vadd.f32 %v2361, %v2457
        %v2476 = vadd.f32 %v2362, %v2459
        %v2477 = vadd.f32 %v2363, %v2463
        %v2478 = vadd.f32 %v2364, %v2465
        %v2479 = vadd.f32 %v2365, %v2469
        %v2480 = vadd.f32 %v2366, %v2471
        %v2481 = vld [vmem:[#allocation3 + $0x8] sm:$0xff]
        %v2482 = vld [vmem:[#allocation3 + $0x10] sm:$0xff]
        %v2483 = vld [vmem:[#allocation3 + $0x18] sm:$0xff]
        %v2484 = vld [vmem:[#allocation3 + $0x28] sm:$0xff]
        %v2485 = vld [vmem:[#allocation3 + $0x30] sm:$0xff]
        %v2486 = vld [vmem:[#allocation3 + $0x38] sm:$0xff]
        %v2487 = vld [vmem:[#allocation3 + $0x48] sm:$0xff]
        %v2488 = vld [vmem:[#allocation3 + $0x50] sm:$0xff]
        %v2489 = vld [vmem:[#allocation3 + $0x58] sm:$0xff]
        %v2490 = vld [vmem:[#allocation3 + $0x68] sm:$0xff]
        %v2491 = vld [vmem:[#allocation3 + $0x70] sm:$0xff]
        %v2492 = vld [vmem:[#allocation3 + $0x78] sm:$0xff]
        %2493 = vrot.lane.b32.xlu0 %v1990, 1
        %v2494 = vpop.permute.xlu0 %2493
        %2495 = vrot.lane.b32.xlu0 %v1994, 1
        %v2496 = vpop.permute.xlu0 %2495
        %v2497 = vsel %vm785, %v2494, %v2496
        %v2501 = vmul.f32 %v2481, %v2494
        %v2502 = vmul.f32 %v2482, %v2497
        %v2503 = vmul.f32 %v2483, %v2496
        %v2504 = vmul.f32 %v2484, %v2494
        %v2505 = vmul.f32 %v2485, %v2497
        %v2506 = vmul.f32 %v2486, %v2496
        %v2507 = vmul.f32 %v2487, %v2494
        %v2508 = vmul.f32 %v2488, %v2497
        %v2509 = vmul.f32 %v2489, %v2496
        %v2510 = vmul.f32 %v2490, %v2494
        %v2511 = vmul.f32 %v2491, %v2497
        %v2512 = vmul.f32 %v2492, %v2496
        %s2513 = scalar_lea.vmem [#allocation7], 160
        %v2514 = vld [vmem:[%s2513] sm:$0xff]
        %v2515 = vld [vmem:[%s2513 + $0x8] sm:$0xff]
        %v2516 = vld [vmem:[%s2513 + $0x10] sm:$0xff]
        %v2517 = vld [vmem:[%s2513 + $0x18] sm:$0xff]
        %2530 = vrot.lane.b32.xlu0 %v2501, 127
        %v2531 = vpop.permute.xlu0 %2530
        %2532 = vrot.lane.b32.xlu0 %v2502, 127
        %v2533 = vpop.permute.xlu0 %2532
        %2534 = vrot.lane.b32.xlu0 %v2503, 127
        %v2535 = vpop.permute.xlu0 %2534
        %2536 = vrot.lane.b32.xlu0 %v2504, 127
        %v2537 = vpop.permute.xlu0 %2536
        %2538 = vrot.lane.b32.xlu0 %v2505, 127
        %v2539 = vpop.permute.xlu0 %2538
        %2540 = vrot.lane.b32.xlu0 %v2506, 127
        %v2541 = vpop.permute.xlu0 %2540
        %2542 = vrot.lane.b32.xlu0 %v2507, 127
        %v2543 = vpop.permute.xlu0 %2542
        %2544 = vrot.lane.b32.xlu0 %v2508, 127
        %v2545 = vpop.permute.xlu0 %2544
        %2546 = vrot.lane.b32.xlu0 %v2509, 127
        %v2547 = vpop.permute.xlu0 %2546
        %2548 = vrot.lane.b32.xlu0 %v2510, 127
        %v2549 = vpop.permute.xlu0 %2548
        %2550 = vrot.lane.b32.xlu0 %v2511, 127
        %v2551 = vpop.permute.xlu0 %2550
        %2552 = vrot.lane.b32.xlu0 %v2512, 127
        %v2553 = vpop.permute.xlu0 %2552
        %v2554 = vsel %vm765, %v2531, %v2533
        %v2555 = vsel %vm765, %v2533, %v2535
        %v2556 = vsel %vm765, %v2537, %v2539
        %v2557 = vsel %vm765, %v2539, %v2541
        %v2558 = vsel %vm765, %v2543, %v2545
        %v2559 = vsel %vm765, %v2545, %v2547
        %v2560 = vsel %vm765, %v2549, %v2551
        %v2561 = vsel %vm765, %v2551, %v2553
        %v2571 = vsel %vm1730, %v2514, 0
        %v2574 = vsel %vm1730, %v2515, 0
        %v2577 = vsel %vm1730, %v2516, 0
        %v2580 = vsel %vm1730, %v2517, 0
        %2582 = vmatprep.subr.mxu0 %v2555
        %2583 = vmatpush1.msra.mxu0 %v2554
        %2584 = vmatprep.subr.mxu0 %v2557
        %2585 = vmatpush1.msra.mxu0 %v2556
        %2586 = vmatprep.subr.mxu0 %v2559
        %2587 = vmatpush1.msra.mxu0 %v2558
        %2588 = vmatprep.subr.mxu0 %v2561
        %2589 = vmatpush1.msra.mxu0 %v2560
        %2590 = vmatprep.subr.mxu0 0.0
        %2591 = vmatpush1.msra.mxu0 0.0
        %2592 = vmatprep.subr.mxu0 0.0
        %2593 = vmatpush1.msra.mxu0 0.0
        %2594 = vmatprep.subr.mxu0 0.0
        %2595 = vmatpush1.msra.mxu0 0.0
        %2596 = vmatprep.subr.mxu0 0.0
        %2597 = vmatpush1.msra.mxu0 0.0
        %2598 = vmatprep.subr.mxu0 0.0
        %2599 = vmatpush1.msra.mxu0 0.0
        %2600 = vmatprep.subr.mxu0 0.0
        %2601 = vmatpush1.msra.mxu0 0.0
        %2602 = vmatprep.subr.mxu0 0.0
        %2603 = vmatpush1.msra.mxu0 0.0
        %2604 = vmatprep.subr.mxu0 0.0
        %2605 = vmatpush1.msra.mxu0 0.0
        %2606 = vmatprep.subr.mxu0 0.0
        %2607 = vmatpush1.msra.mxu0 0.0
        %2608 = vmatprep.subr.mxu0 0.0
        %2609 = vmatpush1.msra.mxu0 0.0
        %2610 = vmatprep.subr.mxu0 0.0
        %2611 = vmatpush1.msra.mxu0 0.0
        %2612 = vmatprep.subr.mxu0 0.0
        %2613 = vmatpush1.msra.mxu0 0.0
        %2614 = vmatprep.subr.mxu0 0.0
        %2615 = vmatpush1.msra.mxu0 0.0
        %2616 = vmatprep.subr.mxu0 0.0
        %2617 = vmatpush1.msra.mxu0 0.0
        %2618 = vmatprep.subr.mxu0 0.0
        %2619 = vmatpush1.msra.mxu0 0.0
        %2620 = vmatprep.subr.mxu0 0.0
        %2621 = vmatpush1.msra.mxu0 0.0
        %2622 = vmatprep.subr.mxu0 0.0
        %2623 = vmatpush1.msra.mxu0 0.0
        %2624 = vmatprep.subr.mxu0 0.0
        %2625 = vmatpush1.msra.mxu0 0.0
        %2626 = vmatprep.subr.mxu0 0.0
        %2627 = vmatpush1.msra.mxu0 0.0
        %2628 = vmatprep.subr.mxu0 0.0
        %2629 = vmatpush1.msra.mxu0 0.0
        %2630 = vmatprep.subr.mxu0 0.0
        %2631 = vmatpush1.msra.mxu0 0.0
        %2632 = vmatprep.subr.mxu0 0.0
        %2633 = vmatpush1.msra.mxu0 0.0
        %2634 = vmatprep.subr.mxu0 0.0
        %2635 = vmatpush1.msra.mxu0 0.0
        %2636 = vmatprep.subr.mxu0 0.0
        %2637 = vmatpush1.msra.mxu0 0.0
        %2638 = vmatprep.subr.mxu0 0.0
        %2639 = vmatpush1.msra.mxu0 0.0
        %2640 = vmatprep.subr.mxu0 0.0
        %2641 = vmatpush1.msra.mxu0 0.0
        %2642 = vmatprep.subr.mxu0 0.0
        %2643 = vmatpush1.msra.mxu0 0.0
        %2644 = vmatprep.subr.mxu0 0.0
        %2645 = vmatpush1.msra.mxu0 0.0
        %2646 = vmatprep.mubr.f32.mxu0 0.0
        %2647 = vmatmul.mubr.f32.gmra.mrb[0].mxu0 %v2571
        %v2648 = vpop.f32.mrb[0].mxu0
        %v2649 = vadd.f32 0.0, %v2648
        %v2650 = vpop.f32.mrb[0].mxu0
        %v2651 = vadd.f32 0.0, %v2650
        %2652 = vmatprep.mubr.f32.mxu0 0.0
        %2653 = vmatmul.mubr.f32.gmra.mrb[0].mxu0 %v2574
        %v2654 = vpop.f32.mrb[0].mxu0
        %v2655 = vadd.f32 0.0, %v2654
        %v2656 = vpop.f32.mrb[0].mxu0
        %v2657 = vadd.f32 0.0, %v2656
        %2658 = vmatprep.mubr.f32.mxu0 0.0
        %2659 = vmatmul.mubr.f32.gmra.mrb[0].mxu0 %v2577
        %v2660 = vpop.f32.mrb[0].mxu0
        %v2661 = vadd.f32 0.0, %v2660
        %v2662 = vpop.f32.mrb[0].mxu0
        %v2663 = vadd.f32 0.0, %v2662
        %2664 = vmatprep.mubr.f32.mxu0 0.0
        %2665 = vmatmul.mubr.f32.gmra.mrb[0].mxu0 %v2580
        %v2666 = vpop.f32.mrb[0].mxu0
        %v2667 = vadd.f32 0.0, %v2666
        %v2668 = vpop.f32.mrb[0].mxu0
        %v2669 = vadd.f32 0.0, %v2668
        %2670 = vdwg.mxu0
        %v2671 = vadd.f32 %v2473, %v2649
        %v2672 = vadd.f32 %v2474, %v2651
        %v2673 = vadd.f32 %v2475, %v2655
        %v2674 = vadd.f32 %v2476, %v2657
        %v2675 = vadd.f32 %v2477, %v2661
        %v2676 = vadd.f32 %v2478, %v2663
        %v2677 = vadd.f32 %v2479, %v2667
        %v2678 = vadd.f32 %v2480, %v2669
        %2679 = vrot.lane.b32.xlu0 %v1644, 15
        %v2680 = vpop.permute.xlu0 %2679
        %2681 = vrot.lane.b32.xlu0 %v1648, 15
        %v2682 = vpop.permute.xlu0 %2681
        %v2683 = vsel %vm644, %v2680, %v2682
        %v2687 = vmul.f32 %v2481, %v2680
        %v2688 = vmul.f32 %v2482, %v2683
        %v2689 = vmul.f32 %v2483, %v2682
        %v2690 = vmul.f32 %v2484, %v2680
        %v2691 = vmul.f32 %v2485, %v2683
        %v2692 = vmul.f32 %v2486, %v2682
        %v2693 = vmul.f32 %v2487, %v2680
        %v2694 = vmul.f32 %v2488, %v2683
        %v2695 = vmul.f32 %v2489, %v2682
        %v2696 = vmul.f32 %v2490, %v2680
        %v2697 = vmul.f32 %v2491, %v2683
        %v2698 = vmul.f32 %v2492, %v2682
        %s2699 = scalar_lea.vmem [#allocation7], 192
        %v2700 = vld [vmem:[%s2699] sm:$0xff]
        %v2701 = vld [vmem:[%s2699 + $0x8] sm:$0xff]
        %v2702 = vld [vmem:[%s2699 + $0x10] sm:$0xff]
        %v2703 = vld [vmem:[%s2699 + $0x18] sm:$0xff]
        %2716 = vrot.lane.b32.xlu0 %v2687, 113
        %v2717 = vpop.permute.xlu0 %2716
        %2718 = vrot.lane.b32.xlu0 %v2688, 113
        %v2719 = vpop.permute.xlu0 %2718
        %2720 = vrot.lane.b32.xlu0 %v2689, 113
        %v2721 = vpop.permute.xlu0 %2720
        %2722 = vrot.lane.b32.xlu0 %v2690, 113
        %v2723 = vpop.permute.xlu0 %2722
        %2724 = vrot.lane.b32.xlu0 %v2691, 113
        %v2725 = vpop.permute.xlu0 %2724
        %2726 = vrot.lane.b32.xlu0 %v2692, 113
        %v2727 = vpop.permute.xlu0 %2726
        %2728 = vrot.lane.b32.xlu0 %v2693, 113
        %v2729 = vpop.permute.xlu0 %2728
        %2730 = vrot.lane.b32.xlu0 %v2694, 113
        %v2731 = vpop.permute.xlu0 %2730
        %2732 = vrot.lane.b32.xlu0 %v2695, 113
        %v2733 = vpop.permute.xlu0 %2732
        %2734 = vrot.lane.b32.xlu0 %v2696, 113
        %v2735 = vpop.permute.xlu0 %2734
        %2736 = vrot.lane.b32.xlu0 %v2697, 113
        %v2737 = vpop.permute.xlu0 %2736
        %2738 = vrot.lane.b32.xlu0 %v2698, 113
        %v2739 = vpop.permute.xlu0 %2738
        %v2740 = vsel %vm624, %v2717, %v2719
        %v2741 = vsel %vm624, %v2719, %v2721
        %v2742 = vsel %vm624, %v2723, %v2725
        %v2743 = vsel %vm624, %v2725, %v2727
        %v2744 = vsel %vm624, %v2729, %v2731
        %v2745 = vsel %vm624, %v2731, %v2733
        %v2746 = vsel %vm624, %v2735, %v2737
        %v2747 = vsel %vm624, %v2737, %v2739
        %v2757 = vsel %vm1730, %v2700, 0
        %v2760 = vsel %vm1730, %v2701, 0
        %v2763 = vsel %vm1730, %v2702, 0
        %v2766 = vsel %vm1730, %v2703, 0
        %2768 = vmatprep.subr.mxu0 %v2741
        %2769 = vmatpush1.msra.mxu0 %v2740
        %2770 = vmatprep.subr.mxu0 %v2743
        %2771 = vmatpush1.msra.mxu0 %v2742
        %2772 = vmatprep.subr.mxu0 %v2745
        %2773 = vmatpush1.msra.mxu0 %v2744
        %2774 = vmatprep.subr.mxu0 %v2747
        %2775 = vmatpush1.msra.mxu0 %v2746
        %2776 = vmatprep.subr.mxu0 0.0
        %2777 = vmatpush1.msra.mxu0 0.0
        %2778 = vmatprep.subr.mxu0 0.0
        %2779 = vmatpush1.msra.mxu0 0.0
        %2780 = vmatprep.subr.mxu0 0.0
        %2781 = vmatpush1.msra.mxu0 0.0
        %2782 = vmatprep.subr.mxu0 0.0
        %2783 = vmatpush1.msra.mxu0 0.0
        %2784 = vmatprep.subr.mxu0 0.0
        %2785 = vmatpush1.msra.mxu0 0.0
        %2786 = vmatprep.subr.mxu0 0.0
        %2787 = vmatpush1.msra.mxu0 0.0
        %2788 = vmatprep.subr.mxu0 0.0
        %2789 = vmatpush1.msra.mxu0 0.0
        %2790 = vmatprep.subr.mxu0 0.0
        %2791 = vmatpush1.msra.mxu0 0.0
        %2792 = vmatprep.subr.mxu0 0.0
        %2793 = vmatpush1.msra.mxu0 0.0
        %2794 = vmatprep.subr.mxu0 0.0
        %2795 = vmatpush1.msra.mxu0 0.0
        %2796 = vmatprep.subr.mxu0 0.0
        %2797 = vmatpush1.msra.mxu0 0.0
        %2798 = vmatprep.subr.mxu0 0.0
        %2799 = vmatpush1.msra.mxu0 0.0
        %2800 = vmatprep.subr.mxu0 0.0
        %2801 = vmatpush1.msra.mxu0 0.0
        %2802 = vmatprep.subr.mxu0 0.0
        %2803 = vmatpush1.msra.mxu0 0.0
        %2804 = vmatprep.subr.mxu0 0.0
        %2805 = vmatpush1.msra.mxu0 0.0
        %2806 = vmatprep.subr.mxu0 0.0
        %2807 = vmatpush1.msra.mxu0 0.0
        %2808 = vmatprep.subr.mxu0 0.0
        %2809 = vmatpush1.msra.mxu0 0.0
        %2810 = vmatprep.subr.mxu0 0.0
        %2811 = vmatpush1.msra.mxu0 0.0
        %2812 = vmatprep.subr.mxu0 0.0
        %2813 = vmatpush1.msra.mxu0 0.0
        %2814 = vmatprep.subr.mxu0 0.0
        %2815 = vmatpush1.msra.mxu0 0.0
        %2816 = vmatprep.subr.mxu0 0.0
        %2817 = vmatpush1.msra.mxu0 0.0
        %2818 = vmatprep.subr.mxu0 0.0
        %2819 = vmatpush1.msra.mxu0 0.0
        %2820 = vmatprep.subr.mxu0 0.0
        %2821 = vmatpush1.msra.mxu0 0.0
        %2822 = vmatprep.subr.mxu0 0.0
        %2823 = vmatpush1.msra.mxu0 0.0
        %2824 = vmatprep.subr.mxu0 0.0
        %2825 = vmatpush1.msra.mxu0 0.0
        %2826 = vmatprep.subr.mxu0 0.0
        %2827 = vmatpush1.msra.mxu0 0.0
        %2828 = vmatprep.subr.mxu0 0.0
        %2829 = vmatpush1.msra.mxu0 0.0
        %2830 = vmatprep.subr.mxu0 0.0
        %2831 = vmatpush1.msra.mxu0 0.0
        %2832 = vmatprep.mubr.f32.mxu0 0.0
        %2833 = vmatmul.mubr.f32.gmra.mrb[0].mxu0 %v2757
        %v2834 = vpop.f32.mrb[0].mxu0
        %v2835 = vadd.f32 0.0, %v2834
        %v2836 = vpop.f32.mrb[0].mxu0
        %v2837 = vadd.f32 0.0, %v2836
        %2838 = vmatprep.mubr.f32.mxu0 0.0
        %2839 = vmatmul.mubr.f32.gmra.mrb[0].mxu0 %v2760
        %v2840 = vpop.f32.mrb[0].mxu0
        %v2841 = vadd.f32 0.0, %v2840
        %v2842 = vpop.f32.mrb[0].mxu0
        %v2843 = vadd.f32 0.0, %v2842
        %2844 = vmatprep.mubr.f32.mxu0 0.0
        %2845 = vmatmul.mubr.f32.gmra.mrb[0].mxu0 %v2763
        %v2846 = vpop.f32.mrb[0].mxu0
        %v2847 = vadd.f32 0.0, %v2846
        %v2848 = vpop.f32.mrb[0].mxu0
        %v2849 = vadd.f32 0.0, %v2848
        %2850 = vmatprep.mubr.f32.mxu0 0.0
        %2851 = vmatmul.mubr.f32.gmra.mrb[0].mxu0 %v2766
        %v2852 = vpop.f32.mrb[0].mxu0
        %v2853 = vadd.f32 0.0, %v2852
        %v2854 = vpop.f32.mrb[0].mxu0
        %v2855 = vadd.f32 0.0, %v2854
        %2856 = vdwg.mxu0
        %v2857 = vadd.f32 %v2671, %v2835
        %v2858 = vadd.f32 %v2672, %v2837
        %v2859 = vadd.f32 %v2673, %v2841
        %v2860 = vadd.f32 %v2674, %v2843
        %v2861 = vadd.f32 %v2675, %v2847
        %v2862 = vadd.f32 %v2676, %v2849
        %v2863 = vadd.f32 %v2677, %v2853
        %v2864 = vadd.f32 %v2678, %v2855
        %s2865 = scalar_lea.vmem [#allocation7], 224
        %v2866 = vld [vmem:[%s2865] sm:$0xff]
        %v2867 = vld [vmem:[%s2865 + $0x8] sm:$0xff]
        %v2868 = vld [vmem:[%s2865 + $0x10] sm:$0xff]
        %v2869 = vld [vmem:[%s2865 + $0x18] sm:$0xff]
        %2882 = vrot.lane.b32.xlu0 %v2481, 112
        %v2883 = vpop.permute.xlu0 %2882
        %2884 = vrot.lane.b32.xlu0 %v2482, 112
        %v2885 = vpop.permute.xlu0 %2884
        %2886 = vrot.lane.b32.xlu0 %v2483, 112
        %v2887 = vpop.permute.xlu0 %2886
        %2888 = vrot.lane.b32.xlu0 %v2484, 112
        %v2889 = vpop.permute.xlu0 %2888
        %2890 = vrot.lane.b32.xlu0 %v2485, 112
        %v2891 = vpop.permute.xlu0 %2890
        %2892 = vrot.lane.b32.xlu0 %v2486, 112
        %v2893 = vpop.permute.xlu0 %2892
        %2894 = vrot.lane.b32.xlu0 %v2487, 112
        %v2895 = vpop.permute.xlu0 %2894
        %2896 = vrot.lane.b32.xlu0 %v2488, 112
        %v2897 = vpop.permute.xlu0 %2896
        %2898 = vrot.lane.b32.xlu0 %v2489, 112
        %v2899 = vpop.permute.xlu0 %2898
        %2900 = vrot.lane.b32.xlu0 %v2490, 112
        %v2901 = vpop.permute.xlu0 %2900
        %2902 = vrot.lane.b32.xlu0 %v2491, 112
        %v2903 = vpop.permute.xlu0 %2902
        %2904 = vrot.lane.b32.xlu0 %v2492, 112
        %v2905 = vpop.permute.xlu0 %2904
        %v2906 = vsel %vm1316, %v2883, %v2885
        %v2907 = vsel %vm1316, %v2885, %v2887
        %v2908 = vsel %vm1316, %v2889, %v2891
        %v2909 = vsel %vm1316, %v2891, %v2893
        %v2910 = vsel %vm1316, %v2895, %v2897
        %v2911 = vsel %vm1316, %v2897, %v2899
        %v2912 = vsel %vm1316, %v2901, %v2903
        %v2913 = vsel %vm1316, %v2903, %v2905
        %v2923 = vsel %vm1730, %v2866, 0
        %v2926 = vsel %vm1730, %v2867, 0
        %v2929 = vsel %vm1730, %v2868, 0
        %v2932 = vsel %vm1730, %v2869, 0
        %2934 = vmatprep.subr.mxu0 %v2907
        %2935 = vmatpush1.msra.mxu0 %v2906
        %2936 = vmatprep.subr.mxu0 %v2909
        %2937 = vmatpush1.msra.mxu0 %v2908
        %2938 = vmatprep.subr.mxu0 %v2911
        %2939 = vmatpush1.msra.mxu0 %v2910
        %2940 = vmatprep.subr.mxu0 %v2913
        %2941 = vmatpush1.msra.mxu0 %v2912
        %2942 = vmatprep.subr.mxu0 0.0
        %2943 = vmatpush1.msra.mxu0 0.0
        %2944 = vmatprep.subr.mxu0 0.0
        %2945 = vmatpush1.msra.mxu0 0.0
        %2946 = vmatprep.subr.mxu0 0.0
        %2947 = vmatpush1.msra.mxu0 0.0
        %2948 = vmatprep.subr.mxu0 0.0
        %2949 = vmatpush1.msra.mxu0 0.0
        %2950 = vmatprep.subr.mxu0 0.0
        %2951 = vmatpush1.msra.mxu0 0.0
        %2952 = vmatprep.subr.mxu0 0.0
        %2953 = vmatpush1.msra.mxu0 0.0
        %2954 = vmatprep.subr.mxu0 0.0
        %2955 = vmatpush1.msra.mxu0 0.0
        %2956 = vmatprep.subr.mxu0 0.0
        %2957 = vmatpush1.msra.mxu0 0.0
        %2958 = vmatprep.subr.mxu0 0.0
        %2959 = vmatpush1.msra.mxu0 0.0
        %2960 = vmatprep.subr.mxu0 0.0
        %2961 = vmatpush1.msra.mxu0 0.0
        %2962 = vmatprep.subr.mxu0 0.0
        %2963 = vmatpush1.msra.mxu0 0.0
        %2964 = vmatprep.subr.mxu0 0.0
        %2965 = vmatpush1.msra.mxu0 0.0
        %2966 = vmatprep.subr.mxu0 0.0
        %2967 = vmatpush1.msra.mxu0 0.0
        %2968 = vmatprep.subr.mxu0 0.0
        %2969 = vmatpush1.msra.mxu0 0.0
        %2970 = vmatprep.subr.mxu0 0.0
        %2971 = vmatpush1.msra.mxu0 0.0
        %2972 = vmatprep.subr.mxu0 0.0
        %2973 = vmatpush1.msra.mxu0 0.0
        %2974 = vmatprep.subr.mxu0 0.0
        %2975 = vmatpush1.msra.mxu0 0.0
        %2976 = vmatprep.subr.mxu0 0.0
        %2977 = vmatpush1.msra.mxu0 0.0
        %2978 = vmatprep.subr.mxu0 0.0
        %2979 = vmatpush1.msra.mxu0 0.0
        %2980 = vmatprep.subr.mxu0 0.0
        %2981 = vmatpush1.msra.mxu0 0.0
        %2982 = vmatprep.subr.mxu0 0.0
        %2983 = vmatpush1.msra.mxu0 0.0
        %2984 = vmatprep.subr.mxu0 0.0
        %2985 = vmatpush1.msra.mxu0 0.0
        %2986 = vmatprep.subr.mxu0 0.0
        %2987 = vmatpush1.msra.mxu0 0.0
        %2988 = vmatprep.subr.mxu0 0.0
        %2989 = vmatpush1.msra.mxu0 0.0
        %2990 = vmatprep.subr.mxu0 0.0
        %2991 = vmatpush1.msra.mxu0 0.0
        %2992 = vmatprep.subr.mxu0 0.0
        %2993 = vmatpush1.msra.mxu0 0.0
        %2994 = vmatprep.subr.mxu0 0.0
        %2995 = vmatpush1.msra.mxu0 0.0
        %2996 = vmatprep.subr.mxu0 0.0
        %2997 = vmatpush1.msra.mxu0 0.0
        %2998 = vmatprep.mubr.f32.mxu0 0.0
        %2999 = vmatmul.mubr.f32.gmra.mrb[0].mxu0 %v2923
        %v3000 = vpop.f32.mrb[0].mxu0
        %v3001 = vadd.f32 0.0, %v3000
        %v3002 = vpop.f32.mrb[0].mxu0
        %v3003 = vadd.f32 0.0, %v3002
        %3004 = vmatprep.mubr.f32.mxu0 0.0
        %3005 = vmatmul.mubr.f32.gmra.mrb[0].mxu0 %v2926
        %v3006 = vpop.f32.mrb[0].mxu0
        %v3007 = vadd.f32 0.0, %v3006
        %v3008 = vpop.f32.mrb[0].mxu0
        %v3009 = vadd.f32 0.0, %v3008
        %3010 = vmatprep.mubr.f32.mxu0 0.0
        %3011 = vmatmul.mubr.f32.gmra.mrb[0].mxu0 %v2929
        %v3012 = vpop.f32.mrb[0].mxu0
        %v3013 = vadd.f32 0.0, %v3012
        %v3014 = vpop.f32.mrb[0].mxu0
        %v3015 = vadd.f32 0.0, %v3014
        %3016 = vmatprep.mubr.f32.mxu0 0.0
        %3017 = vmatmul.mubr.f32.gmra.mrb[0].mxu0 %v2932
        %v3018 = vpop.f32.mrb[0].mxu0
        %v3019 = vadd.f32 0.0, %v3018
        %v3020 = vpop.f32.mrb[0].mxu0
        %v3021 = vadd.f32 0.0, %v3020
        %3022 = vdwg.mxu0
        %v3023 = vadd.f32 %v2857, %v3001
        %v3024 = vadd.f32 %v2858, %v3003
        %v3025 = vadd.f32 %v2859, %v3007
        %v3026 = vadd.f32 %v2860, %v3009
        %v3027 = vadd.f32 %v2861, %v3013
        %v3028 = vadd.f32 %v2862, %v3015
        %v3029 = vadd.f32 %v2863, %v3019
        %v3030 = vadd.f32 %v2864, %v3021
        %3031 = vrot.lane.b32.xlu0 %v1990, 17
        %v3032 = vpop.permute.xlu0 %3031
        %3033 = vrot.lane.b32.xlu0 %v1994, 17
        %v3034 = vpop.permute.xlu0 %3033
        %v3035 = vsel %vm499, %v3032, %v3034
        %v3039 = vmul.f32 %v2481, %v3032
        %v3040 = vmul.f32 %v2482, %v3035
        %v3041 = vmul.f32 %v2483, %v3034
        %v3042 = vmul.f32 %v2484, %v3032
        %v3043 = vmul.f32 %v2485, %v3035
        %v3044 = vmul.f32 %v2486, %v3034
        %v3045 = vmul.f32 %v2487, %v3032
        %v3046 = vmul.f32 %v2488, %v3035
        %v3047 = vmul.f32 %v2489, %v3034
        %v3048 = vmul.f32 %v2490, %v3032
        %v3049 = vmul.f32 %v2491, %v3035
        %v3050 = vmul.f32 %v2492, %v3034
        %s3051 = scalar_lea.vmem [#allocation7], 256
        %v3052 = vld [vmem:[%s3051] sm:$0xff]
        %v3053 = vld [vmem:[%s3051 + $0x8] sm:$0xff]
        %v3054 = vld [vmem:[%s3051 + $0x10] sm:$0xff]
        %v3055 = vld [vmem:[%s3051 + $0x18] sm:$0xff]
        %3068 = vrot.lane.b32.xlu0 %v3039, 111
        %v3069 = vpop.permute.xlu0 %3068
        %3070 = vrot.lane.b32.xlu0 %v3040, 111
        %v3071 = vpop.permute.xlu0 %3070
        %3072 = vrot.lane.b32.xlu0 %v3041, 111
        %v3073 = vpop.permute.xlu0 %3072
        %3074 = vrot.lane.b32.xlu0 %v3042, 111
        %v3075 = vpop.permute.xlu0 %3074
        %3076 = vrot.lane.b32.xlu0 %v3043, 111
        %v3077 = vpop.permute.xlu0 %3076
        %3078 = vrot.lane.b32.xlu0 %v3044, 111
        %v3079 = vpop.permute.xlu0 %3078
        %3080 = vrot.lane.b32.xlu0 %v3045, 111
        %v3081 = vpop.permute.xlu0 %3080
        %3082 = vrot.lane.b32.xlu0 %v3046, 111
        %v3083 = vpop.permute.xlu0 %3082
        %3084 = vrot.lane.b32.xlu0 %v3047, 111
        %v3085 = vpop.permute.xlu0 %3084
        %3086 = vrot.lane.b32.xlu0 %v3048, 111
        %v3087 = vpop.permute.xlu0 %3086
        %3088 = vrot.lane.b32.xlu0 %v3049, 111
        %v3089 = vpop.permute.xlu0 %3088
        %3090 = vrot.lane.b32.xlu0 %v3050, 111
        %v3091 = vpop.permute.xlu0 %3090
        %v3092 = vsel %vm356, %v3069, %v3071
        %v3093 = vsel %vm356, %v3071, %v3073
        %v3094 = vsel %vm356, %v3075, %v3077
        %v3095 = vsel %vm356, %v3077, %v3079
        %v3096 = vsel %vm356, %v3081, %v3083
        %v3097 = vsel %vm356, %v3083, %v3085
        %v3098 = vsel %vm356, %v3087, %v3089
        %v3099 = vsel %vm356, %v3089, %v3091
        %v3109 = vsel %vm1730, %v3052, 0
        %v3112 = vsel %vm1730, %v3053, 0
        %v3115 = vsel %vm1730, %v3054, 0
        %v3118 = vsel %vm1730, %v3055, 0
        %3120 = vmatprep.subr.mxu0 %v3093
        %3121 = vmatpush1.msra.mxu0 %v3092
        %3122 = vmatprep.subr.mxu0 %v3095
        %3123 = vmatpush1.msra.mxu0 %v3094
        %3124 = vmatprep.subr.mxu0 %v3097
        %3125 = vmatpush1.msra.mxu0 %v3096
        %3126 = vmatprep.subr.mxu0 %v3099
        %3127 = vmatpush1.msra.mxu0 %v3098
        %3128 = vmatprep.subr.mxu0 0.0
        %3129 = vmatpush1.msra.mxu0 0.0
        %3130 = vmatprep.subr.mxu0 0.0
        %3131 = vmatpush1.msra.mxu0 0.0
        %3132 = vmatprep.subr.mxu0 0.0
        %3133 = vmatpush1.msra.mxu0 0.0
        %3134 = vmatprep.subr.mxu0 0.0
        %3135 = vmatpush1.msra.mxu0 0.0
        %3136 = vmatprep.subr.mxu0 0.0
        %3137 = vmatpush1.msra.mxu0 0.0
        %3138 = vmatprep.subr.mxu0 0.0
        %3139 = vmatpush1.msra.mxu0 0.0
        %3140 = vmatprep.subr.mxu0 0.0
        %3141 = vmatpush1.msra.mxu0 0.0
        %3142 = vmatprep.subr.mxu0 0.0
        %3143 = vmatpush1.msra.mxu0 0.0
        %3144 = vmatprep.subr.mxu0 0.0
        %3145 = vmatpush1.msra.mxu0 0.0
        %3146 = vmatprep.subr.mxu0 0.0
        %3147 = vmatpush1.msra.mxu0 0.0
        %3148 = vmatprep.subr.mxu0 0.0
        %3149 = vmatpush1.msra.mxu0 0.0
        %3150 = vmatprep.subr.mxu0 0.0
        %3151 = vmatpush1.msra.mxu0 0.0
        %3152 = vmatprep.subr.mxu0 0.0
        %3153 = vmatpush1.msra.mxu0 0.0
        %3154 = vmatprep.subr.mxu0 0.0
        %3155 = vmatpush1.msra.mxu0 0.0
        %3156 = vmatprep.subr.mxu0 0.0
        %3157 = vmatpush1.msra.mxu0 0.0
        %3158 = vmatprep.subr.mxu0 0.0
        %3159 = vmatpush1.msra.mxu0 0.0
        %3160 = vmatprep.subr.mxu0 0.0
        %3161 = vmatpush1.msra.mxu0 0.0
        %3162 = vmatprep.subr.mxu0 0.0
        %3163 = vmatpush1.msra.mxu0 0.0
        %3164 = vmatprep.subr.mxu0 0.0
        %3165 = vmatpush1.msra.mxu0 0.0
        %3166 = vmatprep.subr.mxu0 0.0
        %3167 = vmatpush1.msra.mxu0 0.0
        %3168 = vmatprep.subr.mxu0 0.0
        %3169 = vmatpush1.msra.mxu0 0.0
        %3170 = vmatprep.subr.mxu0 0.0
        %3171 = vmatpush1.msra.mxu0 0.0
        %3172 = vmatprep.subr.mxu0 0.0
        %3173 = vmatpush1.msra.mxu0 0.0
        %3174 = vmatprep.subr.mxu0 0.0
        %3175 = vmatpush1.msra.mxu0 0.0
        %3176 = vmatprep.subr.mxu0 0.0
        %3177 = vmatpush1.msra.mxu0 0.0
        %3178 = vmatprep.subr.mxu0 0.0
        %3179 = vmatpush1.msra.mxu0 0.0
        %3180 = vmatprep.subr.mxu0 0.0
        %3181 = vmatpush1.msra.mxu0 0.0
        %3182 = vmatprep.subr.mxu0 0.0
        %3183 = vmatpush1.msra.mxu0 0.0
        %3184 = vmatprep.mubr.f32.mxu0 0.0
        %3185 = vmatmul.mubr.f32.gmra.mrb[0].mxu0 %v3109
        %v3186 = vpop.f32.mrb[0].mxu0
        %v3187 = vadd.f32 0.0, %v3186
        %v3188 = vpop.f32.mrb[0].mxu0
        %v3189 = vadd.f32 0.0, %v3188
        %3190 = vmatprep.mubr.f32.mxu0 0.0
        %3191 = vmatmul.mubr.f32.gmra.mrb[0].mxu0 %v3112
        %v3192 = vpop.f32.mrb[0].mxu0
        %v3193 = vadd.f32 0.0, %v3192
        %v3194 = vpop.f32.mrb[0].mxu0
        %v3195 = vadd.f32 0.0, %v3194
        %3196 = vmatprep.mubr.f32.mxu0 0.0
        %3197 = vmatmul.mubr.f32.gmra.mrb[0].mxu0 %v3115
        %v3198 = vpop.f32.mrb[0].mxu0
        %v3199 = vadd.f32 0.0, %v3198
        %v3200 = vpop.f32.mrb[0].mxu0
        %v3201 = vadd.f32 0.0, %v3200
        %3202 = vmatprep.mubr.f32.mxu0 0.0
        %3203 = vmatmul.mubr.f32.gmra.mrb[0].mxu0 %v3118
        %v3204 = vpop.f32.mrb[0].mxu0
        %v3205 = vadd.f32 0.0, %v3204
        %v3206 = vpop.f32.mrb[0].mxu0
        %v3207 = vadd.f32 0.0, %v3206
        %3208 = vdwg.mxu0
        %v3209 = vadd.f32 %v3023, %v3187
        %v3210 = vadd.f32 %v3024, %v3189
        %v3211 = vadd.f32 %v3025, %v3193
        %v3212 = vadd.f32 %v3026, %v3195
        %v3213 = vadd.f32 %v3027, %v3199
        %v3214 = vadd.f32 %v3028, %v3201
        %v3215 = vadd.f32 %v3029, %v3205
        %v3216 = vadd.f32 %v3030, %v3207
        %v3217 = vld [vmem:[%s4] sm:$0xff]
        %v3218 = vld [vmem:[%s4 + $0x8] sm:$0xff]
        %v3219 = vld [vmem:[%s4 + $0x10] sm:$0xff]
        %v3220 = vld [vmem:[%s4 + $0x18] sm:$0xff]
        %3222 = vset.pattern.permute.xlu0 0
        %3223 = vperm.xlu0 %3222, %v3217
        %v3224 = vpop.permute.xlu0 %3223
        %3227 = vset.pattern.permute.xlu0 0
        %3228 = vperm.xlu0 %3227, %v3218
        %v3229 = vpop.permute.xlu0 %3228
        %3232 = vset.pattern.permute.xlu0 0
        %3233 = vperm.xlu0 %3232, %v3219
        %v3234 = vpop.permute.xlu0 %3233
        %3237 = vset.pattern.permute.xlu0 0
        %3238 = vperm.xlu0 %3237, %v3220
        %v3239 = vpop.permute.xlu0 %3238
        %v3241 = vadd.f32 %v3209, %v3224
        %v3242 = vadd.f32 %v3210, %v3224
        %v3243 = vadd.f32 %v3211, %v3229
        %v3244 = vadd.f32 %v3212, %v3229
        %v3245 = vadd.f32 %v3213, %v3234
        %v3246 = vadd.f32 %v3214, %v3234
        %v3247 = vadd.f32 %v3215, %v3239
        %v3248 = vadd.f32 %v3216, %v3239
        %v3249 = vmax.f32 %v3241, 0.0
        %v3250 = vmax.f32 %v3242, 0.0
        %v3251 = vmax.f32 %v3243, 0.0
        %v3252 = vmax.f32 %v3244, 0.0
        %v3253 = vmax.f32 %v3245, 0.0
        %v3254 = vmax.f32 %v3246, 0.0
        %v3255 = vmax.f32 %v3247, 0.0
        %v3256 = vmax.f32 %v3248, 0.0
        %v3257 = vld [vmem:[%s5] sm:$0xff]
        %v3258 = vld [vmem:[%s5 + $0x8] sm:$0xff]
        %v3259 = vld [vmem:[%s5 + $0x10] sm:$0xff]
        %v3260 = vld [vmem:[%s5 + $0x18] sm:$0xff]
        %3262 = vset.pattern.permute.xlu0 0
        %3263 = vperm.xlu0 %3262, %v3257
        %v3264 = vpop.permute.xlu0 %3263
        %3267 = vset.pattern.permute.xlu0 0
        %3268 = vperm.xlu0 %3267, %v3258
        %v3269 = vpop.permute.xlu0 %3268
        %3272 = vset.pattern.permute.xlu0 0
        %3273 = vperm.xlu0 %3272, %v3259
        %v3274 = vpop.permute.xlu0 %3273
        %3277 = vset.pattern.permute.xlu0 0
        %3278 = vperm.xlu0 %3277, %v3260
        %v3279 = vpop.permute.xlu0 %3278
        %v3281 = vmul.f32 %v3249, %v3264
        %v3282 = vmul.f32 %v3250, %v3264
        %v3283 = vmul.f32 %v3251, %v3269
        %v3284 = vmul.f32 %v3252, %v3269
        %v3285 = vmul.f32 %v3253, %v3274
        %v3286 = vmul.f32 %v3254, %v3274
        %v3287 = vmul.f32 %v3255, %v3279
        %v3288 = vmul.f32 %v3256, %v3279
        %v3289 = vadd.f32 %v3281, %v3283
        %v3290 = vadd.f32 %v3289, %v3285
        %v3291 = vadd.f32 %v3290, %v3287
        %v3292 = vrot.slane %v3291, 4
        %v3293 = vadd.f32 %v3291, %v3292
        %v3294 = vrot.slane %v3293, 2
        %v3295 = vadd.f32 %v3293, %v3294
        %v3296 = vrot.slane %v3295, 1
        %v3297 = vadd.f32 %v3295, %v3296
        %v3298 = vadd.f32 %v3282, %v3284
        %v3299 = vadd.f32 %v3298, %v3286
        %v3300 = vadd.f32 %v3299, %v3288
        %v3301 = vrot.slane %v3300, 4
        %v3302 = vadd.f32 %v3300, %v3301
        %v3303 = vrot.slane %v3302, 2
        %v3304 = vadd.f32 %v3302, %v3303
        %v3305 = vrot.slane %v3304, 1
        %v3306 = vadd.f32 %v3304, %v3305
        %v3307 = vld [vmem:[#allocation4] sm:$0x1]
        %3309 = vset.pattern.permute.xlu0 0
        %3310 = vperm.xlu0 %3309, %v3307
        %v3311 = vpop.permute.xlu0 %3310
        %v3313 = vlaneseq
        %v3314 = vshrl.u32 %v3313, 7
        %v3315 = vsub.s32 0, %v3314
        %v3316 = vrot.slane %v3311, %v3315
        %v3317 = vadd.f32 %v3297, %v3316
        %v3318 = vadd.f32 %v3306, %v3316
        %v3319 = vxor.u32 %v3317, 2147483648
        %v3320 = vxor.u32 %v3318, 2147483648
        %v3321 = vmul.f32 %v3319, 1.442695
        %v3322 = vpow.pop %v3321
        %v3323 = vmul.f32 %v3320, 1.442695
        %v3324 = vpow.pop %v3323
        %v3325 = vadd.f32 %v3322, 1.0
        %v3326 = vadd.f32 %v3324, 1.0
        %v3327 = vrcp.pop %v3325
        %v3328 = vmul.f32 1.0, %v3327
        %v3329 = vrcp.pop %v3326
        %v3330 = vmul.f32 1.0, %v3329
        %v3333 = vcombine.low %v3328, %v3330
        %v3335 = vunpack.c.l.s4 1966171168
        %v3336 = vunpack.c.0.s8 %v3335
        %v3337 = vlaneseq
        %v3338 = vshrl.u32 %v3337, 7
        %v3339 = vsub.s32 %v3336, %v3338
        %v3340 = vrot.slane %v3333, %v3339
        %v3342 = vunpack.c.l.s4 1966171168
        %v3343 = vunpack.c.0.s8 %v3342
        %v3344 = vlaneseq
        %v3345 = vshrl.u32 %v3344, 7
        %v3346 = vsub.s32 %v3343, %v3345
        %v3347 = vrot.slane %v3340, %v3346
        %v3349 = vlaneseq
        %vm3350 = vcmp.ge.s32.totalorder %v3349, 0
        %vm3351 = vcmp.lt.s32.totalorder %v3349, 256
        %vm3352 = vmand %vm3350, %vm3351
        %3353 = vst.msk [vmem:[%s335] sm:$0x3] %vm3352, %v3347
        %p3354 = scmp.lt.s32.totalorder %s23, 1
        %s3355 = scalar_select %p3354, %s23, 1
        %s3356 = smul.addr %s3355, 2
        %s3357 = scalar_lea.vmem %s8, %s3356
        // Predicated region
        $region61: #{_lambda_.1} parent=51 // pred_check
          %p3358 = pneg %p214
        $region62: #{_lambda_.1} parent=51 // pred_check_branch
          %3360 = sbr.rel (%p3358) target = $region64
        $region63: #{_lambda_.1} parent=51 // pred_region
          _
        $region64: #{_lambda_.1} parent=51 // pred_fallthru
          _
      $region52: #{_lambda_.1} parent=5 // pred_fallthru
        _
      %p3361 = scmp.le.s32.totalorder 2, %s18
      // Predicated region
      $region65: #{_lambda_.1} parent=5 // pred_check
        %p3362 = pneg %p3361
      $region66: #{_lambda_.1} parent=5 // pred_check_branch
        %3364 = sbr.rel (%p3362) target = $region68
      $region67: #{_lambda_.1} parent=5 // pred_region
        %s3365 = ssub.s32 %s18, 2
        // Predicated region
        $region69: #{_lambda_.1} parent=67 // pred_check
          %p3366 = pneg %p220
        $region70: #{_lambda_.1} parent=67 // pred_check_branch
          %3368 = sbr.rel (%p3366) target = $region72
        $region71: #{_lambda_.1} parent=67 // pred_region
          %p3369 = scmp.lt.s32.totalorder %s24, 1
          %s3370 = scalar_select %p3369, %s24, 1
          %s3371 = smul.addr %s3370, 2
          %s3372 = scalar_lea.vmem %s8, %s3371
        $region72: #{_lambda_.1} parent=67 // pred_fallthru
          _
      $region68: #{_lambda_.1} parent=5 // pred_fallthru
        _
    $region6: #{_lambda_.1} parent=1 // loop_footer
      %s22 = sadd.s32 1, %s18
    $region7: #{_lambda_.1} parent=1 // loop_footer_branch
      %17 = sbr.rel target = $region3
    $region8: #{_lambda_.1} parent=1 // loop_exit
      _
    %3373 = vsyncpa [#allocation6], 1
    %s3374 = scalar_lea.sflag [#allocation6], 1
    %3375 = vsyncpa %s3374, 1
    %3376 = vsyncpa [#allocation8], 1

</llo_original>
